<compile_context>
chip_gen: v5e
topology: v5e:2x2
jax: 0.10.0
libtpu: 0.0.40
codegen_flags: <defaults>
</compile_context>

<pallas_src>
import functools

import jax
import jax.numpy as jnp
from jax.experimental import pallas as pl
from jax.experimental.pallas import tpu as pltpu


_TM_DEFAULT = 512            # conv pixel-tile rows; sweep 256-2048 (keep modest on v7x: 64 MiB VMEM)
_TR_ELEMWISE = 1024          # row tile for the elementwise residual kernel
_VMEM_LIMIT = 48 * 1024 * 1024


def _round_up(a, b):
    return -(-a // b) * b


# ----------------------------------------------------------------------------
# Pallas kernels
# ----------------------------------------------------------------------------
def _matmul_bias(x, w_ref, b_ref):
    # x: (tm, K) bf16, w: (K, Cout) bf16, b: (1, Cout) f32 -> (tm, Cout) f32
    y = jnp.dot(x, w_ref[...], preferred_element_type=jnp.float32)
    return y + b_ref[...]


def _write_partial_stats(y, st_ref, m_total, tm):
    # Per-tile partial BN statistics: row 0 = sum, row 1 = sum of squares,
    # rows 2..7 = 0.  Zero-padded rows of the last pixel tile are masked out.
    cout = y.shape[1]
    valid = m_total - pl.program_id(0) * tm
    rows = jax.lax.broadcasted_iota(jnp.int32, y.shape, 0)
    ym = jnp.where(rows < valid, y, 0.0)
    s1 = jnp.sum(ym, axis=0, keepdims=True)
    s2 = jnp.sum(ym * ym, axis=0, keepdims=True)
    srow = jax.lax.broadcasted_iota(jnp.int32, (8, cout), 0)
    st_ref[...] = jnp.where(srow == 0, s1, 0.0) + jnp.where(srow == 1, s2, 0.0)


def _conv_kernel(x_ref, w_ref, b_ref, o_ref):
    o_ref[...] = _matmul_bias(x_ref[...], w_ref, b_ref).astype(o_ref.dtype)


def _conv_relu_kernel(x_ref, w_ref, b_ref, o_ref):
    y = _matmul_bias(x_ref[...], w_ref, b_ref)
    o_ref[...] = jnp.maximum(y, 0.0).astype(o_ref.dtype)


def _conv_stats_kernel(x_ref, w_ref, b_ref, o_ref, st_ref, *, m_total, tm):
    y = _matmul_bias(x_ref[...], w_ref, b_ref)
    _write_partial_stats(y, st_ref, m_total, tm)
    o_ref[...] = y.astype(o_ref.dtype)


def _conv_affine_relu_stats_kernel(x_ref, w_ref, b_ref, sc_ref, sh_ref,
                                   o_ref, st_ref, *, m_total, tm):
    # Prologue: per-column (= per input channel, tiled across taps) BN affine +
    # ReLU in f32, then cast to bf16 for the MXU.  Fuses the previous
    # BatchNorm+ReLU into this conv.
    x = x_ref[...].astype(jnp.float32) * sc_ref[...] + sh_ref[...]
    x = jnp.maximum(x, 0.0).astype(jnp.bfloat16)
    y = _matmul_bias(x, w_ref, b_ref)
    _write_partial_stats(y, st_ref, m_total, tm)
    o_ref[...] = y.astype(o_ref.dtype)


def _affine_relu_add_kernel(z_ref, s_ref, t_ref, r_ref, o_ref):
    # out = residual + relu(z * s + t); s/t broadcast per lane-packed channel.
    y = jnp.maximum(z_ref[...] * s_ref[...] + t_ref[...], 0.0)
    o_ref[...] = (r_ref[...] + y).astype(o_ref.dtype)


# ----------------------------------------------------------------------------
# Kernel wrappers
# ----------------------------------------------------------------------------
def conv2d_fused(x, w, b, *, pad=1, prologue=None, relu_out=False,
                 with_stats=False, tm=_TM_DEFAULT):
    """Stride-1 Conv2d as one fused-tap MXU matmul per pixel tile.

    x: (N, H, W, Cin) f32 NHWC; w: (kh, kw, Cin, Cout) f32; b: (Cout,) f32.
    prologue:   optional (scale, shift) per-Cin f32 vectors; the kernel applies
                relu(x*scale + shift) to the im2col block before the matmul.
    relu_out:   fuse a ReLU epilogue.
    with_stats: also return per-Cout (sum, sum_sq) over the N*H*W output
                pixels (training-mode BN statistics of this conv's output).
    """
    n, h, wdt, cin = x.shape
    kh, kw, _, cout = w.shape
    ho = h + 2 * pad - kh + 1
    wo = wdt + 2 * pad - kw + 1
    m = n * ho * wo
    k = kh * kw * cin

    # im2col, materialized ONCE as (M, K): channels concatenated per tap
    # (tap-major, channel-minor), cast to bf16 to halve the DMA into VMEM.
    # TODO(synk): row-halo tiling with manual DMA (memory_space=pl.ANY) would
    # cut the ~kh*kw x activation re-read that this staging still implies.
    xp = jnp.pad(x, ((0, 0), (pad, pad), (pad, pad), (0, 0)))
    cols = [xp[:, ky:ky + ho, kx:kx + wo, :]
            for ky in range(kh) for kx in range(kw)]
    xcol = jnp.concatenate(cols, axis=-1).reshape(m, k).astype(jnp.bfloat16)

    tm_eff = min(tm, _round_up(m, 8))
    nt = -(-m // tm_eff)
    mp = nt * tm_eff
    if mp != m:
        xcol = jnp.pad(xcol, ((0, mp - m), (0, 0)))

    wk = w.reshape(k, cout).astype(jnp.bfloat16)
    bk = b.reshape(1, cout).astype(jnp.float32)

    in_arrays = [xcol, wk, bk]
    in_specs = [
        pl.BlockSpec((tm_eff, k), lambda i: (i, 0)),
        # Weights/bias/affine are grid-invariant and tiny (a few KiB), so the
        # default double-buffering costs negligible VMEM.
        pl.BlockSpec((k, cout), lambda i: (0, 0)),
        pl.BlockSpec((1, cout), lambda i: (0, 0)),
    ]
    if prologue is not None:
        sc, sh = prologue
        in_arrays += [jnp.tile(sc.astype(jnp.float32), kh * kw).reshape(1, k),
                      jnp.tile(sh.astype(jnp.float32), kh * kw).reshape(1, k)]
        in_specs += [pl.BlockSpec((1, k), lambda i: (0, 0)),
                     pl.BlockSpec((1, k), lambda i: (0, 0))]

    # TODO(synk): with Cout << 128 the output store is lane-masked; repacking
    # several pixel rows into the lane dim in-kernel would make it lane-dense.
    out_shapes = [jax.ShapeDtypeStruct((mp, cout), jnp.float32)]
    out_specs = [pl.BlockSpec((tm_eff, cout), lambda i: (i, 0))]
    if with_stats:
        out_shapes.append(jax.ShapeDtypeStruct((nt * 8, cout), jnp.float32))
        out_specs.append(pl.BlockSpec((8, cout), lambda i: (i, 0)))

    if prologue is not None:
        assert with_stats and not relu_out
        kernel = functools.partial(_conv_affine_relu_stats_kernel,
                                   m_total=m, tm=tm_eff)
    elif with_stats:
        assert not relu_out
        kernel = functools.partial(_conv_stats_kernel, m_total=m, tm=tm_eff)
    elif relu_out:
        kernel = _conv_relu_kernel
    else:
        kernel = _conv_kernel

    outs = pl.pallas_call(
        kernel,
        grid=(nt,),
        in_specs=in_specs,
        out_specs=tuple(out_specs),
        out_shape=tuple(out_shapes),
        compiler_params=pltpu.CompilerParams(
            dimension_semantics=("parallel",),
            vmem_limit_bytes=_VMEM_LIMIT),
    )(*in_arrays)

    y = outs[0][:m].reshape(n, ho, wo, cout)
    if not with_stats:
        return y
    st = outs[1].reshape(nt, 8, cout)
    return y, st[:, 0, :].sum(axis=0), st[:, 1, :].sum(axis=0)


def _bn_affine(s, ss, count, gamma, beta, eps=1e-5):
    # Fold training-mode (biased) batch statistics into a per-channel affine,
    # all in f32.
    mean = s / count
    var = jnp.maximum(ss / count - mean * mean, 0.0)
    scale = gamma / jnp.sqrt(var + eps)
    return scale, beta - mean * scale


def affine_relu_add(z, scale, shift, res, *, tr=_TR_ELEMWISE):
    """out = res + relu(z * scale + shift); z/res: (N,H,W,C) f32, scale/shift: (C,)."""
    n, h, w, c = z.shape
    m = n * h * w
    # Lane-pack: view (M, C) as (M/P, P*C) so each vector store fills 128 lanes.
    p = 1
    if c < 128 and 128 % c == 0 and m % (128 // c) == 0:
        p = 128 // c
    rows, lanes = m // p, p * c

    zf = z.reshape(rows, lanes)
    rf = res.reshape(rows, lanes)
    s = jnp.tile(scale.astype(jnp.float32), p).reshape(1, lanes)
    t = jnp.tile(shift.astype(jnp.float32), p).reshape(1, lanes)

    tr_eff = min(tr, _round_up(rows, 8))
    nt = -(-rows // tr_eff)
    rp = nt * tr_eff
    if rp != rows:
        zf = jnp.pad(zf, ((0, rp - rows), (0, 0)))
        rf = jnp.pad(rf, ((0, rp - rows), (0, 0)))

    out = pl.pallas_call(
        _affine_relu_add_kernel,
        grid=(nt,),
        in_specs=[pl.BlockSpec((tr_eff, lanes), lambda i: (i, 0)),
                  pl.BlockSpec((1, lanes), lambda i: (0, 0)),
                  pl.BlockSpec((1, lanes), lambda i: (0, 0)),
                  pl.BlockSpec((tr_eff, lanes), lambda i: (i, 0))],
        out_specs=pl.BlockSpec((tr_eff, lanes), lambda i: (i, 0)),
        out_shape=jax.ShapeDtypeStruct((rp, lanes), jnp.float32),
        compiler_params=pltpu.CompilerParams(
            dimension_semantics=("parallel",),
            vmem_limit_bytes=_VMEM_LIMIT),
    )(zf, s, t, rf)
    return out[:rows].reshape(n, h, w, c)


# ----------------------------------------------------------------------------
# Parameters (matching the PyTorch module init) and forward pass
# ----------------------------------------------------------------------------
class _KeyGen:
    def __init__(self, seed):
        self._key = jax.random.PRNGKey(seed)

    def __call__(self):
        self._key, sub = jax.random.split(self._key)
        return sub


def init_conv(kg, kh, kw, cin, cout, zero_init=False):
    bound = 1e-3 if zero_init else float((cin * kh * kw) ** -0.5)
    return {"w": jax.random.uniform(kg(), (kh, kw, cin, cout), jnp.float32, -bound, bound),
            "b": jax.random.uniform(kg(), (cout,), jnp.float32, -bound, bound)}


def init_bn(c):
    return {"gamma": jnp.ones((c,), jnp.float32),
            "beta": jnp.zeros((c,), jnp.float32)}


def init_resblock(kg, c, expansion=4):
    return {"conv0": init_conv(kg, 3, 3, c, c * expansion),
            "bn0": init_bn(c * expansion),
            "conv1": init_conv(kg, 3, 3, c * expansion, c, zero_init=True),
            "bn1": init_bn(c)}


def init_resnet(kg, in_ch, out_ch, mid_ch, num_blocks=4):
    return {"conv_initial": init_conv(kg, 3, 3, in_ch, mid_ch),
            "blocks": [init_resblock(kg, mid_ch) for _ in range(num_blocks)],
            "conv_final": init_conv(kg, 3, 3, mid_ch, out_ch)}


def resblock_fwd(p, h):
    # PyTorch: inputs + relu(bn1(conv1(dropout(relu(bn0(conv0(inputs))))))),
    # dropout(p=0) is the identity.
    n, hh, ww, _ = h.shape
    m = n * hh * ww
    # conv0 + (fused) BN0 statistics
    z0, s0, q0 = conv2d_fused(h, p["conv0"]["w"], p["conv0"]["b"],
                              pad=1, with_stats=True)
    sc0, sh0 = _bn_affine(s0, q0, m, p["bn0"]["gamma"], p["bn0"]["beta"])
    # BN0-affine + ReLU fused as conv1's prologue; BN1 statistics fused out.
    z1, s1, q1 = conv2d_fused(z0, p["conv1"]["w"], p["conv1"]["b"],
                              pad=1, with_stats=True, prologue=(sc0, sh0))
    sc1, sh1 = _bn_affine(s1, q1, m, p["bn1"]["gamma"], p["bn1"]["beta"])
    # residual add + BN1-affine + ReLU in one lane-packed elementwise kernel
    return affine_relu_add(z1, sc1, sh1, h)


def resnet_fwd_nhwc(p, x):
    h = conv2d_fused(x, p["conv_initial"]["w"], p["conv_initial"]["b"],
                     pad=1, relu_out=True)          # conv_initial + ReLU fused
    for bp in p["blocks"]:
        h = resblock_fwd(bp, h)
    return conv2d_fused(h, p["conv_final"]["w"], p["conv_final"]["b"], pad=1)


def resnet_forward(params, x_nchw):
    x = jnp.transpose(x_nchw, (0, 2, 3, 1))         # NCHW -> NHWC (channels on lanes)
    y = resnet_fwd_nhwc(params, x)
    return jnp.transpose(y, (0, 3, 1, 2))           # NHWC -> NCHW


# ----------------------------------------------------------------------------
if __name__ == "__main__":
    batch, in_ch, out_ch, mid_ch, spatial = 2, 4, 3, 8, 16

    kg = _KeyGen(0)
    params = init_resnet(kg, in_ch, out_ch, mid_ch, num_blocks=4)

    x = jax.random.normal(jax.random.PRNGKey(0),
                          (batch, in_ch, spatial, spatial), dtype=jnp.float32)

    fwd = jax.jit(resnet_forward)
    out = jax.block_until_ready(fwd(params, x))

    assert out.shape == (batch, out_ch, spatial, spatial), out.shape
    assert out.dtype == jnp.float32
    assert bool(jnp.all(jnp.isfinite(out)))
    print("KERNEL_OK")
</pallas_src>

<mosaic_0001>
module attributes {stable_mosaic.version = 11 : i64} {
  func.func @_conv_relu_kernel(%arg0: i32, %arg1: memref<512x36xbf16, #tpu.memory_space<vmem>>, %arg2: memref<36x8xbf16, #tpu.memory_space<vmem>>, %arg3: memref<1x8xf32, #tpu.memory_space<vmem>>, %arg4: memref<512x8xf32, #tpu.memory_space<vmem>>) attributes {dimension_semantics = [#tpu.dimension_semantics<parallel>], iteration_bounds = array<i64: 1>, scalar_prefetch = 0 : i64, scratch_operands = 0 : i64, tpu.core_type = #tpu.core_type<tc>, window_params = [{transform_indices = @transform_0, window_bounds = array<i64: 512, 36>}, {pipeline_mode = #tpu.pipeline_mode<synchronous>, transform_indices = @transform_1, window_bounds = array<i64: 36, 8>}, {pipeline_mode = #tpu.pipeline_mode<synchronous>, transform_indices = @transform_2, window_bounds = array<i64: 1, 8>}, {transform_indices = @transform_3, window_bounds = array<i64: 512, 8>}]} {
    %c0 = arith.constant 0 : index
    %c0_0 = arith.constant 0 : index
    %0 = vector.load %arg1[%c0, %c0_0] : memref<512x36xbf16, #tpu.memory_space<vmem>>, vector<512x36xbf16>
    %c0_1 = arith.constant 0 : index
    %c0_2 = arith.constant 0 : index
    %1 = vector.load %arg2[%c0_1, %c0_2] : memref<36x8xbf16, #tpu.memory_space<vmem>>, vector<36x8xbf16>
    %cst = arith.constant dense<0.000000e+00> : vector<512x8xf32>
    %2 = tpu.matmul %0, %1, %cst {dimension_numbers = #tpu.dot_dimension_numbers<[1], [0], [0], [1], [0, 0, 1, 1], [], []>} : vector<512x36xbf16>, vector<36x8xbf16>, vector<512x8xf32> -> vector<512x8xf32>
    %c0_3 = arith.constant 0 : index
    %c0_4 = arith.constant 0 : index
    %3 = vector.load %arg3[%c0_3, %c0_4] : memref<1x8xf32, #tpu.memory_space<vmem>>, vector<1x8xf32>
    %4 = vector.broadcast %3 : vector<1x8xf32> to vector<512x8xf32>
    %5 = arith.addf %2, %4 : vector<512x8xf32>
    %cst_5 = arith.constant 0.000000e+00 : f32
    %6 = vector.broadcast %cst_5 : f32 to vector<512x8xf32>
    %7 = arith.maximumf %5, %6 : vector<512x8xf32>
    %c0_6 = arith.constant 0 : index
    %c0_7 = arith.constant 0 : index
    %8 = vector.load %arg4[%c0_6, %c0_7] : memref<512x8xf32, #tpu.memory_space<vmem>>, vector<512x8xf32>
    tpu.vector_store %arg4[%c0_6, %c0_7], %7 {strides = array<i32>} : memref<512x8xf32, #tpu.memory_space<vmem>>, vector<512x8xf32>,
    return
  }
  func.func @transform_0(%arg0: i32) -> (i32, i32) {
    %c0_i32 = arith.constant 0 : i32
    %c0_i32_0 = arith.constant 0 : i32
    return %arg0, %c0_i32 : i32, i32
  }
  func.func @transform_1(%arg0: i32) -> (i32, i32) {
    %c0_i32 = arith.constant 0 : i32
    %c0_i32_0 = arith.constant 0 : i32
    %c0_i32_1 = arith.constant 0 : i32
    return %c0_i32, %c0_i32_0 : i32, i32
  }
  func.func @transform_2(%arg0: i32) -> (i32, i32) {
    %c0_i32 = arith.constant 0 : i32
    %c0_i32_0 = arith.constant 0 : i32
    %c0_i32_1 = arith.constant 0 : i32
    return %c0_i32, %c0_i32_0 : i32, i32
  }
  func.func @transform_3(%arg0: i32) -> (i32, i32) {
    %c0_i32 = arith.constant 0 : i32
    %c0_i32_0 = arith.constant 0 : i32
    return %arg0, %c0_i32 : i32, i32
  }
}

module attributes {stable_mosaic.version = 11 : i64} {
  func.func @_conv_stats_kernel(%arg0: i32, %arg1: memref<512x72xbf16, #tpu.memory_space<vmem>>, %arg2: memref<72x32xbf16, #tpu.memory_space<vmem>>, %arg3: memref<1x32xf32, #tpu.memory_space<vmem>>, %arg4: memref<512x32xf32, #tpu.memory_space<vmem>>, %arg5: memref<8x32xf32, #tpu.memory_space<vmem>>) attributes {dimension_semantics = [#tpu.dimension_semantics<parallel>], iteration_bounds = array<i64: 1>, scalar_prefetch = 0 : i64, scratch_operands = 0 : i64, tpu.core_type = #tpu.core_type<tc>, window_params = [{transform_indices = @transform_0, window_bounds = array<i64: 512, 72>}, {pipeline_mode = #tpu.pipeline_mode<synchronous>, transform_indices = @transform_1, window_bounds = array<i64: 72, 32>}, {pipeline_mode = #tpu.pipeline_mode<synchronous>, transform_indices = @transform_2, window_bounds = array<i64: 1, 32>}, {transform_indices = @transform_3, window_bounds = array<i64: 512, 32>}, {transform_indices = @transform_4, window_bounds = array<i64: 8, 32>}]} {
    %c0 = arith.constant 0 : index
    %c0_0 = arith.constant 0 : index
    %0 = vector.load %arg1[%c0, %c0_0] : memref<512x72xbf16, #tpu.memory_space<vmem>>, vector<512x72xbf16>
    %c0_1 = arith.constant 0 : index
    %c0_2 = arith.constant 0 : index
    %1 = vector.load %arg2[%c0_1, %c0_2] : memref<72x32xbf16, #tpu.memory_space<vmem>>, vector<72x32xbf16>
    %cst = arith.constant dense<0.000000e+00> : vector<512x32xf32>
    %2 = tpu.matmul %0, %1, %cst {dimension_numbers = #tpu.dot_dimension_numbers<[1], [0], [0], [1], [0, 0, 1, 1], [], []>} : vector<512x72xbf16>, vector<72x32xbf16>, vector<512x32xf32> -> vector<512x32xf32>
    %c0_3 = arith.constant 0 : index
    %c0_4 = arith.constant 0 : index
    %3 = vector.load %arg3[%c0_3, %c0_4] : memref<1x32xf32, #tpu.memory_space<vmem>>, vector<1x32xf32>
    %4 = vector.broadcast %3 : vector<1x32xf32> to vector<512x32xf32>
    %5 = arith.addf %2, %4 : vector<512x32xf32>
    %c512_i32 = arith.constant 512 : i32
    %6 = arith.muli %arg0, %c512_i32 : i32
    %c512_i32_5 = arith.constant 512 : i32
    %7 = arith.subi %c512_i32_5, %6 : i32
    %8 = tpu.iota {dimensions = array<i32: 0>} : vector<512x32xi32>
    %9 = vector.broadcast %7 : i32 to vector<512x32xi32>
    %10 = arith.cmpi slt, %8, %9 : vector<512x32xi32>
    %cst_6 = arith.constant 0.000000e+00 : f32
    %11 = vector.broadcast %cst_6 : f32 to vector<512x32xf32>
    %12 = arith.select %10, %5, %11 : vector<512x32xi1>, vector<512x32xf32>
    %cst_7 = arith.constant dense<0.000000e+00> : vector<32xf32>
    %13 = vector.multi_reduction <add>, %12, %cst_7 [0] : vector<512x32xf32> to vector<32xf32>
    %14 = vector.shape_cast %13 : vector<32xf32> to vector<1x32xf32>
    %15 = arith.mulf %12, %12 : vector<512x32xf32>
    %cst_8 = arith.constant dense<0.000000e+00> : vector<32xf32>
    %16 = vector.multi_reduction <add>, %15, %cst_8 [0] : vector<512x32xf32> to vector<32xf32>
    %17 = vector.shape_cast %16 : vector<32xf32> to vector<1x32xf32>
    %18 = tpu.iota {dimensions = array<i32: 0>} : vector<8x32xi32>
    %c0_i32 = arith.constant 0 : i32
    %19 = vector.broadcast %c0_i32 : i32 to vector<8x32xi32>
    %20 = arith.cmpi eq, %18, %19 : vector<8x32xi32>
    %cst_9 = arith.constant 0.000000e+00 : f32
    %21 = vector.shape_cast %14 : vector<1x32xf32> to vector<1x32xf32>
    %22 = vector.broadcast %21 : vector<1x32xf32> to vector<8x32xf32>
    %23 = vector.broadcast %cst_9 : f32 to vector<8x32xf32>
    %24 = arith.select %20, %22, %23 : vector<8x32xi1>, vector<8x32xf32>
    %c1_i32 = arith.constant 1 : i32
    %25 = vector.broadcast %c1_i32 : i32 to vector<8x32xi32>
    %26 = arith.cmpi eq, %18, %25 : vector<8x32xi32>
    %cst_10 = arith.constant 0.000000e+00 : f32
    %27 = vector.shape_cast %17 : vector<1x32xf32> to vector<1x32xf32>
    %28 = vector.broadcast %27 : vector<1x32xf32> to vector<8x32xf32>
    %29 = vector.broadcast %cst_10 : f32 to vector<8x32xf32>
    %30 = arith.select %26, %28, %29 : vector<8x32xi1>, vector<8x32xf32>
    %31 = arith.addf %24, %30 : vector<8x32xf32>
    %c0_11 = arith.constant 0 : index
    %c0_12 = arith.constant 0 : index
    %32 = vector.load %arg5[%c0_11, %c0_12] : memref<8x32xf32, #tpu.memory_space<vmem>>, vector<8x32xf32>
    tpu.vector_store %arg5[%c0_11, %c0_12], %31 {strides = array<i32>} : memref<8x32xf32, #tpu.memory_space<vmem>>, vector<8x32xf32>,
    %c0_13 = arith.constant 0 : index
    %c0_14 = arith.constant 0 : index
    %33 = vector.load %arg4[%c0_13, %c0_14] : memref<512x32xf32, #tpu.memory_space<vmem>>, vector<512x32xf32>
    tpu.vector_store %arg4[%c0_13, %c0_14], %5 {strides = array<i32>} : memref<512x32xf32, #tpu.memory_space<vmem>>, vector<512x32xf32>,
    return
  }
  func.func @transform_0(%arg0: i32) -> (i32, i32) {
    %c0_i32 = arith.constant 0 : i32
    %c0_i32_0 = arith.constant 0 : i32
    return %arg0, %c0_i32 : i32, i32
  }
  func.func @transform_1(%arg0: i32) -> (i32, i32) {
    %c0_i32 = arith.constant 0 : i32
    %c0_i32_0 = arith.constant 0 : i32
    %c0_i32_1 = arith.constant 0 : i32
    return %c0_i32, %c0_i32_0 : i32, i32
  }
  func.func @transform_2(%arg0: i32) -> (i32, i32) {
    %c0_i32 = arith.constant 0 : i32
    %c0_i32_0 = arith.constant 0 : i32
    %c0_i32_1 = arith.constant 0 : i32
    return %c0_i32, %c0_i32_0 : i32, i32
  }
  func.func @transform_3(%arg0: i32) -> (i32, i32) {
    %c0_i32 = arith.constant 0 : i32
    %c0_i32_0 = arith.constant 0 : i32
    return %arg0, %c0_i32 : i32, i32
  }
  func.func @transform_4(%arg0: i32) -> (i32, i32) {
    %c0_i32 = arith.constant 0 : i32
    %c0_i32_0 = arith.constant 0 : i32
    return %arg0, %c0_i32 : i32, i32
  }
}

module attributes {stable_mosaic.version = 11 : i64} {
  func.func @_conv_affine_relu_stats_kernel(%arg0: i32, %arg1: memref<512x288xbf16, #tpu.memory_space<vmem>>, %arg2: memref<288x8xbf16, #tpu.memory_space<vmem>>, %arg3: memref<1x8xf32, #tpu.memory_space<vmem>>, %arg4: memref<1x288xf32, #tpu.memory_space<vmem>>, %arg5: memref<1x288xf32, #tpu.memory_space<vmem>>, %arg6: memref<512x8xf32, #tpu.memory_space<vmem>>, %arg7: memref<8x8xf32, #tpu.memory_space<vmem>>) attributes {dimension_semantics = [#tpu.dimension_semantics<parallel>], iteration_bounds = array<i64: 1>, scalar_prefetch = 0 : i64, scratch_operands = 0 : i64, tpu.core_type = #tpu.core_type<tc>, window_params = [{transform_indices = @transform_0, window_bounds = array<i64: 512, 288>}, {pipeline_mode = #tpu.pipeline_mode<synchronous>, transform_indices = @transform_1, window_bounds = array<i64: 288, 8>}, {pipeline_mode = #tpu.pipeline_mode<synchronous>, transform_indices = @transform_2, window_bounds = array<i64: 1, 8>}, {pipeline_mode = #tpu.pipeline_mode<synchronous>, transform_indices = @transform_3, window_bounds = array<i64: 1, 288>}, {pipeline_mode = #tpu.pipeline_mode<synchronous>, transform_indices = @transform_4, window_bounds = array<i64: 1, 288>}, {transform_indices = @transform_5, window_bounds = array<i64: 512, 8>}, {transform_indices = @transform_6, window_bounds = array<i64: 8, 8>}]} {
    %c0 = arith.constant 0 : index
    %c0_0 = arith.constant 0 : index
    %0 = vector.load %arg1[%c0, %c0_0] : memref<512x288xbf16, #tpu.memory_space<vmem>>, vector<512x288xbf16>
    %1 = arith.extf %0 : vector<512x288xbf16> to vector<512x288xf32>
    %c0_1 = arith.constant 0 : index
    %c0_2 = arith.constant 0 : index
    %2 = vector.load %arg4[%c0_1, %c0_2] : memref<1x288xf32, #tpu.memory_space<vmem>>, vector<1x288xf32>
    %3 = vector.broadcast %2 : vector<1x288xf32> to vector<512x288xf32>
    %4 = arith.mulf %1, %3 : vector<512x288xf32>
    %c0_3 = arith.constant 0 : index
    %c0_4 = arith.constant 0 : index
    %5 = vector.load %arg5[%c0_3, %c0_4] : memref<1x288xf32, #tpu.memory_space<vmem>>, vector<1x288xf32>
    %6 = vector.broadcast %5 : vector<1x288xf32> to vector<512x288xf32>
    %7 = arith.addf %4, %6 : vector<512x288xf32>
    %cst = arith.constant 0.000000e+00 : f32
    %8 = vector.broadcast %cst : f32 to vector<512x288xf32>
    %9 = arith.maximumf %7, %8 : vector<512x288xf32>
    %10 = arith.truncf %9 : vector<512x288xf32> to vector<512x288xbf16>
    %c0_5 = arith.constant 0 : index
    %c0_6 = arith.constant 0 : index
    %11 = vector.load %arg2[%c0_5, %c0_6] : memref<288x8xbf16, #tpu.memory_space<vmem>>, vector<288x8xbf16>
    %cst_7 = arith.constant dense<0.000000e+00> : vector<512x8xf32>
    %12 = tpu.matmul %10, %11, %cst_7 {dimension_numbers = #tpu.dot_dimension_numbers<[1], [0], [0], [1], [0, 0, 1, 1], [], []>} : vector<512x288xbf16>, vector<288x8xbf16>, vector<512x8xf32> -> vector<512x8xf32>
    %c0_8 = arith.constant 0 : index
    %c0_9 = arith.constant 0 : index
    %13 = vector.load %arg3[%c0_8, %c0_9] : memref<1x8xf32, #tpu.memory_space<vmem>>, vector<1x8xf32>
    %14 = vector.broadcast %13 : vector<1x8xf32> to vector<512x8xf32>
    %15 = arith.addf %12, %14 : vector<512x8xf32>
    %c512_i32 = arith.constant 512 : i32
    %16 = arith.muli %arg0, %c512_i32 : i32
    %c512_i32_10 = arith.constant 512 : i32
    %17 = arith.subi %c512_i32_10, %16 : i32
    %18 = tpu.iota {dimensions = array<i32: 0>} : vector<512x8xi32>
    %19 = vector.broadcast %17 : i32 to vector<512x8xi32>
    %20 = arith.cmpi slt, %18, %19 : vector<512x8xi32>
    %cst_11 = arith.constant 0.000000e+00 : f32
    %21 = vector.broadcast %cst_11 : f32 to vector<512x8xf32>
    %22 = arith.select %20, %15, %21 : vector<512x8xi1>, vector<512x8xf32>
    %cst_12 = arith.constant dense<0.000000e+00> : vector<8xf32>
    %23 = vector.multi_reduction <add>, %22, %cst_12 [0] : vector<512x8xf32> to vector<8xf32>
    %24 = vector.shape_cast %23 : vector<8xf32> to vector<1x8xf32>
    %25 = arith.mulf %22, %22 : vector<512x8xf32>
    %cst_13 = arith.constant dense<0.000000e+00> : vector<8xf32>
    %26 = vector.multi_reduction <add>, %25, %cst_13 [0] : vector<512x8xf32> to vector<8xf32>
    %27 = vector.shape_cast %26 : vector<8xf32> to vector<1x8xf32>
    %28 = tpu.iota {dimensions = array<i32: 0>} : vector<8x8xi32>
    %c0_i32 = arith.constant 0 : i32
    %29 = vector.broadcast %c0_i32 : i32 to vector<8x8xi32>
    %30 = arith.cmpi eq, %28, %29 : vector<8x8xi32>
    %cst_14 = arith.constant 0.000000e+00 : f32
    %31 = vector.shape_cast %24 : vector<1x8xf32> to vector<1x8xf32>
    %32 = vector.broadcast %31 : vector<1x8xf32> to vector<8x8xf32>
    %33 = vector.broadcast %cst_14 : f32 to vector<8x8xf32>
    %34 = arith.select %30, %32, %33 : vector<8x8xi1>, vector<8x8xf32>
    %c1_i32 = arith.constant 1 : i32
    %35 = vector.broadcast %c1_i32 : i32 to vector<8x8xi32>
    %36 = arith.cmpi eq, %28, %35 : vector<8x8xi32>
    %cst_15 = arith.constant 0.000000e+00 : f32
    %37 = vector.shape_cast %27 : vector<1x8xf32> to vector<1x8xf32>
    %38 = vector.broadcast %37 : vector<1x8xf32> to vector<8x8xf32>
    %39 = vector.broadcast %cst_15 : f32 to vector<8x8xf32>
    %40 = arith.select %36, %38, %39 : vector<8x8xi1>, vector<8x8xf32>
    %41 = arith.addf %34, %40 : vector<8x8xf32>
    %c0_16 = arith.constant 0 : index
    %c0_17 = arith.constant 0 : index
    %42 = vector.load %arg7[%c0_16, %c0_17] : memref<8x8xf32, #tpu.memory_space<vmem>>, vector<8x8xf32>
    tpu.vector_store %arg7[%c0_16, %c0_17], %41 {strides = array<i32>} : memref<8x8xf32, #tpu.memory_space<vmem>>, vector<8x8xf32>,
    %c0_18 = arith.constant 0 : index
    %c0_19 = arith.constant 0 : index
    %43 = vector.load %arg6[%c0_18, %c0_19] : memref<512x8xf32, #tpu.memory_space<vmem>>, vector<512x8xf32>
    tpu.vector_store %arg6[%c0_18, %c0_19], %15 {strides = array<i32>} : memref<512x8xf32, #tpu.memory_space<vmem>>, vector<512x8xf32>,
    return
  }
  func.func @transform_0(%arg0: i32) -> (i32, i32) {
    %c0_i32 = arith.constant 0 : i32
    %c0_i32_0 = arith.constant 0 : i32
    return %arg0, %c0_i32 : i32, i32
  }
  func.func @transform_1(%arg0: i32) -> (i32, i32) {
    %c0_i32 = arith.constant 0 : i32
    %c0_i32_0 = arith.constant 0 : i32
    %c0_i32_1 = arith.constant 0 : i32
    return %c0_i32, %c0_i32_0 : i32, i32
  }
  func.func @transform_2(%arg0: i32) -> (i32, i32) {
    %c0_i32 = arith.constant 0 : i32
    %c0_i32_0 = arith.constant 0 : i32
    %c0_i32_1 = arith.constant 0 : i32
    return %c0_i32, %c0_i32_0 : i32, i32
  }
  func.func @transform_3(%arg0: i32) -> (i32, i32) {
    %c0_i32 = arith.constant 0 : i32
    %c0_i32_0 = arith.constant 0 : i32
    %c0_i32_1 = arith.constant 0 : i32
    return %c0_i32, %c0_i32_0 : i32, i32
  }
  func.func @transform_4(%arg0: i32) -> (i32, i32) {
    %c0_i32 = arith.constant 0 : i32
    %c0_i32_0 = arith.constant 0 : i32
    %c0_i32_1 = arith.constant 0 : i32
    return %c0_i32, %c0_i32_0 : i32, i32
  }
  func.func @transform_5(%arg0: i32) -> (i32, i32) {
    %c0_i32 = arith.constant 0 : i32
    %c0_i32_0 = arith.constant 0 : i32
    return %arg0, %c0_i32 : i32, i32
  }
  func.func @transform_6(%arg0: i32) -> (i32, i32) {
    %c0_i32 = arith.constant 0 : i32
    %c0_i32_0 = arith.constant 0 : i32
    return %arg0, %c0_i32 : i32, i32
  }
}

module attributes {stable_mosaic.version = 11 : i64} {
  func.func @_affine_relu_add_kernel(%arg0: i32, %arg1: memref<32x128xf32, #tpu.memory_space<vmem>>, %arg2: memref<1x128xf32, #tpu.memory_space<vmem>>, %arg3: memref<1x128xf32, #tpu.memory_space<vmem>>, %arg4: memref<32x128xf32, #tpu.memory_space<vmem>>, %arg5: memref<32x128xf32, #tpu.memory_space<vmem>>) attributes {dimension_semantics = [#tpu.dimension_semantics<parallel>], iteration_bounds = array<i64: 1>, scalar_prefetch = 0 : i64, scratch_operands = 0 : i64, tpu.core_type = #tpu.core_type<tc>, window_params = [{transform_indices = @transform_0, window_bounds = array<i64: 32, 128>}, {pipeline_mode = #tpu.pipeline_mode<synchronous>, transform_indices = @transform_1, window_bounds = array<i64: 1, 128>}, {pipeline_mode = #tpu.pipeline_mode<synchronous>, transform_indices = @transform_2, window_bounds = array<i64: 1, 128>}, {transform_indices = @transform_3, window_bounds = array<i64: 32, 128>}, {transform_indices = @transform_4, window_bounds = array<i64: 32, 128>}]} {
    %c0 = arith.constant 0 : index
    %c0_0 = arith.constant 0 : index
    %0 = vector.load %arg1[%c0, %c0_0] : memref<32x128xf32, #tpu.memory_space<vmem>>, vector<32x128xf32>
    %c0_1 = arith.constant 0 : index
    %c0_2 = arith.constant 0 : index
    %1 = vector.load %arg2[%c0_1, %c0_2] : memref<1x128xf32, #tpu.memory_space<vmem>>, vector<1x128xf32>
    %2 = vector.broadcast %1 : vector<1x128xf32> to vector<32x128xf32>
    %3 = arith.mulf %0, %2 : vector<32x128xf32>
    %c0_3 = arith.constant 0 : index
    %c0_4 = arith.constant 0 : index
    %4 = vector.load %arg3[%c0_3, %c0_4] : memref<1x128xf32, #tpu.memory_space<vmem>>, vector<1x128xf32>
    %5 = vector.broadcast %4 : vector<1x128xf32> to vector<32x128xf32>
    %6 = arith.addf %3, %5 : vector<32x128xf32>
    %cst = arith.constant 0.000000e+00 : f32
    %7 = vector.broadcast %cst : f32 to vector<32x128xf32>
    %8 = arith.maximumf %6, %7 : vector<32x128xf32>
    %c0_5 = arith.constant 0 : index
    %c0_6 = arith.constant 0 : index
    %9 = vector.load %arg4[%c0_5, %c0_6] : memref<32x128xf32, #tpu.memory_space<vmem>>, vector<32x128xf32>
    %10 = arith.addf %9, %8 : vector<32x128xf32>
    %c0_7 = arith.constant 0 : index
    %c0_8 = arith.constant 0 : index
    %11 = vector.load %arg5[%c0_7, %c0_8] : memref<32x128xf32, #tpu.memory_space<vmem>>, vector<32x128xf32>
    tpu.vector_store %arg5[%c0_7, %c0_8], %10 {strides = array<i32>} : memref<32x128xf32, #tpu.memory_space<vmem>>, vector<32x128xf32>,
    return
  }
  func.func @transform_0(%arg0: i32) -> (i32, i32) {
    %c0_i32 = arith.constant 0 : i32
    %c0_i32_0 = arith.constant 0 : i32
    return %arg0, %c0_i32 : i32, i32
  }
  func.func @transform_1(%arg0: i32) -> (i32, i32) {
    %c0_i32 = arith.constant 0 : i32
    %c0_i32_0 = arith.constant 0 : i32
    %c0_i32_1 = arith.constant 0 : i32
    return %c0_i32, %c0_i32_0 : i32, i32
  }
  func.func @transform_2(%arg0: i32) -> (i32, i32) {
    %c0_i32 = arith.constant 0 : i32
    %c0_i32_0 = arith.constant 0 : i32
    %c0_i32_1 = arith.constant 0 : i32
    return %c0_i32, %c0_i32_0 : i32, i32
  }
  func.func @transform_3(%arg0: i32) -> (i32, i32) {
    %c0_i32 = arith.constant 0 : i32
    %c0_i32_0 = arith.constant 0 : i32
    return %arg0, %c0_i32 : i32, i32
  }
  func.func @transform_4(%arg0: i32) -> (i32, i32) {
    %c0_i32 = arith.constant 0 : i32
    %c0_i32_0 = arith.constant 0 : i32
    return %arg0, %c0_i32 : i32, i32
  }
}

module attributes {stable_mosaic.version = 11 : i64} {
  func.func @_conv_kernel(%arg0: i32, %arg1: memref<512x72xbf16, #tpu.memory_space<vmem>>, %arg2: memref<72x3xbf16, #tpu.memory_space<vmem>>, %arg3: memref<1x3xf32, #tpu.memory_space<vmem>>, %arg4: memref<512x3xf32, #tpu.memory_space<vmem>>) attributes {dimension_semantics = [#tpu.dimension_semantics<parallel>], iteration_bounds = array<i64: 1>, scalar_prefetch = 0 : i64, scratch_operands = 0 : i64, tpu.core_type = #tpu.core_type<tc>, window_params = [{transform_indices = @transform_0, window_bounds = array<i64: 512, 72>}, {pipeline_mode = #tpu.pipeline_mode<synchronous>, transform_indices = @transform_1, window_bounds = array<i64: 72, 3>}, {pipeline_mode = #tpu.pipeline_mode<synchronous>, transform_indices = @transform_2, window_bounds = array<i64: 1, 3>}, {transform_indices = @transform_3, window_bounds = array<i64: 512, 3>}]} {
    %c0 = arith.constant 0 : index
    %c0_0 = arith.constant 0 : index
    %0 = vector.load %arg1[%c0, %c0_0] : memref<512x72xbf16, #tpu.memory_space<vmem>>, vector<512x72xbf16>
    %c0_1 = arith.constant 0 : index
    %c0_2 = arith.constant 0 : index
    %1 = vector.load %arg2[%c0_1, %c0_2] : memref<72x3xbf16, #tpu.memory_space<vmem>>, vector<72x3xbf16>
    %cst = arith.constant dense<0.000000e+00> : vector<512x3xf32>
    %2 = tpu.matmul %0, %1, %cst {dimension_numbers = #tpu.dot_dimension_numbers<[1], [0], [0], [1], [0, 0, 1, 1], [], []>} : vector<512x72xbf16>, vector<72x3xbf16>, vector<512x3xf32> -> vector<512x3xf32>
    %c0_3 = arith.constant 0 : index
    %c0_4 = arith.constant 0 : index
    %3 = vector.load %arg3[%c0_3, %c0_4] : memref<1x3xf32, #tpu.memory_space<vmem>>, vector<1x3xf32>
    %4 = vector.broadcast %3 : vector<1x3xf32> to vector<512x3xf32>
    %5 = arith.addf %2, %4 : vector<512x3xf32>
    %c0_5 = arith.constant 0 : index
    %c0_6 = arith.constant 0 : index
    %6 = vector.load %arg4[%c0_5, %c0_6] : memref<512x3xf32, #tpu.memory_space<vmem>>, vector<512x3xf32>
    tpu.vector_store %arg4[%c0_5, %c0_6], %5 {strides = array<i32>} : memref<512x3xf32, #tpu.memory_space<vmem>>, vector<512x3xf32>,
    return
  }
  func.func @transform_0(%arg0: i32) -> (i32, i32) {
    %c0_i32 = arith.constant 0 : i32
    %c0_i32_0 = arith.constant 0 : i32
    return %arg0, %c0_i32 : i32, i32
  }
  func.func @transform_1(%arg0: i32) -> (i32, i32) {
    %c0_i32 = arith.constant 0 : i32
    %c0_i32_0 = arith.constant 0 : i32
    %c0_i32_1 = arith.constant 0 : i32
    return %c0_i32, %c0_i32_0 : i32, i32
  }
  func.func @transform_2(%arg0: i32) -> (i32, i32) {
    %c0_i32 = arith.constant 0 : i32
    %c0_i32_0 = arith.constant 0 : i32
    %c0_i32_1 = arith.constant 0 : i32
    return %c0_i32, %c0_i32_0 : i32, i32
  }
  func.func @transform_3(%arg0: i32) -> (i32, i32) {
    %c0_i32 = arith.constant 0 : i32
    %c0_i32_0 = arith.constant 0 : i32
    return %arg0, %c0_i32 : i32, i32
  }
}

</mosaic_0001>

<llo_original>
// kernel: resnet_forward.14
$region0: #{resnet_forward.14}
  #allocation0 [shape = 'u32[]', space=smem, size = 0x4, offset = 0x4, fixed_abs, tag = 'smem constant byte address 0x4 - core index']
  #allocation1 [shape = 'u32[72,128]{1,0:T(1,128)}', space=vmem, size = 0x9000, scoped, tag = 'internal scratch']
  %s0 = inlined_call_operand.vmem [shape: bf16[512,36], index: 0, kind: input, shape index: {}]
  %s1 = inlined_call_operand.vmem [shape: bf16[36,8], index: 1, kind: input, shape index: {}]
  %s2 = inlined_call_operand.vmem [shape: f32[1,8], index: 2, kind: input, shape index: {}]
  %s3 = inlined_call_operand.vmem [shape: f32[512,8], index: 3, kind: output, shape index: {}]
  %s4 = sld [smem:[#allocation0]]
  $region22: #{resnet_forward.14} parent=0
    _
  %s6 = ssub.s32 1, %s4
  %s7 = scalar_select 0, %s6, %s4
  // Predicated region
  $region2: #{resnet_forward.14} parent=0 // pred_check
    _
  $region3: #{resnet_forward.14} parent=0 // pred_check_branch
    %9 = sbr.rel (0) target = $region5
  $region4: #{resnet_forward.14} parent=0 // pred_region
    _
  $region5: #{resnet_forward.14} parent=0 // pred_fallthru
    _
  // Predicated region
  $region6: #{resnet_forward.14} parent=0 // pred_check
    _
  $region7: #{resnet_forward.14} parent=0 // pred_check_branch
    %11 = sbr.rel (0) target = $region9
  $region8: #{resnet_forward.14} parent=0 // pred_region
    _
  $region9: #{resnet_forward.14} parent=0 // pred_fallthru
    _
  // Predicated region
  $region10: #{resnet_forward.14} parent=0 // pred_check
    _
  $region11: #{resnet_forward.14} parent=0 // pred_check_branch
    %13 = sbr.rel (0) target = $region13
  $region12: #{resnet_forward.14} parent=0 // pred_region
    _
  $region13: #{resnet_forward.14} parent=0 // pred_fallthru
    _
  %v15 = vld [vmem:[%s0] sm:$0xf]
  %v16 = vld [vmem:[%s0 + $0x4] sm:$0xf]
  %v17 = vld [vmem:[%s0 + $0x8] sm:$0xf]
  %v18 = vld [vmem:[%s0 + $0xc] sm:$0xf]
  %v19 = vld [vmem:[%s0 + $0x10] sm:$0xf]
  %v20 = vld [vmem:[%s0 + $0x14] sm:$0xf]
  %v21 = vld [vmem:[%s0 + $0x18] sm:$0xf]
  %v22 = vld [vmem:[%s0 + $0x1c] sm:$0xf]
  %v23 = vld [vmem:[%s0 + $0x20] sm:$0xf]
  %v24 = vld [vmem:[%s0 + $0x24] sm:$0xf]
  %v25 = vld [vmem:[%s0 + $0x28] sm:$0xf]
  %v26 = vld [vmem:[%s0 + $0x2c] sm:$0xf]
  %v27 = vld [vmem:[%s0 + $0x30] sm:$0xf]
  %v28 = vld [vmem:[%s0 + $0x34] sm:$0xf]
  %v29 = vld [vmem:[%s0 + $0x38] sm:$0xf]
  %v30 = vld [vmem:[%s0 + $0x3c] sm:$0xf]
  %v31 = vld [vmem:[%s0 + $0x40] sm:$0xf]
  %v32 = vld [vmem:[%s0 + $0x44] sm:$0xf]
  %v33 = vld [vmem:[%s0 + $0x48] sm:$0xf]
  %v34 = vld [vmem:[%s0 + $0x4c] sm:$0xf]
  %v35 = vld [vmem:[%s0 + $0x50] sm:$0xf]
  %v36 = vld [vmem:[%s0 + $0x54] sm:$0xf]
  %v37 = vld [vmem:[%s0 + $0x58] sm:$0xf]
  %v38 = vld [vmem:[%s0 + $0x5c] sm:$0xf]
  %v39 = vld [vmem:[%s0 + $0x60] sm:$0xf]
  %v40 = vld [vmem:[%s0 + $0x64] sm:$0xf]
  %v41 = vld [vmem:[%s0 + $0x68] sm:$0xf]
  %v42 = vld [vmem:[%s0 + $0x6c] sm:$0xf]
  %v43 = vld [vmem:[%s0 + $0x70] sm:$0xf]
  %v44 = vld [vmem:[%s0 + $0x74] sm:$0xf]
  %v45 = vld [vmem:[%s0 + $0x78] sm:$0xf]
  %v46 = vld [vmem:[%s0 + $0x7c] sm:$0xf]
  %v47 = vld [vmem:[%s0 + $0x80] sm:$0xf]
  %v48 = vld [vmem:[%s0 + $0x84] sm:$0xf]
  %v49 = vld [vmem:[%s0 + $0x88] sm:$0xf]
  %v50 = vld [vmem:[%s0 + $0x8c] sm:$0xf]
  %v51 = vld [vmem:[%s0 + $0x90] sm:$0xf]
  %v52 = vld [vmem:[%s0 + $0x94] sm:$0xf]
  %v53 = vld [vmem:[%s0 + $0x98] sm:$0xf]
  %v54 = vld [vmem:[%s0 + $0x9c] sm:$0xf]
  %v55 = vld [vmem:[%s0 + $0xa0] sm:$0xf]
  %v56 = vld [vmem:[%s0 + $0xa4] sm:$0xf]
  %v57 = vld [vmem:[%s0 + $0xa8] sm:$0xf]
  %v58 = vld [vmem:[%s0 + $0xac] sm:$0xf]
  %v59 = vld [vmem:[%s0 + $0xb0] sm:$0xf]
  %v60 = vld [vmem:[%s0 + $0xb4] sm:$0xf]
  %v61 = vld [vmem:[%s0 + $0xb8] sm:$0xf]
  %v62 = vld [vmem:[%s0 + $0xbc] sm:$0xf]
  %v63 = vld [vmem:[%s0 + $0xc0] sm:$0xf]
  %v64 = vld [vmem:[%s0 + $0xc4] sm:$0xf]
  %v65 = vld [vmem:[%s0 + $0xc8] sm:$0xf]
  %v66 = vld [vmem:[%s0 + $0xcc] sm:$0xf]
  %v67 = vld [vmem:[%s0 + $0xd0] sm:$0xf]
  %v68 = vld [vmem:[%s0 + $0xd4] sm:$0xf]
  %v69 = vld [vmem:[%s0 + $0xd8] sm:$0xf]
  %v70 = vld [vmem:[%s0 + $0xdc] sm:$0xf]
  %v71 = vld [vmem:[%s0 + $0xe0] sm:$0xf]
  %v72 = vld [vmem:[%s0 + $0xe4] sm:$0xf]
  %v73 = vld [vmem:[%s0 + $0xe8] sm:$0xf]
  %v74 = vld [vmem:[%s0 + $0xec] sm:$0xf]
  %v75 = vld [vmem:[%s0 + $0xf0] sm:$0xf]
  %v76 = vld [vmem:[%s0 + $0xf4] sm:$0xf]
  %v77 = vld [vmem:[%s0 + $0xf8] sm:$0xf]
  %v78 = vld [vmem:[%s0 + $0xfc] sm:$0xf]
  %v79 = vld [vmem:[%s1] sm:$0xf]
  %v80 = vld [vmem:[%s1 + $0x4] sm:$0xf]
  %v81 = vld [vmem:[%s1 + $0x8] sm:$0xf]
  %v82 = vld [vmem:[%s1 + $0xc] sm:$0xf]
  %v83 = vld [vmem:[%s1 + $0x10] sm:$0x3]
  %v84 = vld [vmem:[%s2] sm:$0x1]
  %v86 = vperm.slane %v84, 0
  %v152 = vunpack.c.l.b16 %v15
  %v153 = vunpack.c.l.b16 %v16
  %v154 = vunpack.c.l.b16 %v17
  %v155 = vunpack.c.l.b16 %v18
  %v156 = vunpack.c.l.b16 %v19
  %v157 = vunpack.c.l.b16 %v20
  %v158 = vunpack.c.l.b16 %v21
  %v159 = vunpack.c.l.b16 %v22
  %v160 = vunpack.c.l.b16 %v23
  %v161 = vunpack.c.l.b16 %v24
  %v162 = vunpack.c.l.b16 %v25
  %v163 = vunpack.c.l.b16 %v26
  %v164 = vunpack.c.l.b16 %v27
  %v165 = vunpack.c.l.b16 %v28
  %v166 = vunpack.c.l.b16 %v29
  %v167 = vunpack.c.l.b16 %v30
  %v168 = vunpack.c.l.b16 %v31
  %v169 = vunpack.c.l.b16 %v32
  %v170 = vunpack.c.l.b16 %v33
  %v171 = vunpack.c.l.b16 %v34
  %v172 = vunpack.c.l.b16 %v35
  %v173 = vunpack.c.l.b16 %v36
  %v174 = vunpack.c.l.b16 %v37
  %v175 = vunpack.c.l.b16 %v38
  %v176 = vunpack.c.l.b16 %v39
  %v177 = vunpack.c.l.b16 %v40
  %v178 = vunpack.c.l.b16 %v41
  %v179 = vunpack.c.l.b16 %v42
  %v180 = vunpack.c.l.b16 %v43
  %v181 = vunpack.c.l.b16 %v44
  %v182 = vunpack.c.l.b16 %v45
  %v183 = vunpack.c.l.b16 %v46
  %v184 = vunpack.c.l.b16 %v47
  %v185 = vunpack.c.l.b16 %v48
  %v186 = vunpack.c.l.b16 %v49
  %v187 = vunpack.c.l.b16 %v50
  %v188 = vunpack.c.l.b16 %v51
  %v189 = vunpack.c.l.b16 %v52
  %v190 = vunpack.c.l.b16 %v53
  %v191 = vunpack.c.l.b16 %v54
  %v192 = vunpack.c.l.b16 %v55
  %v193 = vunpack.c.l.b16 %v56
  %v194 = vunpack.c.l.b16 %v57
  %v195 = vunpack.c.l.b16 %v58
  %v196 = vunpack.c.l.b16 %v59
  %v197 = vunpack.c.l.b16 %v60
  %v198 = vunpack.c.l.b16 %v61
  %v199 = vunpack.c.l.b16 %v62
  %v200 = vunpack.c.l.b16 %v63
  %v201 = vunpack.c.l.b16 %v64
  %v202 = vunpack.c.l.b16 %v65
  %v203 = vunpack.c.l.b16 %v66
  %v204 = vunpack.c.l.b16 %v67
  %v205 = vunpack.c.l.b16 %v68
  %v206 = vunpack.c.l.b16 %v69
  %v207 = vunpack.c.l.b16 %v70
  %v208 = vunpack.c.l.b16 %v71
  %v209 = vunpack.c.l.b16 %v72
  %v210 = vunpack.c.l.b16 %v73
  %v211 = vunpack.c.l.b16 %v74
  %v212 = vunpack.c.l.b16 %v75
  %v213 = vunpack.c.l.b16 %v76
  %v214 = vunpack.c.l.b16 %v77
  %v215 = vunpack.c.l.b16 %v78
  %v216 = vpack.c.b16 %v153, %v152
  %v217 = vpack.c.b16 %v155, %v154
  %v218 = vpack.c.b16 %v157, %v156
  %v219 = vpack.c.b16 %v159, %v158
  %v220 = vpack.c.b16 %v161, %v160
  %v221 = vpack.c.b16 %v163, %v162
  %v222 = vpack.c.b16 %v165, %v164
  %v223 = vpack.c.b16 %v167, %v166
  %v224 = vpack.c.b16 %v169, %v168
  %v225 = vpack.c.b16 %v171, %v170
  %v226 = vpack.c.b16 %v173, %v172
  %v227 = vpack.c.b16 %v175, %v174
  %v228 = vpack.c.b16 %v177, %v176
  %v229 = vpack.c.b16 %v179, %v178
  %v230 = vpack.c.b16 %v181, %v180
  %v231 = vpack.c.b16 %v183, %v182
  %v232 = vpack.c.b16 %v185, %v184
  %v233 = vpack.c.b16 %v187, %v186
  %v234 = vpack.c.b16 %v189, %v188
  %v235 = vpack.c.b16 %v191, %v190
  %v236 = vpack.c.b16 %v193, %v192
  %v237 = vpack.c.b16 %v195, %v194
  %v238 = vpack.c.b16 %v197, %v196
  %v239 = vpack.c.b16 %v199, %v198
  %v240 = vpack.c.b16 %v201, %v200
  %v241 = vpack.c.b16 %v203, %v202
  %v242 = vpack.c.b16 %v205, %v204
  %v243 = vpack.c.b16 %v207, %v206
  %v244 = vpack.c.b16 %v209, %v208
  %v245 = vpack.c.b16 %v211, %v210
  %v246 = vpack.c.b16 %v213, %v212
  %v247 = vpack.c.b16 %v215, %v214
  %v253 = vunpack.c.l.b16 %v79
  %v254 = vunpack.c.l.b16 %v80
  %v255 = vunpack.c.l.b16 %v81
  %v256 = vunpack.c.l.b16 %v82
  %v257 = vunpack.c.l.b16 %v83
  %v258 = vpack.c.b16 %v254, %v253
  %v259 = vpack.c.b16 %v256, %v255
  %v260 = vpack.c.b16 %v257, %v257
  %vm263 = vcmask 293888
  %v265 = vsel %vm263, %v216, 0
  %v268 = vsel %vm263, %v217, 0
  %v271 = vsel %vm263, %v218, 0
  %v274 = vsel %vm263, %v219, 0
  %v277 = vsel %vm263, %v220, 0
  %v280 = vsel %vm263, %v221, 0
  %v283 = vsel %vm263, %v222, 0
  %v286 = vsel %vm263, %v223, 0
  %v289 = vsel %vm263, %v224, 0
  %v292 = vsel %vm263, %v225, 0
  %v295 = vsel %vm263, %v226, 0
  %v298 = vsel %vm263, %v227, 0
  %v301 = vsel %vm263, %v228, 0
  %v304 = vsel %vm263, %v229, 0
  %v307 = vsel %vm263, %v230, 0
  %v310 = vsel %vm263, %v231, 0
  %v313 = vsel %vm263, %v232, 0
  %v316 = vsel %vm263, %v233, 0
  %v319 = vsel %vm263, %v234, 0
  %v322 = vsel %vm263, %v235, 0
  %v325 = vsel %vm263, %v236, 0
  %v328 = vsel %vm263, %v237, 0
  %v331 = vsel %vm263, %v238, 0
  %v334 = vsel %vm263, %v239, 0
  %v337 = vsel %vm263, %v240, 0
  %v340 = vsel %vm263, %v241, 0
  %v343 = vsel %vm263, %v242, 0
  %v346 = vsel %vm263, %v243, 0
  %v349 = vsel %vm263, %v244, 0
  %v352 = vsel %vm263, %v245, 0
  %v355 = vsel %vm263, %v246, 0
  %v358 = vsel %vm263, %v247, 0
  %vm360 = vcmask 1041408
  %v362 = vsel %vm360, %v260, 0
  %364 = vmatpush.bf16.msra.mxu0 0
  %365 = vmatpush.bf16.msra.mxu0 0
  %366 = vmatpush.bf16.msra.mxu0 0
  %367 = vmatpush.bf16.msra.mxu0 0
  %368 = vmatpush.bf16.msra.mxu0 0
  %369 = vmatpush.bf16.msra.mxu0 %v362
  %370 = vmatpush.bf16.msra.mxu0 %v259
  %371 = vmatpush.bf16.msra.mxu0 %v258
  %372 = vmatmul.bf16.gmra.mxu0 %v265
  %v373 = vpop.f32.mrf.mxu0
  %v374 = vadd.f32 %v86, %v373
  %v375 = vpop.f32.mrf.mxu0
  %v376 = vadd.f32 %v86, %v375
  %377 = vmatmul.bf16.gmra.mxu0 %v268
  %v378 = vpop.f32.mrf.mxu0
  %v379 = vadd.f32 %v86, %v378
  %v380 = vpop.f32.mrf.mxu0
  %v381 = vadd.f32 %v86, %v380
  %382 = vmatmul.bf16.gmra.mxu0 %v271
  %v383 = vpop.f32.mrf.mxu0
  %v384 = vadd.f32 %v86, %v383
  %v385 = vpop.f32.mrf.mxu0
  %v386 = vadd.f32 %v86, %v385
  %387 = vmatmul.bf16.gmra.mxu0 %v274
  %v388 = vpop.f32.mrf.mxu0
  %v389 = vadd.f32 %v86, %v388
  %v390 = vpop.f32.mrf.mxu0
  %v391 = vadd.f32 %v86, %v390
  %392 = vmatmul.bf16.gmra.mxu0 %v277
  %v393 = vpop.f32.mrf.mxu0
  %v394 = vadd.f32 %v86, %v393
  %v395 = vpop.f32.mrf.mxu0
  %v396 = vadd.f32 %v86, %v395
  %397 = vmatmul.bf16.gmra.mxu0 %v280
  %v398 = vpop.f32.mrf.mxu0
  %v399 = vadd.f32 %v86, %v398
  %v400 = vpop.f32.mrf.mxu0
  %v401 = vadd.f32 %v86, %v400
  %402 = vmatmul.bf16.gmra.mxu0 %v283
  %v403 = vpop.f32.mrf.mxu0
  %v404 = vadd.f32 %v86, %v403
  %v405 = vpop.f32.mrf.mxu0
  %v406 = vadd.f32 %v86, %v405
  %407 = vmatmul.bf16.gmra.mxu0 %v286
  %v408 = vpop.f32.mrf.mxu0
  %v409 = vadd.f32 %v86, %v408
  %v410 = vpop.f32.mrf.mxu0
  %v411 = vadd.f32 %v86, %v410
  %412 = vmatmul.bf16.gmra.mxu0 %v289
  %v413 = vpop.f32.mrf.mxu0
  %v414 = vadd.f32 %v86, %v413
  %v415 = vpop.f32.mrf.mxu0
  %v416 = vadd.f32 %v86, %v415
  %417 = vmatmul.bf16.gmra.mxu0 %v292
  %v418 = vpop.f32.mrf.mxu0
  %v419 = vadd.f32 %v86, %v418
  %v420 = vpop.f32.mrf.mxu0
  %v421 = vadd.f32 %v86, %v420
  %422 = vmatmul.bf16.gmra.mxu0 %v295
  %v423 = vpop.f32.mrf.mxu0
  %v424 = vadd.f32 %v86, %v423
  %v425 = vpop.f32.mrf.mxu0
  %v426 = vadd.f32 %v86, %v425
  %427 = vmatmul.bf16.gmra.mxu0 %v298
  %v428 = vpop.f32.mrf.mxu0
  %v429 = vadd.f32 %v86, %v428
  %v430 = vpop.f32.mrf.mxu0
  %v431 = vadd.f32 %v86, %v430
  %432 = vmatmul.bf16.gmra.mxu0 %v301
  %v433 = vpop.f32.mrf.mxu0
  %v434 = vadd.f32 %v86, %v433
  %v435 = vpop.f32.mrf.mxu0
  %v436 = vadd.f32 %v86, %v435
  %437 = vmatmul.bf16.gmra.mxu0 %v304
  %v438 = vpop.f32.mrf.mxu0
  %v439 = vadd.f32 %v86, %v438
  %v440 = vpop.f32.mrf.mxu0
  %v441 = vadd.f32 %v86, %v440
  %442 = vmatmul.bf16.gmra.mxu0 %v307
  %v443 = vpop.f32.mrf.mxu0
  %v444 = vadd.f32 %v86, %v443
  %v445 = vpop.f32.mrf.mxu0
  %v446 = vadd.f32 %v86, %v445
  %447 = vmatmul.bf16.gmra.mxu0 %v310
  %v448 = vpop.f32.mrf.mxu0
  %v449 = vadd.f32 %v86, %v448
  %v450 = vpop.f32.mrf.mxu0
  %v451 = vadd.f32 %v86, %v450
  %452 = vmatmul.bf16.gmra.mxu0 %v313
  %v453 = vpop.f32.mrf.mxu0
  %v454 = vadd.f32 %v86, %v453
  %v455 = vpop.f32.mrf.mxu0
  %v456 = vadd.f32 %v86, %v455
  %457 = vmatmul.bf16.gmra.mxu0 %v316
  %v458 = vpop.f32.mrf.mxu0
  %v459 = vadd.f32 %v86, %v458
  %v460 = vpop.f32.mrf.mxu0
  %v461 = vadd.f32 %v86, %v460
  %462 = vmatmul.bf16.gmra.mxu0 %v319
  %v463 = vpop.f32.mrf.mxu0
  %v464 = vadd.f32 %v86, %v463
  %v465 = vpop.f32.mrf.mxu0
  %v466 = vadd.f32 %v86, %v465
  %467 = vmatmul.bf16.gmra.mxu0 %v322
  %v468 = vpop.f32.mrf.mxu0
  %v469 = vadd.f32 %v86, %v468
  %v470 = vpop.f32.mrf.mxu0
  %v471 = vadd.f32 %v86, %v470
  %472 = vmatmul.bf16.gmra.mxu0 %v325
  %v473 = vpop.f32.mrf.mxu0
  %v474 = vadd.f32 %v86, %v473
  %v475 = vpop.f32.mrf.mxu0
  %v476 = vadd.f32 %v86, %v475
  %477 = vmatmul.bf16.gmra.mxu0 %v328
  %v478 = vpop.f32.mrf.mxu0
  %v479 = vadd.f32 %v86, %v478
  %v480 = vpop.f32.mrf.mxu0
  %v481 = vadd.f32 %v86, %v480
  %482 = vmatmul.bf16.gmra.mxu0 %v331
  %v483 = vpop.f32.mrf.mxu0
  %v484 = vadd.f32 %v86, %v483
  %v485 = vpop.f32.mrf.mxu0
  %v486 = vadd.f32 %v86, %v485
  %487 = vmatmul.bf16.gmra.mxu0 %v334
  %v488 = vpop.f32.mrf.mxu0
  %v489 = vadd.f32 %v86, %v488
  %v490 = vpop.f32.mrf.mxu0
  %v491 = vadd.f32 %v86, %v490
  %492 = vmatmul.bf16.gmra.mxu0 %v337
  %v493 = vpop.f32.mrf.mxu0
  %v494 = vadd.f32 %v86, %v493
  %v495 = vpop.f32.mrf.mxu0
  %v496 = vadd.f32 %v86, %v495
  %497 = vmatmul.bf16.gmra.mxu0 %v340
  %v498 = vpop.f32.mrf.mxu0
  %v499 = vadd.f32 %v86, %v498
  %v500 = vpop.f32.mrf.mxu0
  %v501 = vadd.f32 %v86, %v500
  %502 = vmatmul.bf16.gmra.mxu0 %v343
  %v503 = vpop.f32.mrf.mxu0
  %v504 = vadd.f32 %v86, %v503
  %v505 = vpop.f32.mrf.mxu0
  %v506 = vadd.f32 %v86, %v505
  %507 = vmatmul.bf16.gmra.mxu0 %v346
  %v508 = vpop.f32.mrf.mxu0
  %v509 = vadd.f32 %v86, %v508
  %v510 = vpop.f32.mrf.mxu0
  %v511 = vadd.f32 %v86, %v510
  %512 = vmatmul.bf16.gmra.mxu0 %v349
  %v513 = vpop.f32.mrf.mxu0
  %v514 = vadd.f32 %v86, %v513
  %v515 = vpop.f32.mrf.mxu0
  %v516 = vadd.f32 %v86, %v515
  %517 = vmatmul.bf16.gmra.mxu0 %v352
  %v518 = vpop.f32.mrf.mxu0
  %v519 = vadd.f32 %v86, %v518
  %v520 = vpop.f32.mrf.mxu0
  %v521 = vadd.f32 %v86, %v520
  %522 = vmatmul.bf16.gmra.mxu0 %v355
  %v523 = vpop.f32.mrf.mxu0
  %v524 = vadd.f32 %v86, %v523
  %v525 = vpop.f32.mrf.mxu0
  %v526 = vadd.f32 %v86, %v525
  %527 = vmatmul.bf16.gmra.mxu0 %v358
  %v528 = vpop.f32.mrf.mxu0
  %v529 = vadd.f32 %v86, %v528
  %v530 = vpop.f32.mrf.mxu0
  %v531 = vadd.f32 %v86, %v530
  %532 = vdwg.mxu0
  %v533 = vmax.f32 %v374, 0.0
  %v534 = vmax.f32 %v376, 0.0
  %v535 = vmax.f32 %v379, 0.0
  %v536 = vmax.f32 %v381, 0.0
  %v537 = vmax.f32 %v384, 0.0
  %v538 = vmax.f32 %v386, 0.0
  %v539 = vmax.f32 %v389, 0.0
  %v540 = vmax.f32 %v391, 0.0
  %v541 = vmax.f32 %v394, 0.0
  %v542 = vmax.f32 %v396, 0.0
  %v543 = vmax.f32 %v399, 0.0
  %v544 = vmax.f32 %v401, 0.0
  %v545 = vmax.f32 %v404, 0.0
  %v546 = vmax.f32 %v406, 0.0
  %v547 = vmax.f32 %v409, 0.0
  %v548 = vmax.f32 %v411, 0.0
  %v549 = vmax.f32 %v414, 0.0
  %v550 = vmax.f32 %v416, 0.0
  %v551 = vmax.f32 %v419, 0.0
  %v552 = vmax.f32 %v421, 0.0
  %v553 = vmax.f32 %v424, 0.0
  %v554 = vmax.f32 %v426, 0.0
  %v555 = vmax.f32 %v429, 0.0
  %v556 = vmax.f32 %v431, 0.0
  %v557 = vmax.f32 %v434, 0.0
  %v558 = vmax.f32 %v436, 0.0
  %v559 = vmax.f32 %v439, 0.0
  %v560 = vmax.f32 %v441, 0.0
  %v561 = vmax.f32 %v444, 0.0
  %v562 = vmax.f32 %v446, 0.0
  %v563 = vmax.f32 %v449, 0.0
  %v564 = vmax.f32 %v451, 0.0
  %v565 = vmax.f32 %v454, 0.0
  %v566 = vmax.f32 %v456, 0.0
  %v567 = vmax.f32 %v459, 0.0
  %v568 = vmax.f32 %v461, 0.0
  %v569 = vmax.f32 %v464, 0.0
  %v570 = vmax.f32 %v466, 0.0
  %v571 = vmax.f32 %v469, 0.0
  %v572 = vmax.f32 %v471, 0.0
  %v573 = vmax.f32 %v474, 0.0
  %v574 = vmax.f32 %v476, 0.0
  %v575 = vmax.f32 %v479, 0.0
  %v576 = vmax.f32 %v481, 0.0
  %v577 = vmax.f32 %v484, 0.0
  %v578 = vmax.f32 %v486, 0.0
  %v579 = vmax.f32 %v489, 0.0
  %v580 = vmax.f32 %v491, 0.0
  %v581 = vmax.f32 %v494, 0.0
  %v582 = vmax.f32 %v496, 0.0
  %v583 = vmax.f32 %v499, 0.0
  %v584 = vmax.f32 %v501, 0.0
  %v585 = vmax.f32 %v504, 0.0
  %v586 = vmax.f32 %v506, 0.0
  %v587 = vmax.f32 %v509, 0.0
  %v588 = vmax.f32 %v511, 0.0
  %v589 = vmax.f32 %v514, 0.0
  %v590 = vmax.f32 %v516, 0.0
  %v591 = vmax.f32 %v519, 0.0
  %v592 = vmax.f32 %v521, 0.0
  %v593 = vmax.f32 %v524, 0.0
  %v594 = vmax.f32 %v526, 0.0
  %v595 = vmax.f32 %v529, 0.0
  %v596 = vmax.f32 %v531, 0.0
  %vm597 = vcmask 64512
  %598 = vst.msk [vmem:[%s3] sm:$0xff] %vm597, %v533
  %599 = vst.msk [vmem:[%s3 + $0x8] sm:$0xff] %vm597, %v534
  %600 = vst.msk [vmem:[%s3 + $0x10] sm:$0xff] %vm597, %v535
  %601 = vst.msk [vmem:[%s3 + $0x18] sm:$0xff] %vm597, %v536
  %602 = vst.msk [vmem:[%s3 + $0x20] sm:$0xff] %vm597, %v537
  %603 = vst.msk [vmem:[%s3 + $0x28] sm:$0xff] %vm597, %v538
  %604 = vst.msk [vmem:[%s3 + $0x30] sm:$0xff] %vm597, %v539
  %605 = vst.msk [vmem:[%s3 + $0x38] sm:$0xff] %vm597, %v540
  %606 = vst.msk [vmem:[%s3 + $0x40] sm:$0xff] %vm597, %v541
  %607 = vst.msk [vmem:[%s3 + $0x48] sm:$0xff] %vm597, %v542
  %608 = vst.msk [vmem:[%s3 + $0x50] sm:$0xff] %vm597, %v543
  %609 = vst.msk [vmem:[%s3 + $0x58] sm:$0xff] %vm597, %v544
  %610 = vst.msk [vmem:[%s3 + $0x60] sm:$0xff] %vm597, %v545
  %611 = vst.msk [vmem:[%s3 + $0x68] sm:$0xff] %vm597, %v546
  %612 = vst.msk [vmem:[%s3 + $0x70] sm:$0xff] %vm597, %v547
  %613 = vst.msk [vmem:[%s3 + $0x78] sm:$0xff] %vm597, %v548
  %614 = vst.msk [vmem:[%s3 + $0x80] sm:$0xff] %vm597, %v549
  %615 = vst.msk [vmem:[%s3 + $0x88] sm:$0xff] %vm597, %v550
  %616 = vst.msk [vmem:[%s3 + $0x90] sm:$0xff] %vm597, %v551
  %617 = vst.msk [vmem:[%s3 + $0x98] sm:$0xff] %vm597, %v552
  %618 = vst.msk [vmem:[%s3 + $0xa0] sm:$0xff] %vm597, %v553
  %619 = vst.msk [vmem:[%s3 + $0xa8] sm:$0xff] %vm597, %v554
  %620 = vst.msk [vmem:[%s3 + $0xb0] sm:$0xff] %vm597, %v555
  %621 = vst.msk [vmem:[%s3 + $0xb8] sm:$0xff] %vm597, %v556
  %622 = vst.msk [vmem:[%s3 + $0xc0] sm:$0xff] %vm597, %v557
  %623 = vst.msk [vmem:[%s3 + $0xc8] sm:$0xff] %vm597, %v558
  %624 = vst.msk [vmem:[%s3 + $0xd0] sm:$0xff] %vm597, %v559
  %625 = vst.msk [vmem:[%s3 + $0xd8] sm:$0xff] %vm597, %v560
  %626 = vst.msk [vmem:[%s3 + $0xe0] sm:$0xff] %vm597, %v561
  %627 = vst.msk [vmem:[%s3 + $0xe8] sm:$0xff] %vm597, %v562
  %628 = vst.msk [vmem:[%s3 + $0xf0] sm:$0xff] %vm597, %v563
  %629 = vst.msk [vmem:[%s3 + $0xf8] sm:$0xff] %vm597, %v564
  %630 = vst.msk [vmem:[%s3 + $0x100] sm:$0xff] %vm597, %v565
  %631 = vst.msk [vmem:[%s3 + $0x108] sm:$0xff] %vm597, %v566
  %632 = vst.msk [vmem:[%s3 + $0x110] sm:$0xff] %vm597, %v567
  %633 = vst.msk [vmem:[%s3 + $0x118] sm:$0xff] %vm597, %v568
  %634 = vst.msk [vmem:[%s3 + $0x120] sm:$0xff] %vm597, %v569
  %635 = vst.msk [vmem:[%s3 + $0x128] sm:$0xff] %vm597, %v570
  %636 = vst.msk [vmem:[%s3 + $0x130] sm:$0xff] %vm597, %v571
  %637 = vst.msk [vmem:[%s3 + $0x138] sm:$0xff] %vm597, %v572
  %638 = vst.msk [vmem:[%s3 + $0x140] sm:$0xff] %vm597, %v573
  %639 = vst.msk [vmem:[%s3 + $0x148] sm:$0xff] %vm597, %v574
  %640 = vst.msk [vmem:[%s3 + $0x150] sm:$0xff] %vm597, %v575
  %641 = vst.msk [vmem:[%s3 + $0x158] sm:$0xff] %vm597, %v576
  %642 = vst.msk [vmem:[%s3 + $0x160] sm:$0xff] %vm597, %v577
  %643 = vst.msk [vmem:[%s3 + $0x168] sm:$0xff] %vm597, %v578
  %644 = vst.msk [vmem:[%s3 + $0x170] sm:$0xff] %vm597, %v579
  %645 = vst.msk [vmem:[%s3 + $0x178] sm:$0xff] %vm597, %v580
  %646 = vst.msk [vmem:[%s3 + $0x180] sm:$0xff] %vm597, %v581
  %647 = vst.msk [vmem:[%s3 + $0x188] sm:$0xff] %vm597, %v582
  %648 = vst.msk [vmem:[%s3 + $0x190] sm:$0xff] %vm597, %v583
  %649 = vst.msk [vmem:[%s3 + $0x198] sm:$0xff] %vm597, %v584
  %650 = vst.msk [vmem:[%s3 + $0x1a0] sm:$0xff] %vm597, %v585
  %651 = vst.msk [vmem:[%s3 + $0x1a8] sm:$0xff] %vm597, %v586
  %652 = vst.msk [vmem:[%s3 + $0x1b0] sm:$0xff] %vm597, %v587
  %653 = vst.msk [vmem:[%s3 + $0x1b8] sm:$0xff] %vm597, %v588
  %654 = vst.msk [vmem:[%s3 + $0x1c0] sm:$0xff] %vm597, %v589
  %655 = vst.msk [vmem:[%s3 + $0x1c8] sm:$0xff] %vm597, %v590
  %656 = vst.msk [vmem:[%s3 + $0x1d0] sm:$0xff] %vm597, %v591
  %657 = vst.msk [vmem:[%s3 + $0x1d8] sm:$0xff] %vm597, %v592
  %658 = vst.msk [vmem:[%s3 + $0x1e0] sm:$0xff] %vm597, %v593
  %659 = vst.msk [vmem:[%s3 + $0x1e8] sm:$0xff] %vm597, %v594
  %660 = vst.msk [vmem:[%s3 + $0x1f0] sm:$0xff] %vm597, %v595
  %661 = vst.msk [vmem:[%s3 + $0x1f8] sm:$0xff] %vm597, %v596
  // Predicated region
  $region14: #{resnet_forward.14} parent=0 // pred_check
    _
  $region15: #{resnet_forward.14} parent=0 // pred_check_branch
    %663 = sbr.rel (0) target = $region17
  $region16: #{resnet_forward.14} parent=0 // pred_region
    _
  $region17: #{resnet_forward.14} parent=0 // pred_fallthru
    _
  // Predicated region
  $region18: #{resnet_forward.14} parent=0 // pred_check
    _
  $region19: #{resnet_forward.14} parent=0 // pred_check_branch
    %665 = sbr.rel (0) target = $region21
  $region20: #{resnet_forward.14} parent=0 // pred_region
    _
  $region21: #{resnet_forward.14} parent=0 // pred_fallthru
    _

// kernel: resnet_forward.15
$region0: #{resnet_forward.15}
  #allocation0 [shape = 'u32[]', space=smem, size = 0x4, offset = 0x4, fixed_abs, tag = 'smem constant byte address 0x4 - core index']
  #allocation1 [shape = 'u32[72,128]{1,0:T(1,128)}', space=vmem, size = 0x9000, scoped, tag = 'internal scratch']
  %s0 = inlined_call_operand.vmem [shape: bf16[512,72], index: 0, kind: input, shape index: {}]
  %s1 = inlined_call_operand.vmem [shape: bf16[72,32], index: 1, kind: input, shape index: {}]
  %s2 = inlined_call_operand.vmem [shape: f32[1,32], index: 2, kind: input, shape index: {}]
  %s3 = inlined_call_operand.vmem [shape: f32[512,32], index: 3, kind: output, shape index: {0}]
  %s4 = inlined_call_operand.vmem [shape: f32[8,32], index: 4, kind: output, shape index: {1}]
  %5 = xla_tuple %s3, %s4
  %s6 = sld [smem:[#allocation0]]
  $region30: #{resnet_forward.15} parent=0
    _
  %s8 = ssub.s32 1, %s6
  %s9 = scalar_select 0, %s8, %s6
  // Predicated region
  $region2: #{resnet_forward.15} parent=0 // pred_check
    _
  $region3: #{resnet_forward.15} parent=0 // pred_check_branch
    %11 = sbr.rel (0) target = $region5
  $region4: #{resnet_forward.15} parent=0 // pred_region
    _
  $region5: #{resnet_forward.15} parent=0 // pred_fallthru
    _
  // Predicated region
  $region6: #{resnet_forward.15} parent=0 // pred_check
    _
  $region7: #{resnet_forward.15} parent=0 // pred_check_branch
    %13 = sbr.rel (0) target = $region9
  $region8: #{resnet_forward.15} parent=0 // pred_region
    _
  $region9: #{resnet_forward.15} parent=0 // pred_fallthru
    _
  // Predicated region
  $region10: #{resnet_forward.15} parent=0 // pred_check
    _
  $region11: #{resnet_forward.15} parent=0 // pred_check_branch
    %15 = sbr.rel (0) target = $region13
  $region12: #{resnet_forward.15} parent=0 // pred_region
    _
  $region13: #{resnet_forward.15} parent=0 // pred_fallthru
    _
  %v17 = vld [vmem:[%s0] sm:$0xf]
  %v18 = vld [vmem:[%s0 + $0x4] sm:$0xf]
  %v19 = vld [vmem:[%s0 + $0x8] sm:$0xf]
  %v20 = vld [vmem:[%s0 + $0xc] sm:$0xf]
  %v21 = vld [vmem:[%s0 + $0x10] sm:$0xf]
  %v22 = vld [vmem:[%s0 + $0x14] sm:$0xf]
  %v23 = vld [vmem:[%s0 + $0x18] sm:$0xf]
  %v24 = vld [vmem:[%s0 + $0x1c] sm:$0xf]
  %v25 = vld [vmem:[%s0 + $0x20] sm:$0xf]
  %v26 = vld [vmem:[%s0 + $0x24] sm:$0xf]
  %v27 = vld [vmem:[%s0 + $0x28] sm:$0xf]
  %v28 = vld [vmem:[%s0 + $0x2c] sm:$0xf]
  %v29 = vld [vmem:[%s0 + $0x30] sm:$0xf]
  %v30 = vld [vmem:[%s0 + $0x34] sm:$0xf]
  %v31 = vld [vmem:[%s0 + $0x38] sm:$0xf]
  %v32 = vld [vmem:[%s0 + $0x3c] sm:$0xf]
  %v33 = vld [vmem:[%s0 + $0x40] sm:$0xf]
  %v34 = vld [vmem:[%s0 + $0x44] sm:$0xf]
  %v35 = vld [vmem:[%s0 + $0x48] sm:$0xf]
  %v36 = vld [vmem:[%s0 + $0x4c] sm:$0xf]
  %v37 = vld [vmem:[%s0 + $0x50] sm:$0xf]
  %v38 = vld [vmem:[%s0 + $0x54] sm:$0xf]
  %v39 = vld [vmem:[%s0 + $0x58] sm:$0xf]
  %v40 = vld [vmem:[%s0 + $0x5c] sm:$0xf]
  %v41 = vld [vmem:[%s0 + $0x60] sm:$0xf]
  %v42 = vld [vmem:[%s0 + $0x64] sm:$0xf]
  %v43 = vld [vmem:[%s0 + $0x68] sm:$0xf]
  %v44 = vld [vmem:[%s0 + $0x6c] sm:$0xf]
  %v45 = vld [vmem:[%s0 + $0x70] sm:$0xf]
  %v46 = vld [vmem:[%s0 + $0x74] sm:$0xf]
  %v47 = vld [vmem:[%s0 + $0x78] sm:$0xf]
  %v48 = vld [vmem:[%s0 + $0x7c] sm:$0xf]
  %v49 = vld [vmem:[%s0 + $0x80] sm:$0xf]
  %v50 = vld [vmem:[%s0 + $0x84] sm:$0xf]
  %v51 = vld [vmem:[%s0 + $0x88] sm:$0xf]
  %v52 = vld [vmem:[%s0 + $0x8c] sm:$0xf]
  %v53 = vld [vmem:[%s0 + $0x90] sm:$0xf]
  %v54 = vld [vmem:[%s0 + $0x94] sm:$0xf]
  %v55 = vld [vmem:[%s0 + $0x98] sm:$0xf]
  %v56 = vld [vmem:[%s0 + $0x9c] sm:$0xf]
  %v57 = vld [vmem:[%s0 + $0xa0] sm:$0xf]
  %v58 = vld [vmem:[%s0 + $0xa4] sm:$0xf]
  %v59 = vld [vmem:[%s0 + $0xa8] sm:$0xf]
  %v60 = vld [vmem:[%s0 + $0xac] sm:$0xf]
  %v61 = vld [vmem:[%s0 + $0xb0] sm:$0xf]
  %v62 = vld [vmem:[%s0 + $0xb4] sm:$0xf]
  %v63 = vld [vmem:[%s0 + $0xb8] sm:$0xf]
  %v64 = vld [vmem:[%s0 + $0xbc] sm:$0xf]
  %v65 = vld [vmem:[%s0 + $0xc0] sm:$0xf]
  %v66 = vld [vmem:[%s0 + $0xc4] sm:$0xf]
  %v67 = vld [vmem:[%s0 + $0xc8] sm:$0xf]
  %v68 = vld [vmem:[%s0 + $0xcc] sm:$0xf]
  %v69 = vld [vmem:[%s0 + $0xd0] sm:$0xf]
  %v70 = vld [vmem:[%s0 + $0xd4] sm:$0xf]
  %v71 = vld [vmem:[%s0 + $0xd8] sm:$0xf]
  %v72 = vld [vmem:[%s0 + $0xdc] sm:$0xf]
  %v73 = vld [vmem:[%s0 + $0xe0] sm:$0xf]
  %v74 = vld [vmem:[%s0 + $0xe4] sm:$0xf]
  %v75 = vld [vmem:[%s0 + $0xe8] sm:$0xf]
  %v76 = vld [vmem:[%s0 + $0xec] sm:$0xf]
  %v77 = vld [vmem:[%s0 + $0xf0] sm:$0xf]
  %v78 = vld [vmem:[%s0 + $0xf4] sm:$0xf]
  %v79 = vld [vmem:[%s0 + $0xf8] sm:$0xf]
  %v80 = vld [vmem:[%s0 + $0xfc] sm:$0xf]
  %v81 = vld [vmem:[%s1] sm:$0xf]
  %v82 = vld [vmem:[%s1 + $0x4] sm:$0xf]
  %v83 = vld [vmem:[%s1 + $0x8] sm:$0xf]
  %v84 = vld [vmem:[%s1 + $0xc] sm:$0xf]
  %v85 = vld [vmem:[%s1 + $0x10] sm:$0xf]
  %v86 = vld [vmem:[%s1 + $0x14] sm:$0xf]
  %v87 = vld [vmem:[%s1 + $0x18] sm:$0xf]
  %v88 = vld [vmem:[%s1 + $0x1c] sm:$0xf]
  %v89 = vld [vmem:[%s1 + $0x20] sm:$0xf]
  %v90 = vld [vmem:[%s2] sm:$0x1]
  %v92 = vperm.slane %v90, 0
  %v158 = vunpack.c.l.b16 %v17
  %v159 = vunpack.c.l.b16 %v18
  %v160 = vunpack.c.l.b16 %v19
  %v161 = vunpack.c.l.b16 %v20
  %v162 = vunpack.c.l.b16 %v21
  %v163 = vunpack.c.l.b16 %v22
  %v164 = vunpack.c.l.b16 %v23
  %v165 = vunpack.c.l.b16 %v24
  %v166 = vunpack.c.l.b16 %v25
  %v167 = vunpack.c.l.b16 %v26
  %v168 = vunpack.c.l.b16 %v27
  %v169 = vunpack.c.l.b16 %v28
  %v170 = vunpack.c.l.b16 %v29
  %v171 = vunpack.c.l.b16 %v30
  %v172 = vunpack.c.l.b16 %v31
  %v173 = vunpack.c.l.b16 %v32
  %v174 = vunpack.c.l.b16 %v33
  %v175 = vunpack.c.l.b16 %v34
  %v176 = vunpack.c.l.b16 %v35
  %v177 = vunpack.c.l.b16 %v36
  %v178 = vunpack.c.l.b16 %v37
  %v179 = vunpack.c.l.b16 %v38
  %v180 = vunpack.c.l.b16 %v39
  %v181 = vunpack.c.l.b16 %v40
  %v182 = vunpack.c.l.b16 %v41
  %v183 = vunpack.c.l.b16 %v42
  %v184 = vunpack.c.l.b16 %v43
  %v185 = vunpack.c.l.b16 %v44
  %v186 = vunpack.c.l.b16 %v45
  %v187 = vunpack.c.l.b16 %v46
  %v188 = vunpack.c.l.b16 %v47
  %v189 = vunpack.c.l.b16 %v48
  %v190 = vunpack.c.l.b16 %v49
  %v191 = vunpack.c.l.b16 %v50
  %v192 = vunpack.c.l.b16 %v51
  %v193 = vunpack.c.l.b16 %v52
  %v194 = vunpack.c.l.b16 %v53
  %v195 = vunpack.c.l.b16 %v54
  %v196 = vunpack.c.l.b16 %v55
  %v197 = vunpack.c.l.b16 %v56
  %v198 = vunpack.c.l.b16 %v57
  %v199 = vunpack.c.l.b16 %v58
  %v200 = vunpack.c.l.b16 %v59
  %v201 = vunpack.c.l.b16 %v60
  %v202 = vunpack.c.l.b16 %v61
  %v203 = vunpack.c.l.b16 %v62
  %v204 = vunpack.c.l.b16 %v63
  %v205 = vunpack.c.l.b16 %v64
  %v206 = vunpack.c.l.b16 %v65
  %v207 = vunpack.c.l.b16 %v66
  %v208 = vunpack.c.l.b16 %v67
  %v209 = vunpack.c.l.b16 %v68
  %v210 = vunpack.c.l.b16 %v69
  %v211 = vunpack.c.l.b16 %v70
  %v212 = vunpack.c.l.b16 %v71
  %v213 = vunpack.c.l.b16 %v72
  %v214 = vunpack.c.l.b16 %v73
  %v215 = vunpack.c.l.b16 %v74
  %v216 = vunpack.c.l.b16 %v75
  %v217 = vunpack.c.l.b16 %v76
  %v218 = vunpack.c.l.b16 %v77
  %v219 = vunpack.c.l.b16 %v78
  %v220 = vunpack.c.l.b16 %v79
  %v221 = vunpack.c.l.b16 %v80
  %v222 = vpack.c.b16 %v159, %v158
  %v223 = vpack.c.b16 %v161, %v160
  %v224 = vpack.c.b16 %v163, %v162
  %v225 = vpack.c.b16 %v165, %v164
  %v226 = vpack.c.b16 %v167, %v166
  %v227 = vpack.c.b16 %v169, %v168
  %v228 = vpack.c.b16 %v171, %v170
  %v229 = vpack.c.b16 %v173, %v172
  %v230 = vpack.c.b16 %v175, %v174
  %v231 = vpack.c.b16 %v177, %v176
  %v232 = vpack.c.b16 %v179, %v178
  %v233 = vpack.c.b16 %v181, %v180
  %v234 = vpack.c.b16 %v183, %v182
  %v235 = vpack.c.b16 %v185, %v184
  %v236 = vpack.c.b16 %v187, %v186
  %v237 = vpack.c.b16 %v189, %v188
  %v238 = vpack.c.b16 %v191, %v190
  %v239 = vpack.c.b16 %v193, %v192
  %v240 = vpack.c.b16 %v195, %v194
  %v241 = vpack.c.b16 %v197, %v196
  %v242 = vpack.c.b16 %v199, %v198
  %v243 = vpack.c.b16 %v201, %v200
  %v244 = vpack.c.b16 %v203, %v202
  %v245 = vpack.c.b16 %v205, %v204
  %v246 = vpack.c.b16 %v207, %v206
  %v247 = vpack.c.b16 %v209, %v208
  %v248 = vpack.c.b16 %v211, %v210
  %v249 = vpack.c.b16 %v213, %v212
  %v250 = vpack.c.b16 %v215, %v214
  %v251 = vpack.c.b16 %v217, %v216
  %v252 = vpack.c.b16 %v219, %v218
  %v253 = vpack.c.b16 %v221, %v220
  %v263 = vunpack.c.l.b16 %v81
  %v264 = vunpack.c.l.b16 %v82
  %v265 = vunpack.c.l.b16 %v83
  %v266 = vunpack.c.l.b16 %v84
  %v267 = vunpack.c.l.b16 %v85
  %v268 = vunpack.c.l.b16 %v86
  %v269 = vunpack.c.l.b16 %v87
  %v270 = vunpack.c.l.b16 %v88
  %v271 = vunpack.c.l.b16 %v89
  %v272 = vpack.c.b16 %v264, %v263
  %v273 = vpack.c.b16 %v266, %v265
  %v274 = vpack.c.b16 %v268, %v267
  %v275 = vpack.c.b16 %v270, %v269
  %v276 = vpack.c.b16 %v271, %v271
  %vm281 = vcmask 588800
  %v283 = vsel %vm281, %v222, 0
  %v286 = vsel %vm281, %v223, 0
  %v289 = vsel %vm281, %v224, 0
  %v292 = vsel %vm281, %v225, 0
  %v295 = vsel %vm281, %v226, 0
  %v298 = vsel %vm281, %v227, 0
  %v301 = vsel %vm281, %v228, 0
  %v304 = vsel %vm281, %v229, 0
  %v307 = vsel %vm281, %v230, 0
  %v310 = vsel %vm281, %v231, 0
  %v313 = vsel %vm281, %v232, 0
  %v316 = vsel %vm281, %v233, 0
  %v319 = vsel %vm281, %v234, 0
  %v322 = vsel %vm281, %v235, 0
  %v325 = vsel %vm281, %v236, 0
  %v328 = vsel %vm281, %v237, 0
  %v331 = vsel %vm281, %v238, 0
  %v334 = vsel %vm281, %v239, 0
  %v337 = vsel %vm281, %v240, 0
  %v340 = vsel %vm281, %v241, 0
  %v343 = vsel %vm281, %v242, 0
  %v346 = vsel %vm281, %v243, 0
  %v349 = vsel %vm281, %v244, 0
  %v352 = vsel %vm281, %v245, 0
  %v355 = vsel %vm281, %v246, 0
  %v358 = vsel %vm281, %v247, 0
  %v361 = vsel %vm281, %v248, 0
  %v364 = vsel %vm281, %v249, 0
  %v367 = vsel %vm281, %v250, 0
  %v370 = vsel %vm281, %v251, 0
  %v373 = vsel %vm281, %v252, 0
  %v376 = vsel %vm281, %v253, 0
  %vm378 = vcmask 1043456
  %v380 = vsel %vm378, %v276, 0
  %382 = vmatpush.bf16.msra.mxu0 0
  %383 = vmatpush.bf16.msra.mxu0 0
  %384 = vmatpush.bf16.msra.mxu0 0
  %385 = vmatpush.bf16.msra.mxu0 %v380
  %386 = vmatpush.bf16.msra.mxu0 %v275
  %387 = vmatpush.bf16.msra.mxu0 %v274
  %388 = vmatpush.bf16.msra.mxu0 %v273
  %389 = vmatpush.bf16.msra.mxu0 %v272
  %390 = vmatmul.bf16.gmra.mxu0 %v283
  %v391 = vpop.f32.mrf.mxu0
  %v392 = vadd.f32 %v92, %v391
  %v393 = vpop.f32.mrf.mxu0
  %v394 = vadd.f32 %v92, %v393
  %395 = vmatmul.bf16.gmra.mxu0 %v286
  %v396 = vpop.f32.mrf.mxu0
  %v397 = vadd.f32 %v92, %v396
  %v398 = vpop.f32.mrf.mxu0
  %v399 = vadd.f32 %v92, %v398
  %400 = vmatmul.bf16.gmra.mxu0 %v289
  %v401 = vpop.f32.mrf.mxu0
  %v402 = vadd.f32 %v92, %v401
  %v403 = vpop.f32.mrf.mxu0
  %v404 = vadd.f32 %v92, %v403
  %405 = vmatmul.bf16.gmra.mxu0 %v292
  %v406 = vpop.f32.mrf.mxu0
  %v407 = vadd.f32 %v92, %v406
  %v408 = vpop.f32.mrf.mxu0
  %v409 = vadd.f32 %v92, %v408
  %410 = vmatmul.bf16.gmra.mxu0 %v295
  %v411 = vpop.f32.mrf.mxu0
  %v412 = vadd.f32 %v92, %v411
  %v413 = vpop.f32.mrf.mxu0
  %v414 = vadd.f32 %v92, %v413
  %415 = vmatmul.bf16.gmra.mxu0 %v298
  %v416 = vpop.f32.mrf.mxu0
  %v417 = vadd.f32 %v92, %v416
  %v418 = vpop.f32.mrf.mxu0
  %v419 = vadd.f32 %v92, %v418
  %420 = vmatmul.bf16.gmra.mxu0 %v301
  %v421 = vpop.f32.mrf.mxu0
  %v422 = vadd.f32 %v92, %v421
  %v423 = vpop.f32.mrf.mxu0
  %v424 = vadd.f32 %v92, %v423
  %425 = vmatmul.bf16.gmra.mxu0 %v304
  %v426 = vpop.f32.mrf.mxu0
  %v427 = vadd.f32 %v92, %v426
  %v428 = vpop.f32.mrf.mxu0
  %v429 = vadd.f32 %v92, %v428
  %430 = vmatmul.bf16.gmra.mxu0 %v307
  %v431 = vpop.f32.mrf.mxu0
  %v432 = vadd.f32 %v92, %v431
  %v433 = vpop.f32.mrf.mxu0
  %v434 = vadd.f32 %v92, %v433
  %435 = vmatmul.bf16.gmra.mxu0 %v310
  %v436 = vpop.f32.mrf.mxu0
  %v437 = vadd.f32 %v92, %v436
  %v438 = vpop.f32.mrf.mxu0
  %v439 = vadd.f32 %v92, %v438
  %440 = vmatmul.bf16.gmra.mxu0 %v313
  %v441 = vpop.f32.mrf.mxu0
  %v442 = vadd.f32 %v92, %v441
  %v443 = vpop.f32.mrf.mxu0
  %v444 = vadd.f32 %v92, %v443
  %445 = vmatmul.bf16.gmra.mxu0 %v316
  %v446 = vpop.f32.mrf.mxu0
  %v447 = vadd.f32 %v92, %v446
  %v448 = vpop.f32.mrf.mxu0
  %v449 = vadd.f32 %v92, %v448
  %450 = vmatmul.bf16.gmra.mxu0 %v319
  %v451 = vpop.f32.mrf.mxu0
  %v452 = vadd.f32 %v92, %v451
  %v453 = vpop.f32.mrf.mxu0
  %v454 = vadd.f32 %v92, %v453
  %455 = vmatmul.bf16.gmra.mxu0 %v322
  %v456 = vpop.f32.mrf.mxu0
  %v457 = vadd.f32 %v92, %v456
  %v458 = vpop.f32.mrf.mxu0
  %v459 = vadd.f32 %v92, %v458
  %460 = vmatmul.bf16.gmra.mxu0 %v325
  %v461 = vpop.f32.mrf.mxu0
  %v462 = vadd.f32 %v92, %v461
  %v463 = vpop.f32.mrf.mxu0
  %v464 = vadd.f32 %v92, %v463
  %465 = vmatmul.bf16.gmra.mxu0 %v328
  %v466 = vpop.f32.mrf.mxu0
  %v467 = vadd.f32 %v92, %v466
  %v468 = vpop.f32.mrf.mxu0
  %v469 = vadd.f32 %v92, %v468
  %470 = vmatmul.bf16.gmra.mxu0 %v331
  %v471 = vpop.f32.mrf.mxu0
  %v472 = vadd.f32 %v92, %v471
  %v473 = vpop.f32.mrf.mxu0
  %v474 = vadd.f32 %v92, %v473
  %475 = vmatmul.bf16.gmra.mxu0 %v334
  %v476 = vpop.f32.mrf.mxu0
  %v477 = vadd.f32 %v92, %v476
  %v478 = vpop.f32.mrf.mxu0
  %v479 = vadd.f32 %v92, %v478
  %480 = vmatmul.bf16.gmra.mxu0 %v337
  %v481 = vpop.f32.mrf.mxu0
  %v482 = vadd.f32 %v92, %v481
  %v483 = vpop.f32.mrf.mxu0
  %v484 = vadd.f32 %v92, %v483
  %485 = vmatmul.bf16.gmra.mxu0 %v340
  %v486 = vpop.f32.mrf.mxu0
  %v487 = vadd.f32 %v92, %v486
  %v488 = vpop.f32.mrf.mxu0
  %v489 = vadd.f32 %v92, %v488
  %490 = vmatmul.bf16.gmra.mxu0 %v343
  %v491 = vpop.f32.mrf.mxu0
  %v492 = vadd.f32 %v92, %v491
  %v493 = vpop.f32.mrf.mxu0
  %v494 = vadd.f32 %v92, %v493
  %495 = vmatmul.bf16.gmra.mxu0 %v346
  %v496 = vpop.f32.mrf.mxu0
  %v497 = vadd.f32 %v92, %v496
  %v498 = vpop.f32.mrf.mxu0
  %v499 = vadd.f32 %v92, %v498
  %500 = vmatmul.bf16.gmra.mxu0 %v349
  %v501 = vpop.f32.mrf.mxu0
  %v502 = vadd.f32 %v92, %v501
  %v503 = vpop.f32.mrf.mxu0
  %v504 = vadd.f32 %v92, %v503
  %505 = vmatmul.bf16.gmra.mxu0 %v352
  %v506 = vpop.f32.mrf.mxu0
  %v507 = vadd.f32 %v92, %v506
  %v508 = vpop.f32.mrf.mxu0
  %v509 = vadd.f32 %v92, %v508
  %510 = vmatmul.bf16.gmra.mxu0 %v355
  %v511 = vpop.f32.mrf.mxu0
  %v512 = vadd.f32 %v92, %v511
  %v513 = vpop.f32.mrf.mxu0
  %v514 = vadd.f32 %v92, %v513
  %515 = vmatmul.bf16.gmra.mxu0 %v358
  %v516 = vpop.f32.mrf.mxu0
  %v517 = vadd.f32 %v92, %v516
  %v518 = vpop.f32.mrf.mxu0
  %v519 = vadd.f32 %v92, %v518
  %520 = vmatmul.bf16.gmra.mxu0 %v361
  %v521 = vpop.f32.mrf.mxu0
  %v522 = vadd.f32 %v92, %v521
  %v523 = vpop.f32.mrf.mxu0
  %v524 = vadd.f32 %v92, %v523
  %525 = vmatmul.bf16.gmra.mxu0 %v364
  %v526 = vpop.f32.mrf.mxu0
  %v527 = vadd.f32 %v92, %v526
  %v528 = vpop.f32.mrf.mxu0
  %v529 = vadd.f32 %v92, %v528
  %530 = vmatmul.bf16.gmra.mxu0 %v367
  %v531 = vpop.f32.mrf.mxu0
  %v532 = vadd.f32 %v92, %v531
  %v533 = vpop.f32.mrf.mxu0
  %v534 = vadd.f32 %v92, %v533
  %535 = vmatmul.bf16.gmra.mxu0 %v370
  %v536 = vpop.f32.mrf.mxu0
  %v537 = vadd.f32 %v92, %v536
  %v538 = vpop.f32.mrf.mxu0
  %v539 = vadd.f32 %v92, %v538
  %540 = vmatmul.bf16.gmra.mxu0 %v373
  %v541 = vpop.f32.mrf.mxu0
  %v542 = vadd.f32 %v92, %v541
  %v543 = vpop.f32.mrf.mxu0
  %v544 = vadd.f32 %v92, %v543
  %545 = vmatmul.bf16.gmra.mxu0 %v376
  %v546 = vpop.f32.mrf.mxu0
  %v547 = vadd.f32 %v92, %v546
  %v548 = vpop.f32.mrf.mxu0
  %v549 = vadd.f32 %v92, %v548
  %550 = vdwg.mxu0
  %s551 = smul.u32 0, 512
  %s552 = ssub.s32 512, %s551
  %v553 = vlaneseq
  %v554 = vshrl.u32 %v553, 7
  %v555 = vadd.s32 %v554, 8
  %v556 = vadd.s32 %v554, 16
  %v557 = vadd.s32 %v554, 24
  %v558 = vadd.s32 %v554, 32
  %v559 = vadd.s32 %v554, 40
  %v560 = vadd.s32 %v554, 48
  %v561 = vadd.s32 %v554, 56
  %v562 = vadd.s32 %v554, 64
  %v563 = vadd.s32 %v554, 72
  %v564 = vadd.s32 %v554, 80
  %v565 = vadd.s32 %v554, 88
  %v566 = vadd.s32 %v554, 96
  %v567 = vadd.s32 %v554, 104
  %v568 = vadd.s32 %v554, 112
  %v569 = vadd.s32 %v554, 120
  %v570 = vadd.s32 %v554, 128
  %v571 = vadd.s32 %v554, 136
  %v572 = vadd.s32 %v554, 144
  %v573 = vadd.s32 %v554, 152
  %v574 = vadd.s32 %v554, 160
  %v575 = vadd.s32 %v554, 168
  %v576 = vadd.s32 %v554, 176
  %v577 = vadd.s32 %v554, 184
  %v578 = vadd.s32 %v554, 192
  %v579 = vadd.s32 %v554, 200
  %v580 = vadd.s32 %v554, 208
  %v581 = vadd.s32 %v554, 216
  %v582 = vadd.s32 %v554, 224
  %v583 = vadd.s32 %v554, 232
  %v584 = vadd.s32 %v554, 240
  %v585 = vadd.s32 %v554, 248
  %v586 = vadd.s32 %v554, 256
  %v587 = vadd.s32 %v554, 264
  %v588 = vadd.s32 %v554, 272
  %v589 = vadd.s32 %v554, 280
  %v590 = vadd.s32 %v554, 288
  %v591 = vadd.s32 %v554, 296
  %v592 = vadd.s32 %v554, 304
  %v593 = vadd.s32 %v554, 312
  %v594 = vadd.s32 %v554, 320
  %v595 = vadd.s32 %v554, 328
  %v596 = vadd.s32 %v554, 336
  %v597 = vadd.s32 %v554, 344
  %v598 = vadd.s32 %v554, 352
  %v599 = vadd.s32 %v554, 360
  %v600 = vadd.s32 %v554, 368
  %v601 = vadd.s32 %v554, 376
  %v602 = vadd.s32 %v554, 384
  %v603 = vadd.s32 %v554, 392
  %v604 = vadd.s32 %v554, 400
  %v605 = vadd.s32 %v554, 408
  %v606 = vadd.s32 %v554, 416
  %v607 = vadd.s32 %v554, 424
  %v608 = vadd.s32 %v554, 432
  %v609 = vadd.s32 %v554, 440
  %v610 = vadd.s32 %v554, 448
  %v611 = vadd.s32 %v554, 456
  %v612 = vadd.s32 %v554, 464
  %v613 = vadd.s32 %v554, 472
  %v614 = vadd.s32 %v554, 480
  %v615 = vadd.s32 %v554, 488
  %v616 = vadd.s32 %v554, 496
  %v617 = vadd.s32 %v554, 504
  %v618 = vstv %s552
  %vm619 = vcmp.lt.s32.totalorder %v554, %v618
  %vm620 = vcmp.lt.s32.totalorder %v555, %v618
  %vm621 = vcmp.lt.s32.totalorder %v556, %v618
  %vm622 = vcmp.lt.s32.totalorder %v557, %v618
  %vm623 = vcmp.lt.s32.totalorder %v558, %v618
  %vm624 = vcmp.lt.s32.totalorder %v559, %v618
  %vm625 = vcmp.lt.s32.totalorder %v560, %v618
  %vm626 = vcmp.lt.s32.totalorder %v561, %v618
  %vm627 = vcmp.lt.s32.totalorder %v562, %v618
  %vm628 = vcmp.lt.s32.totalorder %v563, %v618
  %vm629 = vcmp.lt.s32.totalorder %v564, %v618
  %vm630 = vcmp.lt.s32.totalorder %v565, %v618
  %vm631 = vcmp.lt.s32.totalorder %v566, %v618
  %vm632 = vcmp.lt.s32.totalorder %v567, %v618
  %vm633 = vcmp.lt.s32.totalorder %v568, %v618
  %vm634 = vcmp.lt.s32.totalorder %v569, %v618
  %vm635 = vcmp.lt.s32.totalorder %v570, %v618
  %vm636 = vcmp.lt.s32.totalorder %v571, %v618
  %vm637 = vcmp.lt.s32.totalorder %v572, %v618
  %vm638 = vcmp.lt.s32.totalorder %v573, %v618
  %vm639 = vcmp.lt.s32.totalorder %v574, %v618
  %vm640 = vcmp.lt.s32.totalorder %v575, %v618
  %vm641 = vcmp.lt.s32.totalorder %v576, %v618
  %vm642 = vcmp.lt.s32.totalorder %v577, %v618
  %vm643 = vcmp.lt.s32.totalorder %v578, %v618
  %vm644 = vcmp.lt.s32.totalorder %v579, %v618
  %vm645 = vcmp.lt.s32.totalorder %v580, %v618
  %vm646 = vcmp.lt.s32.totalorder %v581, %v618
  %vm647 = vcmp.lt.s32.totalorder %v582, %v618
  %vm648 = vcmp.lt.s32.totalorder %v583, %v618
  %vm649 = vcmp.lt.s32.totalorder %v584, %v618
  %vm650 = vcmp.lt.s32.totalorder %v585, %v618
  %vm651 = vcmp.lt.s32.totalorder %v586, %v618
  %vm652 = vcmp.lt.s32.totalorder %v587, %v618
  %vm653 = vcmp.lt.s32.totalorder %v588, %v618
  %vm654 = vcmp.lt.s32.totalorder %v589, %v618
  %vm655 = vcmp.lt.s32.totalorder %v590, %v618
  %vm656 = vcmp.lt.s32.totalorder %v591, %v618
  %vm657 = vcmp.lt.s32.totalorder %v592, %v618
  %vm658 = vcmp.lt.s32.totalorder %v593, %v618
  %vm659 = vcmp.lt.s32.totalorder %v594, %v618
  %vm660 = vcmp.lt.s32.totalorder %v595, %v618
  %vm661 = vcmp.lt.s32.totalorder %v596, %v618
  %vm662 = vcmp.lt.s32.totalorder %v597, %v618
  %vm663 = vcmp.lt.s32.totalorder %v598, %v618
  %vm664 = vcmp.lt.s32.totalorder %v599, %v618
  %vm665 = vcmp.lt.s32.totalorder %v600, %v618
  %vm666 = vcmp.lt.s32.totalorder %v601, %v618
  %vm667 = vcmp.lt.s32.totalorder %v602, %v618
  %vm668 = vcmp.lt.s32.totalorder %v603, %v618
  %vm669 = vcmp.lt.s32.totalorder %v604, %v618
  %vm670 = vcmp.lt.s32.totalorder %v605, %v618
  %vm671 = vcmp.lt.s32.totalorder %v606, %v618
  %vm672 = vcmp.lt.s32.totalorder %v607, %v618
  %vm673 = vcmp.lt.s32.totalorder %v608, %v618
  %vm674 = vcmp.lt.s32.totalorder %v609, %v618
  %vm675 = vcmp.lt.s32.totalorder %v610, %v618
  %vm676 = vcmp.lt.s32.totalorder %v611, %v618
  %vm677 = vcmp.lt.s32.totalorder %v612, %v618
  %vm678 = vcmp.lt.s32.totalorder %v613, %v618
  %vm679 = vcmp.lt.s32.totalorder %v614, %v618
  %vm680 = vcmp.lt.s32.totalorder %v615, %v618
  %vm681 = vcmp.lt.s32.totalorder %v616, %v618
  %vm682 = vcmp.lt.s32.totalorder %v617, %v618
  %v683 = vsel %vm619, %v392, 0.0
  %v684 = vsel %vm620, %v394, 0.0
  %v685 = vsel %vm621, %v397, 0.0
  %v686 = vsel %vm622, %v399, 0.0
  %v687 = vsel %vm623, %v402, 0.0
  %v688 = vsel %vm624, %v404, 0.0
  %v689 = vsel %vm625, %v407, 0.0
  %v690 = vsel %vm626, %v409, 0.0
  %v691 = vsel %vm627, %v412, 0.0
  %v692 = vsel %vm628, %v414, 0.0
  %v693 = vsel %vm629, %v417, 0.0
  %v694 = vsel %vm630, %v419, 0.0
  %v695 = vsel %vm631, %v422, 0.0
  %v696 = vsel %vm632, %v424, 0.0
  %v697 = vsel %vm633, %v427, 0.0
  %v698 = vsel %vm634, %v429, 0.0
  %v699 = vsel %vm635, %v432, 0.0
  %v700 = vsel %vm636, %v434, 0.0
  %v701 = vsel %vm637, %v437, 0.0
  %v702 = vsel %vm638, %v439, 0.0
  %v703 = vsel %vm639, %v442, 0.0
  %v704 = vsel %vm640, %v444, 0.0
  %v705 = vsel %vm641, %v447, 0.0
  %v706 = vsel %vm642, %v449, 0.0
  %v707 = vsel %vm643, %v452, 0.0
  %v708 = vsel %vm644, %v454, 0.0
  %v709 = vsel %vm645, %v457, 0.0
  %v710 = vsel %vm646, %v459, 0.0
  %v711 = vsel %vm647, %v462, 0.0
  %v712 = vsel %vm648, %v464, 0.0
  %v713 = vsel %vm649, %v467, 0.0
  %v714 = vsel %vm650, %v469, 0.0
  %v715 = vsel %vm651, %v472, 0.0
  %v716 = vsel %vm652, %v474, 0.0
  %v717 = vsel %vm653, %v477, 0.0
  %v718 = vsel %vm654, %v479, 0.0
  %v719 = vsel %vm655, %v482, 0.0
  %v720 = vsel %vm656, %v484, 0.0
  %v721 = vsel %vm657, %v487, 0.0
  %v722 = vsel %vm658, %v489, 0.0
  %v723 = vsel %vm659, %v492, 0.0
  %v724 = vsel %vm660, %v494, 0.0
  %v725 = vsel %vm661, %v497, 0.0
  %v726 = vsel %vm662, %v499, 0.0
  %v727 = vsel %vm663, %v502, 0.0
  %v728 = vsel %vm664, %v504, 0.0
  %v729 = vsel %vm665, %v507, 0.0
  %v730 = vsel %vm666, %v509, 0.0
  %v731 = vsel %vm667, %v512, 0.0
  %v732 = vsel %vm668, %v514, 0.0
  %v733 = vsel %vm669, %v517, 0.0
  %v734 = vsel %vm670, %v519, 0.0
  %v735 = vsel %vm671, %v522, 0.0
  %v736 = vsel %vm672, %v524, 0.0
  %v737 = vsel %vm673, %v527, 0.0
  %v738 = vsel %vm674, %v529, 0.0
  %v739 = vsel %vm675, %v532, 0.0
  %v740 = vsel %vm676, %v534, 0.0
  %v741 = vsel %vm677, %v537, 0.0
  %v742 = vsel %vm678, %v539, 0.0
  %v743 = vsel %vm679, %v542, 0.0
  %v744 = vsel %vm680, %v544, 0.0
  %v745 = vsel %vm681, %v547, 0.0
  %v746 = vsel %vm682, %v549, 0.0
  %vm747 = vcmask 261120
  %v748 = vsel %vm747, %v683, 0.0
  %v749 = vsel %vm747, %v684, 0.0
  %v750 = vadd.f32 %v748, %v749
  %v751 = vsel %vm747, %v685, 0.0
  %v752 = vadd.f32 %v750, %v751
  %v753 = vsel %vm747, %v686, 0.0
  %v754 = vadd.f32 %v752, %v753
  %v755 = vsel %vm747, %v687, 0.0
  %v756 = vadd.f32 %v754, %v755
  %v757 = vsel %vm747, %v688, 0.0
  %v758 = vadd.f32 %v756, %v757
  %v759 = vsel %vm747, %v689, 0.0
  %v760 = vadd.f32 %v758, %v759
  %v761 = vsel %vm747, %v690, 0.0
  %v762 = vadd.f32 %v760, %v761
  %v763 = vsel %vm747, %v691, 0.0
  %v764 = vadd.f32 %v762, %v763
  %v765 = vsel %vm747, %v692, 0.0
  %v766 = vadd.f32 %v764, %v765
  %v767 = vsel %vm747, %v693, 0.0
  %v768 = vadd.f32 %v766, %v767
  %v769 = vsel %vm747, %v694, 0.0
  %v770 = vadd.f32 %v768, %v769
  %v771 = vsel %vm747, %v695, 0.0
  %v772 = vadd.f32 %v770, %v771
  %v773 = vsel %vm747, %v696, 0.0
  %v774 = vadd.f32 %v772, %v773
  %v775 = vsel %vm747, %v697, 0.0
  %v776 = vadd.f32 %v774, %v775
  %v777 = vsel %vm747, %v698, 0.0
  %v778 = vadd.f32 %v776, %v777
  %v779 = vsel %vm747, %v699, 0.0
  %v780 = vadd.f32 %v778, %v779
  %v781 = vsel %vm747, %v700, 0.0
  %v782 = vadd.f32 %v780, %v781
  %v783 = vsel %vm747, %v701, 0.0
  %v784 = vadd.f32 %v782, %v783
  %v785 = vsel %vm747, %v702, 0.0
  %v786 = vadd.f32 %v784, %v785
  %v787 = vsel %vm747, %v703, 0.0
  %v788 = vadd.f32 %v786, %v787
  %v789 = vsel %vm747, %v704, 0.0
  %v790 = vadd.f32 %v788, %v789
  %v791 = vsel %vm747, %v705, 0.0
  %v792 = vadd.f32 %v790, %v791
  %v793 = vsel %vm747, %v706, 0.0
  %v794 = vadd.f32 %v792, %v793
  %v795 = vsel %vm747, %v707, 0.0
  %v796 = vadd.f32 %v794, %v795
  %v797 = vsel %vm747, %v708, 0.0
  %v798 = vadd.f32 %v796, %v797
  %v799 = vsel %vm747, %v709, 0.0
  %v800 = vadd.f32 %v798, %v799
  %v801 = vsel %vm747, %v710, 0.0
  %v802 = vadd.f32 %v800, %v801
  %v803 = vsel %vm747, %v711, 0.0
  %v804 = vadd.f32 %v802, %v803
  %v805 = vsel %vm747, %v712, 0.0
  %v806 = vadd.f32 %v804, %v805
  %v807 = vsel %vm747, %v713, 0.0
  %v808 = vadd.f32 %v806, %v807
  %v809 = vsel %vm747, %v714, 0.0
  %v810 = vadd.f32 %v808, %v809
  %v811 = vsel %vm747, %v715, 0.0
  %v812 = vadd.f32 %v810, %v811
  %v813 = vsel %vm747, %v716, 0.0
  %v814 = vadd.f32 %v812, %v813
  %v815 = vsel %vm747, %v717, 0.0
  %v816 = vadd.f32 %v814, %v815
  %v817 = vsel %vm747, %v718, 0.0
  %v818 = vadd.f32 %v816, %v817
  %v819 = vsel %vm747, %v719, 0.0
  %v820 = vadd.f32 %v818, %v819
  %v821 = vsel %vm747, %v720, 0.0
  %v822 = vadd.f32 %v820, %v821
  %v823 = vsel %vm747, %v721, 0.0
  %v824 = vadd.f32 %v822, %v823
  %v825 = vsel %vm747, %v722, 0.0
  %v826 = vadd.f32 %v824, %v825
  %v827 = vsel %vm747, %v723, 0.0
  %v828 = vadd.f32 %v826, %v827
  %v829 = vsel %vm747, %v724, 0.0
  %v830 = vadd.f32 %v828, %v829
  %v831 = vsel %vm747, %v725, 0.0
  %v832 = vadd.f32 %v830, %v831
  %v833 = vsel %vm747, %v726, 0.0
  %v834 = vadd.f32 %v832, %v833
  %v835 = vsel %vm747, %v727, 0.0
  %v836 = vadd.f32 %v834, %v835
  %v837 = vsel %vm747, %v728, 0.0
  %v838 = vadd.f32 %v836, %v837
  %v839 = vsel %vm747, %v729, 0.0
  %v840 = vadd.f32 %v838, %v839
  %v841 = vsel %vm747, %v730, 0.0
  %v842 = vadd.f32 %v840, %v841
  %v843 = vsel %vm747, %v731, 0.0
  %v844 = vadd.f32 %v842, %v843
  %v845 = vsel %vm747, %v732, 0.0
  %v846 = vadd.f32 %v844, %v845
  %v847 = vsel %vm747, %v733, 0.0
  %v848 = vadd.f32 %v846, %v847
  %v849 = vsel %vm747, %v734, 0.0
  %v850 = vadd.f32 %v848, %v849
  %v851 = vsel %vm747, %v735, 0.0
  %v852 = vadd.f32 %v850, %v851
  %v853 = vsel %vm747, %v736, 0.0
  %v854 = vadd.f32 %v852, %v853
  %v855 = vsel %vm747, %v737, 0.0
  %v856 = vadd.f32 %v854, %v855
  %v857 = vsel %vm747, %v738, 0.0
  %v858 = vadd.f32 %v856, %v857
  %v859 = vsel %vm747, %v739, 0.0
  %v860 = vadd.f32 %v858, %v859
  %v861 = vsel %vm747, %v740, 0.0
  %v862 = vadd.f32 %v860, %v861
  %v863 = vsel %vm747, %v741, 0.0
  %v864 = vadd.f32 %v862, %v863
  %v865 = vsel %vm747, %v742, 0.0
  %v866 = vadd.f32 %v864, %v865
  %v867 = vsel %vm747, %v743, 0.0
  %v868 = vadd.f32 %v866, %v867
  %v869 = vsel %vm747, %v744, 0.0
  %v870 = vadd.f32 %v868, %v869
  %v871 = vsel %vm747, %v745, 0.0
  %v872 = vadd.f32 %v870, %v871
  %v873 = vsel %vm747, %v746, 0.0
  %v874 = vadd.f32 %v872, %v873
  %v875 = vrot.slane %v874, 4
  %v876 = vadd.f32 %v874, %v875
  %v877 = vrot.slane %v876, 2
  %v878 = vadd.f32 %v876, %v877
  %v879 = vrot.slane %v878, 1
  %v880 = vadd.f32 %v878, %v879
  %v881 = vmul.f32 %v683, %v683
  %v882 = vmul.f32 %v684, %v684
  %v883 = vmul.f32 %v685, %v685
  %v884 = vmul.f32 %v686, %v686
  %v885 = vmul.f32 %v687, %v687
  %v886 = vmul.f32 %v688, %v688
  %v887 = vmul.f32 %v689, %v689
  %v888 = vmul.f32 %v690, %v690
  %v889 = vmul.f32 %v691, %v691
  %v890 = vmul.f32 %v692, %v692
  %v891 = vmul.f32 %v693, %v693
  %v892 = vmul.f32 %v694, %v694
  %v893 = vmul.f32 %v695, %v695
  %v894 = vmul.f32 %v696, %v696
  %v895 = vmul.f32 %v697, %v697
  %v896 = vmul.f32 %v698, %v698
  %v897 = vmul.f32 %v699, %v699
  %v898 = vmul.f32 %v700, %v700
  %v899 = vmul.f32 %v701, %v701
  %v900 = vmul.f32 %v702, %v702
  %v901 = vmul.f32 %v703, %v703
  %v902 = vmul.f32 %v704, %v704
  %v903 = vmul.f32 %v705, %v705
  %v904 = vmul.f32 %v706, %v706
  %v905 = vmul.f32 %v707, %v707
  %v906 = vmul.f32 %v708, %v708
  %v907 = vmul.f32 %v709, %v709
  %v908 = vmul.f32 %v710, %v710
  %v909 = vmul.f32 %v711, %v711
  %v910 = vmul.f32 %v712, %v712
  %v911 = vmul.f32 %v713, %v713
  %v912 = vmul.f32 %v714, %v714
  %v913 = vmul.f32 %v715, %v715
  %v914 = vmul.f32 %v716, %v716
  %v915 = vmul.f32 %v717, %v717
  %v916 = vmul.f32 %v718, %v718
  %v917 = vmul.f32 %v719, %v719
  %v918 = vmul.f32 %v720, %v720
  %v919 = vmul.f32 %v721, %v721
  %v920 = vmul.f32 %v722, %v722
  %v921 = vmul.f32 %v723, %v723
  %v922 = vmul.f32 %v724, %v724
  %v923 = vmul.f32 %v725, %v725
  %v924 = vmul.f32 %v726, %v726
  %v925 = vmul.f32 %v727, %v727
  %v926 = vmul.f32 %v728, %v728
  %v927 = vmul.f32 %v729, %v729
  %v928 = vmul.f32 %v730, %v730
  %v929 = vmul.f32 %v731, %v731
  %v930 = vmul.f32 %v732, %v732
  %v931 = vmul.f32 %v733, %v733
  %v932 = vmul.f32 %v734, %v734
  %v933 = vmul.f32 %v735, %v735
  %v934 = vmul.f32 %v736, %v736
  %v935 = vmul.f32 %v737, %v737
  %v936 = vmul.f32 %v738, %v738
  %v937 = vmul.f32 %v739, %v739
  %v938 = vmul.f32 %v740, %v740
  %v939 = vmul.f32 %v741, %v741
  %v940 = vmul.f32 %v742, %v742
  %v941 = vmul.f32 %v743, %v743
  %v942 = vmul.f32 %v744, %v744
  %v943 = vmul.f32 %v745, %v745
  %v944 = vmul.f32 %v746, %v746
  %v945 = vsel %vm747, %v881, 0.0
  %v946 = vsel %vm747, %v882, 0.0
  %v947 = vadd.f32 %v945, %v946
  %v948 = vsel %vm747, %v883, 0.0
  %v949 = vadd.f32 %v947, %v948
  %v950 = vsel %vm747, %v884, 0.0
  %v951 = vadd.f32 %v949, %v950
  %v952 = vsel %vm747, %v885, 0.0
  %v953 = vadd.f32 %v951, %v952
  %v954 = vsel %vm747, %v886, 0.0
  %v955 = vadd.f32 %v953, %v954
  %v956 = vsel %vm747, %v887, 0.0
  %v957 = vadd.f32 %v955, %v956
  %v958 = vsel %vm747, %v888, 0.0
  %v959 = vadd.f32 %v957, %v958
  %v960 = vsel %vm747, %v889, 0.0
  %v961 = vadd.f32 %v959, %v960
  %v962 = vsel %vm747, %v890, 0.0
  %v963 = vadd.f32 %v961, %v962
  %v964 = vsel %vm747, %v891, 0.0
  %v965 = vadd.f32 %v963, %v964
  %v966 = vsel %vm747, %v892, 0.0
  %v967 = vadd.f32 %v965, %v966
  %v968 = vsel %vm747, %v893, 0.0
  %v969 = vadd.f32 %v967, %v968
  %v970 = vsel %vm747, %v894, 0.0
  %v971 = vadd.f32 %v969, %v970
  %v972 = vsel %vm747, %v895, 0.0
  %v973 = vadd.f32 %v971, %v972
  %v974 = vsel %vm747, %v896, 0.0
  %v975 = vadd.f32 %v973, %v974
  %v976 = vsel %vm747, %v897, 0.0
  %v977 = vadd.f32 %v975, %v976
  %v978 = vsel %vm747, %v898, 0.0
  %v979 = vadd.f32 %v977, %v978
  %v980 = vsel %vm747, %v899, 0.0
  %v981 = vadd.f32 %v979, %v980
  %v982 = vsel %vm747, %v900, 0.0
  %v983 = vadd.f32 %v981, %v982
  %v984 = vsel %vm747, %v901, 0.0
  %v985 = vadd.f32 %v983, %v984
  %v986 = vsel %vm747, %v902, 0.0
  %v987 = vadd.f32 %v985, %v986
  %v988 = vsel %vm747, %v903, 0.0
  %v989 = vadd.f32 %v987, %v988
  %v990 = vsel %vm747, %v904, 0.0
  %v991 = vadd.f32 %v989, %v990
  %v992 = vsel %vm747, %v905, 0.0
  %v993 = vadd.f32 %v991, %v992
  %v994 = vsel %vm747, %v906, 0.0
  %v995 = vadd.f32 %v993, %v994
  %v996 = vsel %vm747, %v907, 0.0
  %v997 = vadd.f32 %v995, %v996
  %v998 = vsel %vm747, %v908, 0.0
  %v999 = vadd.f32 %v997, %v998
  %v1000 = vsel %vm747, %v909, 0.0
  %v1001 = vadd.f32 %v999, %v1000
  %v1002 = vsel %vm747, %v910, 0.0
  %v1003 = vadd.f32 %v1001, %v1002
  %v1004 = vsel %vm747, %v911, 0.0
  %v1005 = vadd.f32 %v1003, %v1004
  %v1006 = vsel %vm747, %v912, 0.0
  %v1007 = vadd.f32 %v1005, %v1006
  %v1008 = vsel %vm747, %v913, 0.0
  %v1009 = vadd.f32 %v1007, %v1008
  %v1010 = vsel %vm747, %v914, 0.0
  %v1011 = vadd.f32 %v1009, %v1010
  %v1012 = vsel %vm747, %v915, 0.0
  %v1013 = vadd.f32 %v1011, %v1012
  %v1014 = vsel %vm747, %v916, 0.0
  %v1015 = vadd.f32 %v1013, %v1014
  %v1016 = vsel %vm747, %v917, 0.0
  %v1017 = vadd.f32 %v1015, %v1016
  %v1018 = vsel %vm747, %v918, 0.0
  %v1019 = vadd.f32 %v1017, %v1018
  %v1020 = vsel %vm747, %v919, 0.0
  %v1021 = vadd.f32 %v1019, %v1020
  %v1022 = vsel %vm747, %v920, 0.0
  %v1023 = vadd.f32 %v1021, %v1022
  %v1024 = vsel %vm747, %v921, 0.0
  %v1025 = vadd.f32 %v1023, %v1024
  %v1026 = vsel %vm747, %v922, 0.0
  %v1027 = vadd.f32 %v1025, %v1026
  %v1028 = vsel %vm747, %v923, 0.0
  %v1029 = vadd.f32 %v1027, %v1028
  %v1030 = vsel %vm747, %v924, 0.0
  %v1031 = vadd.f32 %v1029, %v1030
  %v1032 = vsel %vm747, %v925, 0.0
  %v1033 = vadd.f32 %v1031, %v1032
  %v1034 = vsel %vm747, %v926, 0.0
  %v1035 = vadd.f32 %v1033, %v1034
  %v1036 = vsel %vm747, %v927, 0.0
  %v1037 = vadd.f32 %v1035, %v1036
  %v1038 = vsel %vm747, %v928, 0.0
  %v1039 = vadd.f32 %v1037, %v1038
  %v1040 = vsel %vm747, %v929, 0.0
  %v1041 = vadd.f32 %v1039, %v1040
  %v1042 = vsel %vm747, %v930, 0.0
  %v1043 = vadd.f32 %v1041, %v1042
  %v1044 = vsel %vm747, %v931, 0.0
  %v1045 = vadd.f32 %v1043, %v1044
  %v1046 = vsel %vm747, %v932, 0.0
  %v1047 = vadd.f32 %v1045, %v1046
  %v1048 = vsel %vm747, %v933, 0.0
  %v1049 = vadd.f32 %v1047, %v1048
  %v1050 = vsel %vm747, %v934, 0.0
  %v1051 = vadd.f32 %v1049, %v1050
  %v1052 = vsel %vm747, %v935, 0.0
  %v1053 = vadd.f32 %v1051, %v1052
  %v1054 = vsel %vm747, %v936, 0.0
  %v1055 = vadd.f32 %v1053, %v1054
  %v1056 = vsel %vm747, %v937, 0.0
  %v1057 = vadd.f32 %v1055, %v1056
  %v1058 = vsel %vm747, %v938, 0.0
  %v1059 = vadd.f32 %v1057, %v1058
  %v1060 = vsel %vm747, %v939, 0.0
  %v1061 = vadd.f32 %v1059, %v1060
  %v1062 = vsel %vm747, %v940, 0.0
  %v1063 = vadd.f32 %v1061, %v1062
  %v1064 = vsel %vm747, %v941, 0.0
  %v1065 = vadd.f32 %v1063, %v1064
  %v1066 = vsel %vm747, %v942, 0.0
  %v1067 = vadd.f32 %v1065, %v1066
  %v1068 = vsel %vm747, %v943, 0.0
  %v1069 = vadd.f32 %v1067, %v1068
  %v1070 = vsel %vm747, %v944, 0.0
  %v1071 = vadd.f32 %v1069, %v1070
  %v1072 = vrot.slane %v1071, 4
  %v1073 = vadd.f32 %v1071, %v1072
  %v1074 = vrot.slane %v1073, 2
  %v1075 = vadd.f32 %v1073, %v1074
  %v1076 = vrot.slane %v1075, 1
  %v1077 = vadd.f32 %v1075, %v1076
  %vm1078 = vcmp.eq.s32.totalorder %v554, 0
  %v1079 = vsel %vm1078, %v880, 0.0
  %vm1080 = vcmp.eq.s32.totalorder %v554, 1
  %v1081 = vsel %vm1080, %v1077, 0.0
  %v1082 = vadd.f32 %v1079, %v1081
  %1083 = vst.msk [vmem:[%s4] sm:$0xff] %vm747, %v1082
  %1084 = vst.msk [vmem:[%s3] sm:$0xff] %vm747, %v392
  %1085 = vst.msk [vmem:[%s3 + $0x8] sm:$0xff] %vm747, %v394
  %1086 = vst.msk [vmem:[%s3 + $0x10] sm:$0xff] %vm747, %v397
  %1087 = vst.msk [vmem:[%s3 + $0x18] sm:$0xff] %vm747, %v399
  %1088 = vst.msk [vmem:[%s3 + $0x20] sm:$0xff] %vm747, %v402
  %1089 = vst.msk [vmem:[%s3 + $0x28] sm:$0xff] %vm747, %v404
  %1090 = vst.msk [vmem:[%s3 + $0x30] sm:$0xff] %vm747, %v407
  %1091 = vst.msk [vmem:[%s3 + $0x38] sm:$0xff] %vm747, %v409
  %1092 = vst.msk [vmem:[%s3 + $0x40] sm:$0xff] %vm747, %v412
  %1093 = vst.msk [vmem:[%s3 + $0x48] sm:$0xff] %vm747, %v414
  %1094 = vst.msk [vmem:[%s3 + $0x50] sm:$0xff] %vm747, %v417
  %1095 = vst.msk [vmem:[%s3 + $0x58] sm:$0xff] %vm747, %v419
  %1096 = vst.msk [vmem:[%s3 + $0x60] sm:$0xff] %vm747, %v422
  %1097 = vst.msk [vmem:[%s3 + $0x68] sm:$0xff] %vm747, %v424
  %1098 = vst.msk [vmem:[%s3 + $0x70] sm:$0xff] %vm747, %v427
  %1099 = vst.msk [vmem:[%s3 + $0x78] sm:$0xff] %vm747, %v429
  %1100 = vst.msk [vmem:[%s3 + $0x80] sm:$0xff] %vm747, %v432
  %1101 = vst.msk [vmem:[%s3 + $0x88] sm:$0xff] %vm747, %v434
  %1102 = vst.msk [vmem:[%s3 + $0x90] sm:$0xff] %vm747, %v437
  %1103 = vst.msk [vmem:[%s3 + $0x98] sm:$0xff] %vm747, %v439
  %1104 = vst.msk [vmem:[%s3 + $0xa0] sm:$0xff] %vm747, %v442
  %1105 = vst.msk [vmem:[%s3 + $0xa8] sm:$0xff] %vm747, %v444
  %1106 = vst.msk [vmem:[%s3 + $0xb0] sm:$0xff] %vm747, %v447
  %1107 = vst.msk [vmem:[%s3 + $0xb8] sm:$0xff] %vm747, %v449
  %1108 = vst.msk [vmem:[%s3 + $0xc0] sm:$0xff] %vm747, %v452
  %1109 = vst.msk [vmem:[%s3 + $0xc8] sm:$0xff] %vm747, %v454
  %1110 = vst.msk [vmem:[%s3 + $0xd0] sm:$0xff] %vm747, %v457
  %1111 = vst.msk [vmem:[%s3 + $0xd8] sm:$0xff] %vm747, %v459
  %1112 = vst.msk [vmem:[%s3 + $0xe0] sm:$0xff] %vm747, %v462
  %1113 = vst.msk [vmem:[%s3 + $0xe8] sm:$0xff] %vm747, %v464
  %1114 = vst.msk [vmem:[%s3 + $0xf0] sm:$0xff] %vm747, %v467
  %1115 = vst.msk [vmem:[%s3 + $0xf8] sm:$0xff] %vm747, %v469
  %1116 = vst.msk [vmem:[%s3 + $0x100] sm:$0xff] %vm747, %v472
  %1117 = vst.msk [vmem:[%s3 + $0x108] sm:$0xff] %vm747, %v474
  %1118 = vst.msk [vmem:[%s3 + $0x110] sm:$0xff] %vm747, %v477
  %1119 = vst.msk [vmem:[%s3 + $0x118] sm:$0xff] %vm747, %v479
  %1120 = vst.msk [vmem:[%s3 + $0x120] sm:$0xff] %vm747, %v482
  %1121 = vst.msk [vmem:[%s3 + $0x128] sm:$0xff] %vm747, %v484
  %1122 = vst.msk [vmem:[%s3 + $0x130] sm:$0xff] %vm747, %v487
  %1123 = vst.msk [vmem:[%s3 + $0x138] sm:$0xff] %vm747, %v489
  %1124 = vst.msk [vmem:[%s3 + $0x140] sm:$0xff] %vm747, %v492
  %1125 = vst.msk [vmem:[%s3 + $0x148] sm:$0xff] %vm747, %v494
  %1126 = vst.msk [vmem:[%s3 + $0x150] sm:$0xff] %vm747, %v497
  %1127 = vst.msk [vmem:[%s3 + $0x158] sm:$0xff] %vm747, %v499
  %1128 = vst.msk [vmem:[%s3 + $0x160] sm:$0xff] %vm747, %v502
  %1129 = vst.msk [vmem:[%s3 + $0x168] sm:$0xff] %vm747, %v504
  %1130 = vst.msk [vmem:[%s3 + $0x170] sm:$0xff] %vm747, %v507
  %1131 = vst.msk [vmem:[%s3 + $0x178] sm:$0xff] %vm747, %v509
  %1132 = vst.msk [vmem:[%s3 + $0x180] sm:$0xff] %vm747, %v512
  %1133 = vst.msk [vmem:[%s3 + $0x188] sm:$0xff] %vm747, %v514
  %1134 = vst.msk [vmem:[%s3 + $0x190] sm:$0xff] %vm747, %v517
  %1135 = vst.msk [vmem:[%s3 + $0x198] sm:$0xff] %vm747, %v519
  %1136 = vst.msk [vmem:[%s3 + $0x1a0] sm:$0xff] %vm747, %v522
  %1137 = vst.msk [vmem:[%s3 + $0x1a8] sm:$0xff] %vm747, %v524
  %1138 = vst.msk [vmem:[%s3 + $0x1b0] sm:$0xff] %vm747, %v527
  %1139 = vst.msk [vmem:[%s3 + $0x1b8] sm:$0xff] %vm747, %v529
  %1140 = vst.msk [vmem:[%s3 + $0x1c0] sm:$0xff] %vm747, %v532
  %1141 = vst.msk [vmem:[%s3 + $0x1c8] sm:$0xff] %vm747, %v534
  %1142 = vst.msk [vmem:[%s3 + $0x1d0] sm:$0xff] %vm747, %v537
  %1143 = vst.msk [vmem:[%s3 + $0x1d8] sm:$0xff] %vm747, %v539
  %1144 = vst.msk [vmem:[%s3 + $0x1e0] sm:$0xff] %vm747, %v542
  %1145 = vst.msk [vmem:[%s3 + $0x1e8] sm:$0xff] %vm747, %v544
  %1146 = vst.msk [vmem:[%s3 + $0x1f0] sm:$0xff] %vm747, %v547
  %1147 = vst.msk [vmem:[%s3 + $0x1f8] sm:$0xff] %vm747, %v549
  // Predicated region
  $region14: #{resnet_forward.15} parent=0 // pred_check
    _
  $region15: #{resnet_forward.15} parent=0 // pred_check_branch
    %1149 = sbr.rel (0) target = $region17
  $region16: #{resnet_forward.15} parent=0 // pred_region
    _
  $region17: #{resnet_forward.15} parent=0 // pred_fallthru
    _
  // Predicated region
  $region18: #{resnet_forward.15} parent=0 // pred_check
    _
  $region19: #{resnet_forward.15} parent=0 // pred_check_branch
    %1151 = sbr.rel (0) target = $region21
  $region20: #{resnet_forward.15} parent=0 // pred_region
    _
  $region21: #{resnet_forward.15} parent=0 // pred_fallthru
    _
  // Predicated region
  $region22: #{resnet_forward.15} parent=0 // pred_check
    _
  $region23: #{resnet_forward.15} parent=0 // pred_check_branch
    %1153 = sbr.rel (0) target = $region25
  $region24: #{resnet_forward.15} parent=0 // pred_region
    _
  $region25: #{resnet_forward.15} parent=0 // pred_fallthru
    _
  // Predicated region
  $region26: #{resnet_forward.15} parent=0 // pred_check
    _
  $region27: #{resnet_forward.15} parent=0 // pred_check_branch
    %1155 = sbr.rel (0) target = $region29
  $region28: #{resnet_forward.15} parent=0 // pred_region
    _
  $region29: #{resnet_forward.15} parent=0 // pred_fallthru
    _

// kernel: tile.83
$region0: #{tile.83}
  #allocation0 [shape = 's32[1]{0}', space=sflag, size = 0x4, scoped, tag = 'scoped memory for tile.83']
  %s0 = inlined_call_operand.vmem [shape: f32[32], index: 0, kind: input, shape index: {}]
  %s1 = inlined_call_operand.vmem [shape: f32[9,32], index: 1, kind: output, shape index: {}]
  // Predicated region
  $region2: #{tile.83} parent=0 // pred_check
    _
  $region3: #{tile.83} parent=0 // pred_check_branch
    %3 = sbr.rel (0) target = $region5
  $region4: #{tile.83} parent=0 // pred_region
    _
  $region5: #{tile.83} parent=0 // pred_fallthru
    _
  %v4 = vld [vmem:[%s0] ss:$0 sm:$0xff]
  %5 = vst [vmem:[%s1] sm:$0xff] %v4
  %s6 = scalar_lea.vmem %s1, 8
  %7 = vst [vmem:[%s6] sm:$0xff] %v4

// kernel: tile.84
$region0: #{tile.84}
  %s0 = inlined_call_operand.vmem [shape: f32[9,32], index: 0, kind: input, shape index: {}]
  %s1 = inlined_call_operand.vmem [shape: f32[1,288], index: 1, kind: output, shape index: {}]
  $region1: #{tile.84} parent=0
    #allocation0 [shape = 'u8[12288]{0}', space=vmem, size = 0x3000, scoped, tag = 'scoped mem for output reshape']
    %v2 = vld [vmem:[%s0] ss:$4 sm:$0x7]
    %vm3 = vcmask 261120
    %4 = vst.msk [vmem:[#allocation0] ss:$8 sm:$0x7] %vm3, %v2
    %s5 = scalar_lea.vmem %s0, 3
    %s6 = smov 3
    %v7 = vld [vmem:[%s5] ss:$4 sm:%s6]
    %8 = vrot.lane.b32.xlu0 %v7, 96
    %v9 = vpop.permute.xlu0 %8
    %vm10 = vcmask 1048320
    %11 = vst.msk [vmem:[#allocation0] ss:$8 sm:$0x3] %vm10, %v9
    %s12 = scalar_lea.vmem %s0, 2
    %s13 = smov 3
    %v14 = vld [vmem:[%s12] ss:$4 sm:%s13]
    %15 = vrot.lane.b32.xlu0 %v14, 64
    %v16 = vpop.permute.xlu0 %15
    %vm17 = vcmask 785920
    %18 = vst.msk [vmem:[#allocation0] ss:$8 sm:$0x3] %vm17, %v16
    %s19 = scalar_lea.vmem %s0, 1
    %s20 = smov 3
    %v21 = vld [vmem:[%s19] ss:$4 sm:%s20]
    %22 = vrot.lane.b32.xlu0 %v21, 32
    %v23 = vpop.permute.xlu0 %22
    %vm24 = vcmask 523520
    %25 = vst.msk [vmem:[#allocation0] ss:$8 sm:$0x3] %vm24, %v23
    %s27 = ssub.s32 2, 1
    %v28 = vld [vmem:[#allocation0] sm:%s27]
    %s30 = ssub.s32 2, 1
    %31 = vst [vmem:[%s1] sm:%s30] %v28
    %s32 = scalar_lea.vmem [#allocation0], 8
    %v33 = vld [vmem:[%s32] sm:%s27]
    %s35 = ssub.s32 2, 1
    %s36 = scalar_lea.vmem %s1, 1
    %37 = vst [vmem:[%s36] sm:%s35] %v33
    %s38 = scalar_lea.vmem [#allocation0], 16
    %v39 = vld [vmem:[%s38] sm:%s27]
    %s41 = ssub.s32 2, 1
    %s42 = scalar_lea.vmem %s1, 2
    %43 = vst [vmem:[%s42] sm:%s41] %v39

// kernel: tile.93
$region0: #{tile.93}
  #allocation0 [shape = 's32[1]{0}', space=sflag, size = 0x4, scoped, tag = 'scoped memory for tile.93']
  %s0 = inlined_call_operand.vmem [shape: f32[8], index: 0, kind: input, shape index: {}]
  %s1 = inlined_call_operand.vmem [shape: f32[16,8], index: 1, kind: output, shape index: {}]
  // Predicated region
  $region2: #{tile.93} parent=0 // pred_check
    _
  $region3: #{tile.93} parent=0 // pred_check_branch
    %3 = sbr.rel (0) target = $region5
  $region4: #{tile.93} parent=0 // pred_region
    _
  $region5: #{tile.93} parent=0 // pred_fallthru
    _
  %v4 = vld [vmem:[%s0] ss:$0 sm:$0xff]
  %5 = vst [vmem:[%s1] sm:$0xff] %v4
  %s6 = scalar_lea.vmem %s1, 8
  %7 = vst [vmem:[%s6] sm:$0xff] %v4

// kernel: tile.94
$region0: #{tile.94}
  %s0 = inlined_call_operand.vmem [shape: f32[16,8], index: 0, kind: input, shape index: {}]
  %s1 = inlined_call_operand.vmem [shape: f32[1,128], index: 1, kind: output, shape index: {}]
  $region1: #{tile.94} parent=0
    #allocation0 [shape = 'u8[4096]{0}', space=vmem, size = 0x1000, scoped, tag = 'scoped mem for output reshape']
    %v2 = vld [vmem:[%s0] sm:$0x1]
    %vm3 = vcmask 64512
    %4 = vst.msk [vmem:[#allocation0] sm:$0x1] %vm3, %v2
    %s5 = scalar_lea.vmem %s0, 15
    %v6 = vld [vmem:[%s5] sm:$0x1]
    %7 = vrot.lane.b32.xlu0 %v6, 120
    %v8 = vpop.permute.xlu0 %7
    %vm9 = vcmask 1048512
    %10 = vst.msk [vmem:[#allocation0] sm:$0x1] %vm9, %v8
    %s11 = scalar_lea.vmem %s0, 14
    %v12 = vld [vmem:[%s11] sm:$0x1]
    %13 = vrot.lane.b32.xlu0 %v12, 112
    %v14 = vpop.permute.xlu0 %13
    %vm15 = vcmask 982912
    %16 = vst.msk [vmem:[#allocation0] sm:$0x1] %vm15, %v14
    %s17 = scalar_lea.vmem %s0, 13
    %v18 = vld [vmem:[%s17] sm:$0x1]
    %19 = vrot.lane.b32.xlu0 %v18, 104
    %v20 = vpop.permute.xlu0 %19
    %vm21 = vcmask 917312
    %22 = vst.msk [vmem:[#allocation0] sm:$0x1] %vm21, %v20
    %s23 = scalar_lea.vmem %s0, 12
    %v24 = vld [vmem:[%s23] sm:$0x1]
    %25 = vrot.lane.b32.xlu0 %v24, 96
    %v26 = vpop.permute.xlu0 %25
    %vm27 = vcmask 851712
    %28 = vst.msk [vmem:[#allocation0] sm:$0x1] %vm27, %v26
    %s29 = scalar_lea.vmem %s0, 11
    %v30 = vld [vmem:[%s29] sm:$0x1]
    %31 = vrot.lane.b32.xlu0 %v30, 88
    %v32 = vpop.permute.xlu0 %31
    %vm33 = vcmask 786112
    %34 = vst.msk [vmem:[#allocation0] sm:$0x1] %vm33, %v32
    %s35 = scalar_lea.vmem %s0, 10
    %v36 = vld [vmem:[%s35] sm:$0x1]
    %37 = vrot.lane.b32.xlu0 %v36, 80
    %v38 = vpop.permute.xlu0 %37
    %vm39 = vcmask 720512
    %40 = vst.msk [vmem:[#allocation0] sm:$0x1] %vm39, %v38
    %s41 = scalar_lea.vmem %s0, 9
    %v42 = vld [vmem:[%s41] sm:$0x1]
    %43 = vrot.lane.b32.xlu0 %v42, 72
    %v44 = vpop.permute.xlu0 %43
    %vm45 = vcmask 654912
    %46 = vst.msk [vmem:[#allocation0] sm:$0x1] %vm45, %v44
    %s47 = scalar_lea.vmem %s0, 8
    %v48 = vld [vmem:[%s47] sm:$0x1]
    %49 = vrot.lane.b32.xlu0 %v48, 64
    %v50 = vpop.permute.xlu0 %49
    %vm51 = vcmask 589312
    %52 = vst.msk [vmem:[#allocation0] sm:$0x1] %vm51, %v50
    %s53 = scalar_lea.vmem %s0, 7
    %v54 = vld [vmem:[%s53] sm:$0x1]
    %55 = vrot.lane.b32.xlu0 %v54, 56
    %v56 = vpop.permute.xlu0 %55
    %vm57 = vcmask 523712
    %58 = vst.msk [vmem:[#allocation0] sm:$0x1] %vm57, %v56
    %s59 = scalar_lea.vmem %s0, 6
    %v60 = vld [vmem:[%s59] sm:$0x1]
    %61 = vrot.lane.b32.xlu0 %v60, 48
    %v62 = vpop.permute.xlu0 %61
    %vm63 = vcmask 458112
    %64 = vst.msk [vmem:[#allocation0] sm:$0x1] %vm63, %v62
    %s65 = scalar_lea.vmem %s0, 5
    %v66 = vld [vmem:[%s65] sm:$0x1]
    %67 = vrot.lane.b32.xlu0 %v66, 40
    %v68 = vpop.permute.xlu0 %67
    %vm69 = vcmask 392512
    %70 = vst.msk [vmem:[#allocation0] sm:$0x1] %vm69, %v68
    %s71 = scalar_lea.vmem %s0, 4
    %v72 = vld [vmem:[%s71] sm:$0x1]
    %73 = vrot.lane.b32.xlu0 %v72, 32
    %v74 = vpop.permute.xlu0 %73
    %vm75 = vcmask 326912
    %76 = vst.msk [vmem:[#allocation0] sm:$0x1] %vm75, %v74
    %s77 = scalar_lea.vmem %s0, 3
    %v78 = vld [vmem:[%s77] sm:$0x1]
    %79 = vrot.lane.b32.xlu0 %v78, 24
    %v80 = vpop.permute.xlu0 %79
    %vm81 = vcmask 261312
    %82 = vst.msk [vmem:[#allocation0] sm:$0x1] %vm81, %v80
    %s83 = scalar_lea.vmem %s0, 2
    %v84 = vld [vmem:[%s83] sm:$0x1]
    %85 = vrot.lane.b32.xlu0 %v84, 16
    %v86 = vpop.permute.xlu0 %85
    %vm87 = vcmask 195712
    %88 = vst.msk [vmem:[#allocation0] sm:$0x1] %vm87, %v86
    %s89 = scalar_lea.vmem %s0, 1
    %v90 = vld [vmem:[%s89] sm:$0x1]
    %91 = vrot.lane.b32.xlu0 %v90, 8
    %v92 = vpop.permute.xlu0 %91
    %vm93 = vcmask 130112
    %94 = vst.msk [vmem:[#allocation0] sm:$0x1] %vm93, %v92
    %s96 = ssub.s32 2, 1
    %v97 = vld [vmem:[#allocation0] sm:%s96]
    %s99 = ssub.s32 2, 1
    %100 = vst [vmem:[%s1] sm:%s99] %v97

// kernel: resnet_forward.17
$region0: #{resnet_forward.17}
  #allocation0 [shape = 'u32[]', space=smem, size = 0x4, offset = 0x4, fixed_abs, tag = 'smem constant byte address 0x4 - core index']
  #allocation1 [shape = 'u32[72,128]{1,0:T(1,128)}', space=vmem, size = 0x9000, scoped, tag = 'internal scratch']
  %s0 = inlined_call_operand.vmem [shape: f32[32,128], index: 0, kind: input, shape index: {}]
  %s1 = inlined_call_operand.vmem [shape: f32[1,128], index: 1, kind: input, shape index: {}]
  %s2 = inlined_call_operand.vmem [shape: f32[1,128], index: 2, kind: input, shape index: {}]
  %s3 = inlined_call_operand.vmem [shape: f32[32,128], index: 3, kind: input, shape index: {}]
  %s4 = inlined_call_operand.vmem [shape: f32[32,128], index: 4, kind: output, shape index: {}]
  %s5 = sld [smem:[#allocation0]]
  $region26: #{resnet_forward.17} parent=0
    _
  %s7 = ssub.s32 1, %s5
  %s8 = scalar_select 0, %s7, %s5
  // Predicated region
  $region2: #{resnet_forward.17} parent=0 // pred_check
    _
  $region3: #{resnet_forward.17} parent=0 // pred_check_branch
    %10 = sbr.rel (0) target = $region5
  $region4: #{resnet_forward.17} parent=0 // pred_region
    _
  $region5: #{resnet_forward.17} parent=0 // pred_fallthru
    _
  // Predicated region
  $region6: #{resnet_forward.17} parent=0 // pred_check
    _
  $region7: #{resnet_forward.17} parent=0 // pred_check_branch
    %12 = sbr.rel (0) target = $region9
  $region8: #{resnet_forward.17} parent=0 // pred_region
    _
  $region9: #{resnet_forward.17} parent=0 // pred_fallthru
    _
  // Predicated region
  $region10: #{resnet_forward.17} parent=0 // pred_check
    _
  $region11: #{resnet_forward.17} parent=0 // pred_check_branch
    %14 = sbr.rel (0) target = $region13
  $region12: #{resnet_forward.17} parent=0 // pred_region
    _
  $region13: #{resnet_forward.17} parent=0 // pred_fallthru
    _
  // Predicated region
  $region14: #{resnet_forward.17} parent=0 // pred_check
    _
  $region15: #{resnet_forward.17} parent=0 // pred_check_branch
    %16 = sbr.rel (0) target = $region17
  $region16: #{resnet_forward.17} parent=0 // pred_region
    _
  $region17: #{resnet_forward.17} parent=0 // pred_fallthru
    _
  %v17 = vld [vmem:[%s0] sm:$0xff]
  %v18 = vld [vmem:[%s0 + $0x8] sm:$0xff]
  %v19 = vld [vmem:[%s0 + $0x10] sm:$0xff]
  %v20 = vld [vmem:[%s0 + $0x18] sm:$0xff]
  %v21 = vld [vmem:[%s1] sm:$0x1]
  %v23 = vperm.slane %v21, 0
  %v25 = vmul.f32 %v17, %v23
  %v26 = vmul.f32 %v18, %v23
  %v27 = vmul.f32 %v19, %v23
  %v28 = vmul.f32 %v20, %v23
  %v29 = vld [vmem:[%s2] sm:$0x1]
  %v31 = vperm.slane %v29, 0
  %v33 = vadd.f32 %v25, %v31
  %v34 = vadd.f32 %v26, %v31
  %v35 = vadd.f32 %v27, %v31
  %v36 = vadd.f32 %v28, %v31
  %v37 = vmax.f32 %v33, 0.0
  %v38 = vmax.f32 %v34, 0.0
  %v39 = vmax.f32 %v35, 0.0
  %v40 = vmax.f32 %v36, 0.0
  %v41 = vld [vmem:[%s3] sm:$0xff]
  %v42 = vld [vmem:[%s3 + $0x8] sm:$0xff]
  %v43 = vld [vmem:[%s3 + $0x10] sm:$0xff]
  %v44 = vld [vmem:[%s3 + $0x18] sm:$0xff]
  %v45 = vadd.f32 %v41, %v37
  %v46 = vadd.f32 %v42, %v38
  %v47 = vadd.f32 %v43, %v39
  %v48 = vadd.f32 %v44, %v40
  %49 = vst [vmem:[%s4] sm:$0xff] %v45
  %50 = vst [vmem:[%s4 + $0x8] sm:$0xff] %v46
  %51 = vst [vmem:[%s4 + $0x10] sm:$0xff] %v47
  %52 = vst [vmem:[%s4 + $0x18] sm:$0xff] %v48
  // Predicated region
  $region18: #{resnet_forward.17} parent=0 // pred_check
    _
  $region19: #{resnet_forward.17} parent=0 // pred_check_branch
    %54 = sbr.rel (0) target = $region21
  $region20: #{resnet_forward.17} parent=0 // pred_region
    _
  $region21: #{resnet_forward.17} parent=0 // pred_fallthru
    _
  // Predicated region
  $region22: #{resnet_forward.17} parent=0 // pred_check
    _
  $region23: #{resnet_forward.17} parent=0 // pred_check_branch
    %56 = sbr.rel (0) target = $region25
  $region24: #{resnet_forward.17} parent=0 // pred_region
    _
  $region25: #{resnet_forward.17} parent=0 // pred_fallthru
    _

// kernel: resnet_forward.16
$region0: #{resnet_forward.16}
  #allocation0 [shape = 'u32[]', space=smem, size = 0x4, offset = 0x4, fixed_abs, tag = 'smem constant byte address 0x4 - core index']
  #allocation1 [shape = 'u32[72,128]{1,0:T(1,128)}', space=vmem, size = 0x9000, scoped, tag = 'internal scratch']
  %s0 = inlined_call_operand.vmem [shape: bf16[512,288], index: 0, kind: input, shape index: {}]
  %s1 = inlined_call_operand.vmem [shape: bf16[288,8], index: 1, kind: input, shape index: {}]
  %s2 = inlined_call_operand.vmem [shape: f32[1,8], index: 2, kind: input, shape index: {}]
  %s3 = inlined_call_operand.vmem [shape: f32[1,288], index: 3, kind: input, shape index: {}]
  %s4 = inlined_call_operand.vmem [shape: f32[1,288], index: 4, kind: input, shape index: {}]
  %s5 = inlined_call_operand.vmem [shape: f32[512,8], index: 5, kind: output, shape index: {0}]
  %s6 = inlined_call_operand.vmem [shape: f32[8,8], index: 6, kind: output, shape index: {1}]
  %7 = xla_tuple %s5, %s6
  %s8 = sld [smem:[#allocation0]]
  $region38: #{resnet_forward.16} parent=0
    _
  %s10 = ssub.s32 1, %s8
  %s11 = scalar_select 0, %s10, %s8
  // Predicated region
  $region2: #{resnet_forward.16} parent=0 // pred_check
    _
  $region3: #{resnet_forward.16} parent=0 // pred_check_branch
    %13 = sbr.rel (0) target = $region5
  $region4: #{resnet_forward.16} parent=0 // pred_region
    _
  $region5: #{resnet_forward.16} parent=0 // pred_fallthru
    _
  // Predicated region
  $region6: #{resnet_forward.16} parent=0 // pred_check
    _
  $region7: #{resnet_forward.16} parent=0 // pred_check_branch
    %15 = sbr.rel (0) target = $region9
  $region8: #{resnet_forward.16} parent=0 // pred_region
    _
  $region9: #{resnet_forward.16} parent=0 // pred_fallthru
    _
  // Predicated region
  $region10: #{resnet_forward.16} parent=0 // pred_check
    _
  $region11: #{resnet_forward.16} parent=0 // pred_check_branch
    %17 = sbr.rel (0) target = $region13
  $region12: #{resnet_forward.16} parent=0 // pred_region
    _
  $region13: #{resnet_forward.16} parent=0 // pred_fallthru
    _
  // Predicated region
  $region14: #{resnet_forward.16} parent=0 // pred_check
    _
  $region15: #{resnet_forward.16} parent=0 // pred_check_branch
    %19 = sbr.rel (0) target = $region17
  $region16: #{resnet_forward.16} parent=0 // pred_region
    _
  $region17: #{resnet_forward.16} parent=0 // pred_fallthru
    _
  // Predicated region
  $region18: #{resnet_forward.16} parent=0 // pred_check
    _
  $region19: #{resnet_forward.16} parent=0 // pred_check_branch
    %21 = sbr.rel (0) target = $region21
  $region20: #{resnet_forward.16} parent=0 // pred_region
    _
  $region21: #{resnet_forward.16} parent=0 // pred_fallthru
    _
  %v23 = vld [vmem:[%s0] sm:$0xff]
  %v24 = vld [vmem:[%s0 + $0x8] sm:$0xf]
  %v25 = vld [vmem:[%s0 + $0xc] sm:$0xff]
  %v26 = vld [vmem:[%s0 + $0x14] sm:$0xf]
  %v27 = vld [vmem:[%s0 + $0x18] sm:$0xff]
  %v28 = vld [vmem:[%s0 + $0x20] sm:$0xf]
  %v29 = vld [vmem:[%s0 + $0x24] sm:$0xff]
  %v30 = vld [vmem:[%s0 + $0x2c] sm:$0xf]
  %v31 = vld [vmem:[%s0 + $0x30] sm:$0xff]
  %v32 = vld [vmem:[%s0 + $0x38] sm:$0xf]
  %v33 = vld [vmem:[%s0 + $0x3c] sm:$0xff]
  %v34 = vld [vmem:[%s0 + $0x44] sm:$0xf]
  %v35 = vld [vmem:[%s0 + $0x48] sm:$0xff]
  %v36 = vld [vmem:[%s0 + $0x50] sm:$0xf]
  %v37 = vld [vmem:[%s0 + $0x54] sm:$0xff]
  %v38 = vld [vmem:[%s0 + $0x5c] sm:$0xf]
  %v39 = vld [vmem:[%s0 + $0x60] sm:$0xff]
  %v40 = vld [vmem:[%s0 + $0x68] sm:$0xf]
  %v41 = vld [vmem:[%s0 + $0x6c] sm:$0xff]
  %v42 = vld [vmem:[%s0 + $0x74] sm:$0xf]
  %v43 = vld [vmem:[%s0 + $0x78] sm:$0xff]
  %v44 = vld [vmem:[%s0 + $0x80] sm:$0xf]
  %v45 = vld [vmem:[%s0 + $0x84] sm:$0xff]
  %v46 = vld [vmem:[%s0 + $0x8c] sm:$0xf]
  %v47 = vld [vmem:[%s0 + $0x90] sm:$0xff]
  %v48 = vld [vmem:[%s0 + $0x98] sm:$0xf]
  %v49 = vld [vmem:[%s0 + $0x9c] sm:$0xff]
  %v50 = vld [vmem:[%s0 + $0xa4] sm:$0xf]
  %v51 = vld [vmem:[%s0 + $0xa8] sm:$0xff]
  %v52 = vld [vmem:[%s0 + $0xb0] sm:$0xf]
  %v53 = vld [vmem:[%s0 + $0xb4] sm:$0xff]
  %v54 = vld [vmem:[%s0 + $0xbc] sm:$0xf]
  %v55 = vld [vmem:[%s0 + $0xc0] sm:$0xff]
  %v56 = vld [vmem:[%s0 + $0xc8] sm:$0xf]
  %v57 = vld [vmem:[%s0 + $0xcc] sm:$0xff]
  %v58 = vld [vmem:[%s0 + $0xd4] sm:$0xf]
  %v59 = vld [vmem:[%s0 + $0xd8] sm:$0xff]
  %v60 = vld [vmem:[%s0 + $0xe0] sm:$0xf]
  %v61 = vld [vmem:[%s0 + $0xe4] sm:$0xff]
  %v62 = vld [vmem:[%s0 + $0xec] sm:$0xf]
  %v63 = vld [vmem:[%s0 + $0xf0] sm:$0xff]
  %v64 = vld [vmem:[%s0 + $0xf8] sm:$0xf]
  %v65 = vld [vmem:[%s0 + $0xfc] sm:$0xff]
  %v66 = vld [vmem:[%s0 + $0x104] sm:$0xf]
  %v67 = vld [vmem:[%s0 + $0x108] sm:$0xff]
  %v68 = vld [vmem:[%s0 + $0x110] sm:$0xf]
  %v69 = vld [vmem:[%s0 + $0x114] sm:$0xff]
  %v70 = vld [vmem:[%s0 + $0x11c] sm:$0xf]
  %v71 = vld [vmem:[%s0 + $0x120] sm:$0xff]
  %v72 = vld [vmem:[%s0 + $0x128] sm:$0xf]
  %v73 = vld [vmem:[%s0 + $0x12c] sm:$0xff]
  %v74 = vld [vmem:[%s0 + $0x134] sm:$0xf]
  %v75 = vld [vmem:[%s0 + $0x138] sm:$0xff]
  %v76 = vld [vmem:[%s0 + $0x140] sm:$0xf]
  %v77 = vld [vmem:[%s0 + $0x144] sm:$0xff]
  %v78 = vld [vmem:[%s0 + $0x14c] sm:$0xf]
  %v79 = vld [vmem:[%s0 + $0x150] sm:$0xff]
  %v80 = vld [vmem:[%s0 + $0x158] sm:$0xf]
  %v81 = vld [vmem:[%s0 + $0x15c] sm:$0xff]
  %v82 = vld [vmem:[%s0 + $0x164] sm:$0xf]
  %v83 = vld [vmem:[%s0 + $0x168] sm:$0xff]
  %v84 = vld [vmem:[%s0 + $0x170] sm:$0xf]
  %v85 = vld [vmem:[%s0 + $0x174] sm:$0xff]
  %v86 = vld [vmem:[%s0 + $0x17c] sm:$0xf]
  %v87 = vld [vmem:[%s0 + $0x180] sm:$0xff]
  %v88 = vld [vmem:[%s0 + $0x188] sm:$0xf]
  %v89 = vld [vmem:[%s0 + $0x18c] sm:$0xff]
  %v90 = vld [vmem:[%s0 + $0x194] sm:$0xf]
  %v91 = vld [vmem:[%s0 + $0x198] sm:$0xff]
  %v92 = vld [vmem:[%s0 + $0x1a0] sm:$0xf]
  %v93 = vld [vmem:[%s0 + $0x1a4] sm:$0xff]
  %v94 = vld [vmem:[%s0 + $0x1ac] sm:$0xf]
  %v95 = vld [vmem:[%s0 + $0x1b0] sm:$0xff]
  %v96 = vld [vmem:[%s0 + $0x1b8] sm:$0xf]
  %v97 = vld [vmem:[%s0 + $0x1bc] sm:$0xff]
  %v98 = vld [vmem:[%s0 + $0x1c4] sm:$0xf]
  %v99 = vld [vmem:[%s0 + $0x1c8] sm:$0xff]
  %v100 = vld [vmem:[%s0 + $0x1d0] sm:$0xf]
  %v101 = vld [vmem:[%s0 + $0x1d4] sm:$0xff]
  %v102 = vld [vmem:[%s0 + $0x1dc] sm:$0xf]
  %v103 = vld [vmem:[%s0 + $0x1e0] sm:$0xff]
  %v104 = vld [vmem:[%s0 + $0x1e8] sm:$0xf]
  %v105 = vld [vmem:[%s0 + $0x1ec] sm:$0xff]
  %v106 = vld [vmem:[%s0 + $0x1f4] sm:$0xf]
  %v107 = vld [vmem:[%s0 + $0x1f8] sm:$0xff]
  %v108 = vld [vmem:[%s0 + $0x200] sm:$0xf]
  %v109 = vld [vmem:[%s0 + $0x204] sm:$0xff]
  %v110 = vld [vmem:[%s0 + $0x20c] sm:$0xf]
  %v111 = vld [vmem:[%s0 + $0x210] sm:$0xff]
  %v112 = vld [vmem:[%s0 + $0x218] sm:$0xf]
  %v113 = vld [vmem:[%s0 + $0x21c] sm:$0xff]
  %v114 = vld [vmem:[%s0 + $0x224] sm:$0xf]
  %v115 = vld [vmem:[%s0 + $0x228] sm:$0xff]
  %v116 = vld [vmem:[%s0 + $0x230] sm:$0xf]
  %v117 = vld [vmem:[%s0 + $0x234] sm:$0xff]
  %v118 = vld [vmem:[%s0 + $0x23c] sm:$0xf]
  %v119 = vld [vmem:[%s0 + $0x240] sm:$0xff]
  %v120 = vld [vmem:[%s0 + $0x248] sm:$0xf]
  %v121 = vld [vmem:[%s0 + $0x24c] sm:$0xff]
  %v122 = vld [vmem:[%s0 + $0x254] sm:$0xf]
  %v123 = vld [vmem:[%s0 + $0x258] sm:$0xff]
  %v124 = vld [vmem:[%s0 + $0x260] sm:$0xf]
  %v125 = vld [vmem:[%s0 + $0x264] sm:$0xff]
  %v126 = vld [vmem:[%s0 + $0x26c] sm:$0xf]
  %v127 = vld [vmem:[%s0 + $0x270] sm:$0xff]
  %v128 = vld [vmem:[%s0 + $0x278] sm:$0xf]
  %v129 = vld [vmem:[%s0 + $0x27c] sm:$0xff]
  %v130 = vld [vmem:[%s0 + $0x284] sm:$0xf]
  %v131 = vld [vmem:[%s0 + $0x288] sm:$0xff]
  %v132 = vld [vmem:[%s0 + $0x290] sm:$0xf]
  %v133 = vld [vmem:[%s0 + $0x294] sm:$0xff]
  %v134 = vld [vmem:[%s0 + $0x29c] sm:$0xf]
  %v135 = vld [vmem:[%s0 + $0x2a0] sm:$0xff]
  %v136 = vld [vmem:[%s0 + $0x2a8] sm:$0xf]
  %v137 = vld [vmem:[%s0 + $0x2ac] sm:$0xff]
  %v138 = vld [vmem:[%s0 + $0x2b4] sm:$0xf]
  %v139 = vld [vmem:[%s0 + $0x2b8] sm:$0xff]
  %v140 = vld [vmem:[%s0 + $0x2c0] sm:$0xf]
  %v141 = vld [vmem:[%s0 + $0x2c4] sm:$0xff]
  %v142 = vld [vmem:[%s0 + $0x2cc] sm:$0xf]
  %v143 = vld [vmem:[%s0 + $0x2d0] sm:$0xff]
  %v144 = vld [vmem:[%s0 + $0x2d8] sm:$0xf]
  %v145 = vld [vmem:[%s0 + $0x2dc] sm:$0xff]
  %v146 = vld [vmem:[%s0 + $0x2e4] sm:$0xf]
  %v147 = vld [vmem:[%s0 + $0x2e8] sm:$0xff]
  %v148 = vld [vmem:[%s0 + $0x2f0] sm:$0xf]
  %v149 = vld [vmem:[%s0 + $0x2f4] sm:$0xff]
  %v150 = vld [vmem:[%s0 + $0x2fc] sm:$0xf]
  %v151 = vunpack.c.l.bf16 %v23
  %v152 = vunpack.c.h.bf16 %v23
  %v153 = vunpack.c.l.bf16 %v24
  %v154 = vunpack.c.l.bf16 %v25
  %v155 = vunpack.c.h.bf16 %v25
  %v156 = vunpack.c.l.bf16 %v26
  %v157 = vunpack.c.l.bf16 %v27
  %v158 = vunpack.c.h.bf16 %v27
  %v159 = vunpack.c.l.bf16 %v28
  %v160 = vunpack.c.l.bf16 %v29
  %v161 = vunpack.c.h.bf16 %v29
  %v162 = vunpack.c.l.bf16 %v30
  %v163 = vunpack.c.l.bf16 %v31
  %v164 = vunpack.c.h.bf16 %v31
  %v165 = vunpack.c.l.bf16 %v32
  %v166 = vunpack.c.l.bf16 %v33
  %v167 = vunpack.c.h.bf16 %v33
  %v168 = vunpack.c.l.bf16 %v34
  %v169 = vunpack.c.l.bf16 %v35
  %v170 = vunpack.c.h.bf16 %v35
  %v171 = vunpack.c.l.bf16 %v36
  %v172 = vunpack.c.l.bf16 %v37
  %v173 = vunpack.c.h.bf16 %v37
  %v174 = vunpack.c.l.bf16 %v38
  %v175 = vunpack.c.l.bf16 %v39
  %v176 = vunpack.c.h.bf16 %v39
  %v177 = vunpack.c.l.bf16 %v40
  %v178 = vunpack.c.l.bf16 %v41
  %v179 = vunpack.c.h.bf16 %v41
  %v180 = vunpack.c.l.bf16 %v42
  %v181 = vunpack.c.l.bf16 %v43
  %v182 = vunpack.c.h.bf16 %v43
  %v183 = vunpack.c.l.bf16 %v44
  %v184 = vunpack.c.l.bf16 %v45
  %v185 = vunpack.c.h.bf16 %v45
  %v186 = vunpack.c.l.bf16 %v46
  %v187 = vunpack.c.l.bf16 %v47
  %v188 = vunpack.c.h.bf16 %v47
  %v189 = vunpack.c.l.bf16 %v48
  %v190 = vunpack.c.l.bf16 %v49
  %v191 = vunpack.c.h.bf16 %v49
  %v192 = vunpack.c.l.bf16 %v50
  %v193 = vunpack.c.l.bf16 %v51
  %v194 = vunpack.c.h.bf16 %v51
  %v195 = vunpack.c.l.bf16 %v52
  %v196 = vunpack.c.l.bf16 %v53
  %v197 = vunpack.c.h.bf16 %v53
  %v198 = vunpack.c.l.bf16 %v54
  %v199 = vunpack.c.l.bf16 %v55
  %v200 = vunpack.c.h.bf16 %v55
  %v201 = vunpack.c.l.bf16 %v56
  %v202 = vunpack.c.l.bf16 %v57
  %v203 = vunpack.c.h.bf16 %v57
  %v204 = vunpack.c.l.bf16 %v58
  %v205 = vunpack.c.l.bf16 %v59
  %v206 = vunpack.c.h.bf16 %v59
  %v207 = vunpack.c.l.bf16 %v60
  %v208 = vunpack.c.l.bf16 %v61
  %v209 = vunpack.c.h.bf16 %v61
  %v210 = vunpack.c.l.bf16 %v62
  %v211 = vunpack.c.l.bf16 %v63
  %v212 = vunpack.c.h.bf16 %v63
  %v213 = vunpack.c.l.bf16 %v64
  %v214 = vunpack.c.l.bf16 %v65
  %v215 = vunpack.c.h.bf16 %v65
  %v216 = vunpack.c.l.bf16 %v66
  %v217 = vunpack.c.l.bf16 %v67
  %v218 = vunpack.c.h.bf16 %v67
  %v219 = vunpack.c.l.bf16 %v68
  %v220 = vunpack.c.l.bf16 %v69
  %v221 = vunpack.c.h.bf16 %v69
  %v222 = vunpack.c.l.bf16 %v70
  %v223 = vunpack.c.l.bf16 %v71
  %v224 = vunpack.c.h.bf16 %v71
  %v225 = vunpack.c.l.bf16 %v72
  %v226 = vunpack.c.l.bf16 %v73
  %v227 = vunpack.c.h.bf16 %v73
  %v228 = vunpack.c.l.bf16 %v74
  %v229 = vunpack.c.l.bf16 %v75
  %v230 = vunpack.c.h.bf16 %v75
  %v231 = vunpack.c.l.bf16 %v76
  %v232 = vunpack.c.l.bf16 %v77
  %v233 = vunpack.c.h.bf16 %v77
  %v234 = vunpack.c.l.bf16 %v78
  %v235 = vunpack.c.l.bf16 %v79
  %v236 = vunpack.c.h.bf16 %v79
  %v237 = vunpack.c.l.bf16 %v80
  %v238 = vunpack.c.l.bf16 %v81
  %v239 = vunpack.c.h.bf16 %v81
  %v240 = vunpack.c.l.bf16 %v82
  %v241 = vunpack.c.l.bf16 %v83
  %v242 = vunpack.c.h.bf16 %v83
  %v243 = vunpack.c.l.bf16 %v84
  %v244 = vunpack.c.l.bf16 %v85
  %v245 = vunpack.c.h.bf16 %v85
  %v246 = vunpack.c.l.bf16 %v86
  %v247 = vunpack.c.l.bf16 %v87
  %v248 = vunpack.c.h.bf16 %v87
  %v249 = vunpack.c.l.bf16 %v88
  %v250 = vunpack.c.l.bf16 %v89
  %v251 = vunpack.c.h.bf16 %v89
  %v252 = vunpack.c.l.bf16 %v90
  %v253 = vunpack.c.l.bf16 %v91
  %v254 = vunpack.c.h.bf16 %v91
  %v255 = vunpack.c.l.bf16 %v92
  %v256 = vunpack.c.l.bf16 %v93
  %v257 = vunpack.c.h.bf16 %v93
  %v258 = vunpack.c.l.bf16 %v94
  %v259 = vunpack.c.l.bf16 %v95
  %v260 = vunpack.c.h.bf16 %v95
  %v261 = vunpack.c.l.bf16 %v96
  %v262 = vunpack.c.l.bf16 %v97
  %v263 = vunpack.c.h.bf16 %v97
  %v264 = vunpack.c.l.bf16 %v98
  %v265 = vunpack.c.l.bf16 %v99
  %v266 = vunpack.c.h.bf16 %v99
  %v267 = vunpack.c.l.bf16 %v100
  %v268 = vunpack.c.l.bf16 %v101
  %v269 = vunpack.c.h.bf16 %v101
  %v270 = vunpack.c.l.bf16 %v102
  %v271 = vunpack.c.l.bf16 %v103
  %v272 = vunpack.c.h.bf16 %v103
  %v273 = vunpack.c.l.bf16 %v104
  %v274 = vunpack.c.l.bf16 %v105
  %v275 = vunpack.c.h.bf16 %v105
  %v276 = vunpack.c.l.bf16 %v106
  %v277 = vunpack.c.l.bf16 %v107
  %v278 = vunpack.c.h.bf16 %v107
  %v279 = vunpack.c.l.bf16 %v108
  %v280 = vunpack.c.l.bf16 %v109
  %v281 = vunpack.c.h.bf16 %v109
  %v282 = vunpack.c.l.bf16 %v110
  %v283 = vunpack.c.l.bf16 %v111
  %v284 = vunpack.c.h.bf16 %v111
  %v285 = vunpack.c.l.bf16 %v112
  %v286 = vunpack.c.l.bf16 %v113
  %v287 = vunpack.c.h.bf16 %v113
  %v288 = vunpack.c.l.bf16 %v114
  %v289 = vunpack.c.l.bf16 %v115
  %v290 = vunpack.c.h.bf16 %v115
  %v291 = vunpack.c.l.bf16 %v116
  %v292 = vunpack.c.l.bf16 %v117
  %v293 = vunpack.c.h.bf16 %v117
  %v294 = vunpack.c.l.bf16 %v118
  %v295 = vunpack.c.l.bf16 %v119
  %v296 = vunpack.c.h.bf16 %v119
  %v297 = vunpack.c.l.bf16 %v120
  %v298 = vunpack.c.l.bf16 %v121
  %v299 = vunpack.c.h.bf16 %v121
  %v300 = vunpack.c.l.bf16 %v122
  %v301 = vunpack.c.l.bf16 %v123
  %v302 = vunpack.c.h.bf16 %v123
  %v303 = vunpack.c.l.bf16 %v124
  %v304 = vunpack.c.l.bf16 %v125
  %v305 = vunpack.c.h.bf16 %v125
  %v306 = vunpack.c.l.bf16 %v126
  %v307 = vunpack.c.l.bf16 %v127
  %v308 = vunpack.c.h.bf16 %v127
  %v309 = vunpack.c.l.bf16 %v128
  %v310 = vunpack.c.l.bf16 %v129
  %v311 = vunpack.c.h.bf16 %v129
  %v312 = vunpack.c.l.bf16 %v130
  %v313 = vunpack.c.l.bf16 %v131
  %v314 = vunpack.c.h.bf16 %v131
  %v315 = vunpack.c.l.bf16 %v132
  %v316 = vunpack.c.l.bf16 %v133
  %v317 = vunpack.c.h.bf16 %v133
  %v318 = vunpack.c.l.bf16 %v134
  %v319 = vunpack.c.l.bf16 %v135
  %v320 = vunpack.c.h.bf16 %v135
  %v321 = vunpack.c.l.bf16 %v136
  %v322 = vunpack.c.l.bf16 %v137
  %v323 = vunpack.c.h.bf16 %v137
  %v324 = vunpack.c.l.bf16 %v138
  %v325 = vunpack.c.l.bf16 %v139
  %v326 = vunpack.c.h.bf16 %v139
  %v327 = vunpack.c.l.bf16 %v140
  %v328 = vunpack.c.l.bf16 %v141
  %v329 = vunpack.c.h.bf16 %v141
  %v330 = vunpack.c.l.bf16 %v142
  %v331 = vunpack.c.l.bf16 %v143
  %v332 = vunpack.c.h.bf16 %v143
  %v333 = vunpack.c.l.bf16 %v144
  %v334 = vunpack.c.l.bf16 %v145
  %v335 = vunpack.c.h.bf16 %v145
  %v336 = vunpack.c.l.bf16 %v146
  %v337 = vunpack.c.l.bf16 %v147
  %v338 = vunpack.c.h.bf16 %v147
  %v339 = vunpack.c.l.bf16 %v148
  %v340 = vunpack.c.l.bf16 %v149
  %v341 = vunpack.c.h.bf16 %v149
  %v342 = vunpack.c.l.bf16 %v150
  %v343 = vld [vmem:[%s3] sm:$0x7]
  %v345 = vperm.slane %v343, 0
  %v346 = vperm.slane %v343, 1
  %v347 = vperm.slane %v343, 2
  %v351 = vmul.f32 %v151, %v345
  %v352 = vmul.f32 %v152, %v346
  %v353 = vmul.f32 %v153, %v347
  %v354 = vmul.f32 %v154, %v345
  %v355 = vmul.f32 %v155, %v346
  %v356 = vmul.f32 %v156, %v347
  %v357 = vmul.f32 %v157, %v345
  %v358 = vmul.f32 %v158, %v346
  %v359 = vmul.f32 %v159, %v347
  %v360 = vmul.f32 %v160, %v345
  %v361 = vmul.f32 %v161, %v346
  %v362 = vmul.f32 %v162, %v347
  %v363 = vmul.f32 %v163, %v345
  %v364 = vmul.f32 %v164, %v346
  %v365 = vmul.f32 %v165, %v347
  %v366 = vmul.f32 %v166, %v345
  %v367 = vmul.f32 %v167, %v346
  %v368 = vmul.f32 %v168, %v347
  %v369 = vmul.f32 %v169, %v345
  %v370 = vmul.f32 %v170, %v346
  %v371 = vmul.f32 %v171, %v347
  %v372 = vmul.f32 %v172, %v345
  %v373 = vmul.f32 %v173, %v346
  %v374 = vmul.f32 %v174, %v347
  %v375 = vmul.f32 %v175, %v345
  %v376 = vmul.f32 %v176, %v346
  %v377 = vmul.f32 %v177, %v347
  %v378 = vmul.f32 %v178, %v345
  %v379 = vmul.f32 %v179, %v346
  %v380 = vmul.f32 %v180, %v347
  %v381 = vmul.f32 %v181, %v345
  %v382 = vmul.f32 %v182, %v346
  %v383 = vmul.f32 %v183, %v347
  %v384 = vmul.f32 %v184, %v345
  %v385 = vmul.f32 %v185, %v346
  %v386 = vmul.f32 %v186, %v347
  %v387 = vmul.f32 %v187, %v345
  %v388 = vmul.f32 %v188, %v346
  %v389 = vmul.f32 %v189, %v347
  %v390 = vmul.f32 %v190, %v345
  %v391 = vmul.f32 %v191, %v346
  %v392 = vmul.f32 %v192, %v347
  %v393 = vmul.f32 %v193, %v345
  %v394 = vmul.f32 %v194, %v346
  %v395 = vmul.f32 %v195, %v347
  %v396 = vmul.f32 %v196, %v345
  %v397 = vmul.f32 %v197, %v346
  %v398 = vmul.f32 %v198, %v347
  %v399 = vmul.f32 %v199, %v345
  %v400 = vmul.f32 %v200, %v346
  %v401 = vmul.f32 %v201, %v347
  %v402 = vmul.f32 %v202, %v345
  %v403 = vmul.f32 %v203, %v346
  %v404 = vmul.f32 %v204, %v347
  %v405 = vmul.f32 %v205, %v345
  %v406 = vmul.f32 %v206, %v346
  %v407 = vmul.f32 %v207, %v347
  %v408 = vmul.f32 %v208, %v345
  %v409 = vmul.f32 %v209, %v346
  %v410 = vmul.f32 %v210, %v347
  %v411 = vmul.f32 %v211, %v345
  %v412 = vmul.f32 %v212, %v346
  %v413 = vmul.f32 %v213, %v347
  %v414 = vmul.f32 %v214, %v345
  %v415 = vmul.f32 %v215, %v346
  %v416 = vmul.f32 %v216, %v347
  %v417 = vmul.f32 %v217, %v345
  %v418 = vmul.f32 %v218, %v346
  %v419 = vmul.f32 %v219, %v347
  %v420 = vmul.f32 %v220, %v345
  %v421 = vmul.f32 %v221, %v346
  %v422 = vmul.f32 %v222, %v347
  %v423 = vmul.f32 %v223, %v345
  %v424 = vmul.f32 %v224, %v346
  %v425 = vmul.f32 %v225, %v347
  %v426 = vmul.f32 %v226, %v345
  %v427 = vmul.f32 %v227, %v346
  %v428 = vmul.f32 %v228, %v347
  %v429 = vmul.f32 %v229, %v345
  %v430 = vmul.f32 %v230, %v346
  %v431 = vmul.f32 %v231, %v347
  %v432 = vmul.f32 %v232, %v345
  %v433 = vmul.f32 %v233, %v346
  %v434 = vmul.f32 %v234, %v347
  %v435 = vmul.f32 %v235, %v345
  %v436 = vmul.f32 %v236, %v346
  %v437 = vmul.f32 %v237, %v347
  %v438 = vmul.f32 %v238, %v345
  %v439 = vmul.f32 %v239, %v346
  %v440 = vmul.f32 %v240, %v347
  %v441 = vmul.f32 %v241, %v345
  %v442 = vmul.f32 %v242, %v346
  %v443 = vmul.f32 %v243, %v347
  %v444 = vmul.f32 %v244, %v345
  %v445 = vmul.f32 %v245, %v346
  %v446 = vmul.f32 %v246, %v347
  %v447 = vmul.f32 %v247, %v345
  %v448 = vmul.f32 %v248, %v346
  %v449 = vmul.f32 %v249, %v347
  %v450 = vmul.f32 %v250, %v345
  %v451 = vmul.f32 %v251, %v346
  %v452 = vmul.f32 %v252, %v347
  %v453 = vmul.f32 %v253, %v345
  %v454 = vmul.f32 %v254, %v346
  %v455 = vmul.f32 %v255, %v347
  %v456 = vmul.f32 %v256, %v345
  %v457 = vmul.f32 %v257, %v346
  %v458 = vmul.f32 %v258, %v347
  %v459 = vmul.f32 %v259, %v345
  %v460 = vmul.f32 %v260, %v346
  %v461 = vmul.f32 %v261, %v347
  %v462 = vmul.f32 %v262, %v345
  %v463 = vmul.f32 %v263, %v346
  %v464 = vmul.f32 %v264, %v347
  %v465 = vmul.f32 %v265, %v345
  %v466 = vmul.f32 %v266, %v346
  %v467 = vmul.f32 %v267, %v347
  %v468 = vmul.f32 %v268, %v345
  %v469 = vmul.f32 %v269, %v346
  %v470 = vmul.f32 %v270, %v347
  %v471 = vmul.f32 %v271, %v345
  %v472 = vmul.f32 %v272, %v346
  %v473 = vmul.f32 %v273, %v347
  %v474 = vmul.f32 %v274, %v345
  %v475 = vmul.f32 %v275, %v346
  %v476 = vmul.f32 %v276, %v347
  %v477 = vmul.f32 %v277, %v345
  %v478 = vmul.f32 %v278, %v346
  %v479 = vmul.f32 %v279, %v347
  %v480 = vmul.f32 %v280, %v345
  %v481 = vmul.f32 %v281, %v346
  %v482 = vmul.f32 %v282, %v347
  %v483 = vmul.f32 %v283, %v345
  %v484 = vmul.f32 %v284, %v346
  %v485 = vmul.f32 %v285, %v347
  %v486 = vmul.f32 %v286, %v345
  %v487 = vmul.f32 %v287, %v346
  %v488 = vmul.f32 %v288, %v347
  %v489 = vmul.f32 %v289, %v345
  %v490 = vmul.f32 %v290, %v346
  %v491 = vmul.f32 %v291, %v347
  %v492 = vmul.f32 %v292, %v345
  %v493 = vmul.f32 %v293, %v346
  %v494 = vmul.f32 %v294, %v347
  %v495 = vmul.f32 %v295, %v345
  %v496 = vmul.f32 %v296, %v346
  %v497 = vmul.f32 %v297, %v347
  %v498 = vmul.f32 %v298, %v345
  %v499 = vmul.f32 %v299, %v346
  %v500 = vmul.f32 %v300, %v347
  %v501 = vmul.f32 %v301, %v345
  %v502 = vmul.f32 %v302, %v346
  %v503 = vmul.f32 %v303, %v347
  %v504 = vmul.f32 %v304, %v345
  %v505 = vmul.f32 %v305, %v346
  %v506 = vmul.f32 %v306, %v347
  %v507 = vmul.f32 %v307, %v345
  %v508 = vmul.f32 %v308, %v346
  %v509 = vmul.f32 %v309, %v347
  %v510 = vmul.f32 %v310, %v345
  %v511 = vmul.f32 %v311, %v346
  %v512 = vmul.f32 %v312, %v347
  %v513 = vmul.f32 %v313, %v345
  %v514 = vmul.f32 %v314, %v346
  %v515 = vmul.f32 %v315, %v347
  %v516 = vmul.f32 %v316, %v345
  %v517 = vmul.f32 %v317, %v346
  %v518 = vmul.f32 %v318, %v347
  %v519 = vmul.f32 %v319, %v345
  %v520 = vmul.f32 %v320, %v346
  %v521 = vmul.f32 %v321, %v347
  %v522 = vmul.f32 %v322, %v345
  %v523 = vmul.f32 %v323, %v346
  %v524 = vmul.f32 %v324, %v347
  %v525 = vmul.f32 %v325, %v345
  %v526 = vmul.f32 %v326, %v346
  %v527 = vmul.f32 %v327, %v347
  %v528 = vmul.f32 %v328, %v345
  %v529 = vmul.f32 %v329, %v346
  %v530 = vmul.f32 %v330, %v347
  %v531 = vmul.f32 %v331, %v345
  %v532 = vmul.f32 %v332, %v346
  %v533 = vmul.f32 %v333, %v347
  %v534 = vmul.f32 %v334, %v345
  %v535 = vmul.f32 %v335, %v346
  %v536 = vmul.f32 %v336, %v347
  %v537 = vmul.f32 %v337, %v345
  %v538 = vmul.f32 %v338, %v346
  %v539 = vmul.f32 %v339, %v347
  %v540 = vmul.f32 %v340, %v345
  %v541 = vmul.f32 %v341, %v346
  %v542 = vmul.f32 %v342, %v347
  %v543 = vld [vmem:[%s4] sm:$0x7]
  %v545 = vperm.slane %v543, 0
  %v546 = vperm.slane %v543, 1
  %v547 = vperm.slane %v543, 2
  %v551 = vadd.f32 %v351, %v545
  %v552 = vadd.f32 %v352, %v546
  %v553 = vadd.f32 %v353, %v547
  %v554 = vadd.f32 %v354, %v545
  %v555 = vadd.f32 %v355, %v546
  %v556 = vadd.f32 %v356, %v547
  %v557 = vadd.f32 %v357, %v545
  %v558 = vadd.f32 %v358, %v546
  %v559 = vadd.f32 %v359, %v547
  %v560 = vadd.f32 %v360, %v545
  %v561 = vadd.f32 %v361, %v546
  %v562 = vadd.f32 %v362, %v547
  %v563 = vadd.f32 %v363, %v545
  %v564 = vadd.f32 %v364, %v546
  %v565 = vadd.f32 %v365, %v547
  %v566 = vadd.f32 %v366, %v545
  %v567 = vadd.f32 %v367, %v546
  %v568 = vadd.f32 %v368, %v547
  %v569 = vadd.f32 %v369, %v545
  %v570 = vadd.f32 %v370, %v546
  %v571 = vadd.f32 %v371, %v547
  %v572 = vadd.f32 %v372, %v545
  %v573 = vadd.f32 %v373, %v546
  %v574 = vadd.f32 %v374, %v547
  %v575 = vadd.f32 %v375, %v545
  %v576 = vadd.f32 %v376, %v546
  %v577 = vadd.f32 %v377, %v547
  %v578 = vadd.f32 %v378, %v545
  %v579 = vadd.f32 %v379, %v546
  %v580 = vadd.f32 %v380, %v547
  %v581 = vadd.f32 %v381, %v545
  %v582 = vadd.f32 %v382, %v546
  %v583 = vadd.f32 %v383, %v547
  %v584 = vadd.f32 %v384, %v545
  %v585 = vadd.f32 %v385, %v546
  %v586 = vadd.f32 %v386, %v547
  %v587 = vadd.f32 %v387, %v545
  %v588 = vadd.f32 %v388, %v546
  %v589 = vadd.f32 %v389, %v547
  %v590 = vadd.f32 %v390, %v545
  %v591 = vadd.f32 %v391, %v546
  %v592 = vadd.f32 %v392, %v547
  %v593 = vadd.f32 %v393, %v545
  %v594 = vadd.f32 %v394, %v546
  %v595 = vadd.f32 %v395, %v547
  %v596 = vadd.f32 %v396, %v545
  %v597 = vadd.f32 %v397, %v546
  %v598 = vadd.f32 %v398, %v547
  %v599 = vadd.f32 %v399, %v545
  %v600 = vadd.f32 %v400, %v546
  %v601 = vadd.f32 %v401, %v547
  %v602 = vadd.f32 %v402, %v545
  %v603 = vadd.f32 %v403, %v546
  %v604 = vadd.f32 %v404, %v547
  %v605 = vadd.f32 %v405, %v545
  %v606 = vadd.f32 %v406, %v546
  %v607 = vadd.f32 %v407, %v547
  %v608 = vadd.f32 %v408, %v545
  %v609 = vadd.f32 %v409, %v546
  %v610 = vadd.f32 %v410, %v547
  %v611 = vadd.f32 %v411, %v545
  %v612 = vadd.f32 %v412, %v546
  %v613 = vadd.f32 %v413, %v547
  %v614 = vadd.f32 %v414, %v545
  %v615 = vadd.f32 %v415, %v546
  %v616 = vadd.f32 %v416, %v547
  %v617 = vadd.f32 %v417, %v545
  %v618 = vadd.f32 %v418, %v546
  %v619 = vadd.f32 %v419, %v547
  %v620 = vadd.f32 %v420, %v545
  %v621 = vadd.f32 %v421, %v546
  %v622 = vadd.f32 %v422, %v547
  %v623 = vadd.f32 %v423, %v545
  %v624 = vadd.f32 %v424, %v546
  %v625 = vadd.f32 %v425, %v547
  %v626 = vadd.f32 %v426, %v545
  %v627 = vadd.f32 %v427, %v546
  %v628 = vadd.f32 %v428, %v547
  %v629 = vadd.f32 %v429, %v545
  %v630 = vadd.f32 %v430, %v546
  %v631 = vadd.f32 %v431, %v547
  %v632 = vadd.f32 %v432, %v545
  %v633 = vadd.f32 %v433, %v546
  %v634 = vadd.f32 %v434, %v547
  %v635 = vadd.f32 %v435, %v545
  %v636 = vadd.f32 %v436, %v546
  %v637 = vadd.f32 %v437, %v547
  %v638 = vadd.f32 %v438, %v545
  %v639 = vadd.f32 %v439, %v546
  %v640 = vadd.f32 %v440, %v547
  %v641 = vadd.f32 %v441, %v545
  %v642 = vadd.f32 %v442, %v546
  %v643 = vadd.f32 %v443, %v547
  %v644 = vadd.f32 %v444, %v545
  %v645 = vadd.f32 %v445, %v546
  %v646 = vadd.f32 %v446, %v547
  %v647 = vadd.f32 %v447, %v545
  %v648 = vadd.f32 %v448, %v546
  %v649 = vadd.f32 %v449, %v547
  %v650 = vadd.f32 %v450, %v545
  %v651 = vadd.f32 %v451, %v546
  %v652 = vadd.f32 %v452, %v547
  %v653 = vadd.f32 %v453, %v545
  %v654 = vadd.f32 %v454, %v546
  %v655 = vadd.f32 %v455, %v547
  %v656 = vadd.f32 %v456, %v545
  %v657 = vadd.f32 %v457, %v546
  %v658 = vadd.f32 %v458, %v547
  %v659 = vadd.f32 %v459, %v545
  %v660 = vadd.f32 %v460, %v546
  %v661 = vadd.f32 %v461, %v547
  %v662 = vadd.f32 %v462, %v545
  %v663 = vadd.f32 %v463, %v546
  %v664 = vadd.f32 %v464, %v547
  %v665 = vadd.f32 %v465, %v545
  %v666 = vadd.f32 %v466, %v546
  %v667 = vadd.f32 %v467, %v547
  %v668 = vadd.f32 %v468, %v545
  %v669 = vadd.f32 %v469, %v546
  %v670 = vadd.f32 %v470, %v547
  %v671 = vadd.f32 %v471, %v545
  %v672 = vadd.f32 %v472, %v546
  %v673 = vadd.f32 %v473, %v547
  %v674 = vadd.f32 %v474, %v545
  %v675 = vadd.f32 %v475, %v546
  %v676 = vadd.f32 %v476, %v547
  %v677 = vadd.f32 %v477, %v545
  %v678 = vadd.f32 %v478, %v546
  %v679 = vadd.f32 %v479, %v547
  %v680 = vadd.f32 %v480, %v545
  %v681 = vadd.f32 %v481, %v546
  %v682 = vadd.f32 %v482, %v547
  %v683 = vadd.f32 %v483, %v545
  %v684 = vadd.f32 %v484, %v546
  %v685 = vadd.f32 %v485, %v547
  %v686 = vadd.f32 %v486, %v545
  %v687 = vadd.f32 %v487, %v546
  %v688 = vadd.f32 %v488, %v547
  %v689 = vadd.f32 %v489, %v545
  %v690 = vadd.f32 %v490, %v546
  %v691 = vadd.f32 %v491, %v547
  %v692 = vadd.f32 %v492, %v545
  %v693 = vadd.f32 %v493, %v546
  %v694 = vadd.f32 %v494, %v547
  %v695 = vadd.f32 %v495, %v545
  %v696 = vadd.f32 %v496, %v546
  %v697 = vadd.f32 %v497, %v547
  %v698 = vadd.f32 %v498, %v545
  %v699 = vadd.f32 %v499, %v546
  %v700 = vadd.f32 %v500, %v547
  %v701 = vadd.f32 %v501, %v545
  %v702 = vadd.f32 %v502, %v546
  %v703 = vadd.f32 %v503, %v547
  %v704 = vadd.f32 %v504, %v545
  %v705 = vadd.f32 %v505, %v546
  %v706 = vadd.f32 %v506, %v547
  %v707 = vadd.f32 %v507, %v545
  %v708 = vadd.f32 %v508, %v546
  %v709 = vadd.f32 %v509, %v547
  %v710 = vadd.f32 %v510, %v545
  %v711 = vadd.f32 %v511, %v546
  %v712 = vadd.f32 %v512, %v547
  %v713 = vadd.f32 %v513, %v545
  %v714 = vadd.f32 %v514, %v546
  %v715 = vadd.f32 %v515, %v547
  %v716 = vadd.f32 %v516, %v545
  %v717 = vadd.f32 %v517, %v546
  %v718 = vadd.f32 %v518, %v547
  %v719 = vadd.f32 %v519, %v545
  %v720 = vadd.f32 %v520, %v546
  %v721 = vadd.f32 %v521, %v547
  %v722 = vadd.f32 %v522, %v545
  %v723 = vadd.f32 %v523, %v546
  %v724 = vadd.f32 %v524, %v547
  %v725 = vadd.f32 %v525, %v545
  %v726 = vadd.f32 %v526, %v546
  %v727 = vadd.f32 %v527, %v547
  %v728 = vadd.f32 %v528, %v545
  %v729 = vadd.f32 %v529, %v546
  %v730 = vadd.f32 %v530, %v547
  %v731 = vadd.f32 %v531, %v545
  %v732 = vadd.f32 %v532, %v546
  %v733 = vadd.f32 %v533, %v547
  %v734 = vadd.f32 %v534, %v545
  %v735 = vadd.f32 %v535, %v546
  %v736 = vadd.f32 %v536, %v547
  %v737 = vadd.f32 %v537, %v545
  %v738 = vadd.f32 %v538, %v546
  %v739 = vadd.f32 %v539, %v547
  %v740 = vadd.f32 %v540, %v545
  %v741 = vadd.f32 %v541, %v546
  %v742 = vadd.f32 %v542, %v547
  %v743 = vmax.f32 %v551, 0.0
  %v744 = vmax.f32 %v552, 0.0
  %v745 = vmax.f32 %v553, 0.0
  %v746 = vmax.f32 %v554, 0.0
  %v747 = vmax.f32 %v555, 0.0
  %v748 = vmax.f32 %v556, 0.0
  %v749 = vmax.f32 %v557, 0.0
  %v750 = vmax.f32 %v558, 0.0
  %v751 = vmax.f32 %v559, 0.0
  %v752 = vmax.f32 %v560, 0.0
  %v753 = vmax.f32 %v561, 0.0
  %v754 = vmax.f32 %v562, 0.0
  %v755 = vmax.f32 %v563, 0.0
  %v756 = vmax.f32 %v564, 0.0
  %v757 = vmax.f32 %v565, 0.0
  %v758 = vmax.f32 %v566, 0.0
  %v759 = vmax.f32 %v567, 0.0
  %v760 = vmax.f32 %v568, 0.0
  %v761 = vmax.f32 %v569, 0.0
  %v762 = vmax.f32 %v570, 0.0
  %v763 = vmax.f32 %v571, 0.0
  %v764 = vmax.f32 %v572, 0.0
  %v765 = vmax.f32 %v573, 0.0
  %v766 = vmax.f32 %v574, 0.0
  %v767 = vmax.f32 %v575, 0.0
  %v768 = vmax.f32 %v576, 0.0
  %v769 = vmax.f32 %v577, 0.0
  %v770 = vmax.f32 %v578, 0.0
  %v771 = vmax.f32 %v579, 0.0
  %v772 = vmax.f32 %v580, 0.0
  %v773 = vmax.f32 %v581, 0.0
  %v774 = vmax.f32 %v582, 0.0
  %v775 = vmax.f32 %v583, 0.0
  %v776 = vmax.f32 %v584, 0.0
  %v777 = vmax.f32 %v585, 0.0
  %v778 = vmax.f32 %v586, 0.0
  %v779 = vmax.f32 %v587, 0.0
  %v780 = vmax.f32 %v588, 0.0
  %v781 = vmax.f32 %v589, 0.0
  %v782 = vmax.f32 %v590, 0.0
  %v783 = vmax.f32 %v591, 0.0
  %v784 = vmax.f32 %v592, 0.0
  %v785 = vmax.f32 %v593, 0.0
  %v786 = vmax.f32 %v594, 0.0
  %v787 = vmax.f32 %v595, 0.0
  %v788 = vmax.f32 %v596, 0.0
  %v789 = vmax.f32 %v597, 0.0
  %v790 = vmax.f32 %v598, 0.0
  %v791 = vmax.f32 %v599, 0.0
  %v792 = vmax.f32 %v600, 0.0
  %v793 = vmax.f32 %v601, 0.0
  %v794 = vmax.f32 %v602, 0.0
  %v795 = vmax.f32 %v603, 0.0
  %v796 = vmax.f32 %v604, 0.0
  %v797 = vmax.f32 %v605, 0.0
  %v798 = vmax.f32 %v606, 0.0
  %v799 = vmax.f32 %v607, 0.0
  %v800 = vmax.f32 %v608, 0.0
  %v801 = vmax.f32 %v609, 0.0
  %v802 = vmax.f32 %v610, 0.0
  %v803 = vmax.f32 %v611, 0.0
  %v804 = vmax.f32 %v612, 0.0
  %v805 = vmax.f32 %v613, 0.0
  %v806 = vmax.f32 %v614, 0.0
  %v807 = vmax.f32 %v615, 0.0
  %v808 = vmax.f32 %v616, 0.0
  %v809 = vmax.f32 %v617, 0.0
  %v810 = vmax.f32 %v618, 0.0
  %v811 = vmax.f32 %v619, 0.0
  %v812 = vmax.f32 %v620, 0.0
  %v813 = vmax.f32 %v621, 0.0
  %v814 = vmax.f32 %v622, 0.0
  %v815 = vmax.f32 %v623, 0.0
  %v816 = vmax.f32 %v624, 0.0
  %v817 = vmax.f32 %v625, 0.0
  %v818 = vmax.f32 %v626, 0.0
  %v819 = vmax.f32 %v627, 0.0
  %v820 = vmax.f32 %v628, 0.0
  %v821 = vmax.f32 %v629, 0.0
  %v822 = vmax.f32 %v630, 0.0
  %v823 = vmax.f32 %v631, 0.0
  %v824 = vmax.f32 %v632, 0.0
  %v825 = vmax.f32 %v633, 0.0
  %v826 = vmax.f32 %v634, 0.0
  %v827 = vmax.f32 %v635, 0.0
  %v828 = vmax.f32 %v636, 0.0
  %v829 = vmax.f32 %v637, 0.0
  %v830 = vmax.f32 %v638, 0.0
  %v831 = vmax.f32 %v639, 0.0
  %v832 = vmax.f32 %v640, 0.0
  %v833 = vmax.f32 %v641, 0.0
  %v834 = vmax.f32 %v642, 0.0
  %v835 = vmax.f32 %v643, 0.0
  %v836 = vmax.f32 %v644, 0.0
  %v837 = vmax.f32 %v645, 0.0
  %v838 = vmax.f32 %v646, 0.0
  %v839 = vmax.f32 %v647, 0.0
  %v840 = vmax.f32 %v648, 0.0
  %v841 = vmax.f32 %v649, 0.0
  %v842 = vmax.f32 %v650, 0.0
  %v843 = vmax.f32 %v651, 0.0
  %v844 = vmax.f32 %v652, 0.0
  %v845 = vmax.f32 %v653, 0.0
  %v846 = vmax.f32 %v654, 0.0
  %v847 = vmax.f32 %v655, 0.0
  %v848 = vmax.f32 %v656, 0.0
  %v849 = vmax.f32 %v657, 0.0
  %v850 = vmax.f32 %v658, 0.0
  %v851 = vmax.f32 %v659, 0.0
  %v852 = vmax.f32 %v660, 0.0
  %v853 = vmax.f32 %v661, 0.0
  %v854 = vmax.f32 %v662, 0.0
  %v855 = vmax.f32 %v663, 0.0
  %v856 = vmax.f32 %v664, 0.0
  %v857 = vmax.f32 %v665, 0.0
  %v858 = vmax.f32 %v666, 0.0
  %v859 = vmax.f32 %v667, 0.0
  %v860 = vmax.f32 %v668, 0.0
  %v861 = vmax.f32 %v669, 0.0
  %v862 = vmax.f32 %v670, 0.0
  %v863 = vmax.f32 %v671, 0.0
  %v864 = vmax.f32 %v672, 0.0
  %v865 = vmax.f32 %v673, 0.0
  %v866 = vmax.f32 %v674, 0.0
  %v867 = vmax.f32 %v675, 0.0
  %v868 = vmax.f32 %v676, 0.0
  %v869 = vmax.f32 %v677, 0.0
  %v870 = vmax.f32 %v678, 0.0
  %v871 = vmax.f32 %v679, 0.0
  %v872 = vmax.f32 %v680, 0.0
  %v873 = vmax.f32 %v681, 0.0
  %v874 = vmax.f32 %v682, 0.0
  %v875 = vmax.f32 %v683, 0.0
  %v876 = vmax.f32 %v684, 0.0
  %v877 = vmax.f32 %v685, 0.0
  %v878 = vmax.f32 %v686, 0.0
  %v879 = vmax.f32 %v687, 0.0
  %v880 = vmax.f32 %v688, 0.0
  %v881 = vmax.f32 %v689, 0.0
  %v882 = vmax.f32 %v690, 0.0
  %v883 = vmax.f32 %v691, 0.0
  %v884 = vmax.f32 %v692, 0.0
  %v885 = vmax.f32 %v693, 0.0
  %v886 = vmax.f32 %v694, 0.0
  %v887 = vmax.f32 %v695, 0.0
  %v888 = vmax.f32 %v696, 0.0
  %v889 = vmax.f32 %v697, 0.0
  %v890 = vmax.f32 %v698, 0.0
  %v891 = vmax.f32 %v699, 0.0
  %v892 = vmax.f32 %v700, 0.0
  %v893 = vmax.f32 %v701, 0.0
  %v894 = vmax.f32 %v702, 0.0
  %v895 = vmax.f32 %v703, 0.0
  %v896 = vmax.f32 %v704, 0.0
  %v897 = vmax.f32 %v705, 0.0
  %v898 = vmax.f32 %v706, 0.0
  %v899 = vmax.f32 %v707, 0.0
  %v900 = vmax.f32 %v708, 0.0
  %v901 = vmax.f32 %v709, 0.0
  %v902 = vmax.f32 %v710, 0.0
  %v903 = vmax.f32 %v711, 0.0
  %v904 = vmax.f32 %v712, 0.0
  %v905 = vmax.f32 %v713, 0.0
  %v906 = vmax.f32 %v714, 0.0
  %v907 = vmax.f32 %v715, 0.0
  %v908 = vmax.f32 %v716, 0.0
  %v909 = vmax.f32 %v717, 0.0
  %v910 = vmax.f32 %v718, 0.0
  %v911 = vmax.f32 %v719, 0.0
  %v912 = vmax.f32 %v720, 0.0
  %v913 = vmax.f32 %v721, 0.0
  %v914 = vmax.f32 %v722, 0.0
  %v915 = vmax.f32 %v723, 0.0
  %v916 = vmax.f32 %v724, 0.0
  %v917 = vmax.f32 %v725, 0.0
  %v918 = vmax.f32 %v726, 0.0
  %v919 = vmax.f32 %v727, 0.0
  %v920 = vmax.f32 %v728, 0.0
  %v921 = vmax.f32 %v729, 0.0
  %v922 = vmax.f32 %v730, 0.0
  %v923 = vmax.f32 %v731, 0.0
  %v924 = vmax.f32 %v732, 0.0
  %v925 = vmax.f32 %v733, 0.0
  %v926 = vmax.f32 %v734, 0.0
  %v927 = vmax.f32 %v735, 0.0
  %v928 = vmax.f32 %v736, 0.0
  %v929 = vmax.f32 %v737, 0.0
  %v930 = vmax.f32 %v738, 0.0
  %v931 = vmax.f32 %v739, 0.0
  %v932 = vmax.f32 %v740, 0.0
  %v933 = vmax.f32 %v741, 0.0
  %v934 = vmax.f32 %v742, 0.0
  %v935 = vpack.c.bf16 %v746, %v743
  %v936 = vpack.c.bf16 %v747, %v744
  %v937 = vpack.c.bf16 %v748, %v745
  %v938 = vpack.c.bf16 %v752, %v749
  %v939 = vpack.c.bf16 %v753, %v750
  %v940 = vpack.c.bf16 %v754, %v751
  %v941 = vpack.c.bf16 %v758, %v755
  %v942 = vpack.c.bf16 %v759, %v756
  %v943 = vpack.c.bf16 %v760, %v757
  %v944 = vpack.c.bf16 %v764, %v761
  %v945 = vpack.c.bf16 %v765, %v762
  %v946 = vpack.c.bf16 %v766, %v763
  %v947 = vpack.c.bf16 %v770, %v767
  %v948 = vpack.c.bf16 %v771, %v768
  %v949 = vpack.c.bf16 %v772, %v769
  %v950 = vpack.c.bf16 %v776, %v773
  %v951 = vpack.c.bf16 %v777, %v774
  %v952 = vpack.c.bf16 %v778, %v775
  %v953 = vpack.c.bf16 %v782, %v779
  %v954 = vpack.c.bf16 %v783, %v780
  %v955 = vpack.c.bf16 %v784, %v781
  %v956 = vpack.c.bf16 %v788, %v785
  %v957 = vpack.c.bf16 %v789, %v786
  %v958 = vpack.c.bf16 %v790, %v787
  %v959 = vpack.c.bf16 %v794, %v791
  %v960 = vpack.c.bf16 %v795, %v792
  %v961 = vpack.c.bf16 %v796, %v793
  %v962 = vpack.c.bf16 %v800, %v797
  %v963 = vpack.c.bf16 %v801, %v798
  %v964 = vpack.c.bf16 %v802, %v799
  %v965 = vpack.c.bf16 %v806, %v803
  %v966 = vpack.c.bf16 %v807, %v804
  %v967 = vpack.c.bf16 %v808, %v805
  %v968 = vpack.c.bf16 %v812, %v809
  %v969 = vpack.c.bf16 %v813, %v810
  %v970 = vpack.c.bf16 %v814, %v811
  %v971 = vpack.c.bf16 %v818, %v815
  %v972 = vpack.c.bf16 %v819, %v816
  %v973 = vpack.c.bf16 %v820, %v817
  %v974 = vpack.c.bf16 %v824, %v821
  %v975 = vpack.c.bf16 %v825, %v822
  %v976 = vpack.c.bf16 %v826, %v823
  %v977 = vpack.c.bf16 %v830, %v827
  %v978 = vpack.c.bf16 %v831, %v828
  %v979 = vpack.c.bf16 %v832, %v829
  %v980 = vpack.c.bf16 %v836, %v833
  %v981 = vpack.c.bf16 %v837, %v834
  %v982 = vpack.c.bf16 %v838, %v835
  %v983 = vpack.c.bf16 %v842, %v839
  %v984 = vpack.c.bf16 %v843, %v840
  %v985 = vpack.c.bf16 %v844, %v841
  %v986 = vpack.c.bf16 %v848, %v845
  %v987 = vpack.c.bf16 %v849, %v846
  %v988 = vpack.c.bf16 %v850, %v847
  %v989 = vpack.c.bf16 %v854, %v851
  %v990 = vpack.c.bf16 %v855, %v852
  %v991 = vpack.c.bf16 %v856, %v853
  %v992 = vpack.c.bf16 %v860, %v857
  %v993 = vpack.c.bf16 %v861, %v858
  %v994 = vpack.c.bf16 %v862, %v859
  %v995 = vpack.c.bf16 %v866, %v863
  %v996 = vpack.c.bf16 %v867, %v864
  %v997 = vpack.c.bf16 %v868, %v865
  %v998 = vpack.c.bf16 %v872, %v869
  %v999 = vpack.c.bf16 %v873, %v870
  %v1000 = vpack.c.bf16 %v874, %v871
  %v1001 = vpack.c.bf16 %v878, %v875
  %v1002 = vpack.c.bf16 %v879, %v876
  %v1003 = vpack.c.bf16 %v880, %v877
  %v1004 = vpack.c.bf16 %v884, %v881
  %v1005 = vpack.c.bf16 %v885, %v882
  %v1006 = vpack.c.bf16 %v886, %v883
  %v1007 = vpack.c.bf16 %v890, %v887
  %v1008 = vpack.c.bf16 %v891, %v888
  %v1009 = vpack.c.bf16 %v892, %v889
  %v1010 = vpack.c.bf16 %v896, %v893
  %v1011 = vpack.c.bf16 %v897, %v894
  %v1012 = vpack.c.bf16 %v898, %v895
  %v1013 = vpack.c.bf16 %v902, %v899
  %v1014 = vpack.c.bf16 %v903, %v900
  %v1015 = vpack.c.bf16 %v904, %v901
  %v1016 = vpack.c.bf16 %v908, %v905
  %v1017 = vpack.c.bf16 %v909, %v906
  %v1018 = vpack.c.bf16 %v910, %v907
  %v1019 = vpack.c.bf16 %v914, %v911
  %v1020 = vpack.c.bf16 %v915, %v912
  %v1021 = vpack.c.bf16 %v916, %v913
  %v1022 = vpack.c.bf16 %v920, %v917
  %v1023 = vpack.c.bf16 %v921, %v918
  %v1024 = vpack.c.bf16 %v922, %v919
  %v1025 = vpack.c.bf16 %v926, %v923
  %v1026 = vpack.c.bf16 %v927, %v924
  %v1027 = vpack.c.bf16 %v928, %v925
  %v1028 = vpack.c.bf16 %v932, %v929
  %v1029 = vpack.c.bf16 %v933, %v930
  %v1030 = vpack.c.bf16 %v934, %v931
  %v1031 = vld [vmem:[%s1] sm:$0xf]
  %v1032 = vld [vmem:[%s1 + $0x4] sm:$0xf]
  %v1033 = vld [vmem:[%s1 + $0x8] sm:$0xf]
  %v1034 = vld [vmem:[%s1 + $0xc] sm:$0xf]
  %v1035 = vld [vmem:[%s1 + $0x10] sm:$0xf]
  %v1036 = vld [vmem:[%s1 + $0x14] sm:$0xf]
  %v1037 = vld [vmem:[%s1 + $0x18] sm:$0xf]
  %v1038 = vld [vmem:[%s1 + $0x1c] sm:$0xf]
  %v1039 = vld [vmem:[%s1 + $0x20] sm:$0xf]
  %v1040 = vld [vmem:[%s1 + $0x24] sm:$0xf]
  %v1041 = vld [vmem:[%s1 + $0x28] sm:$0xf]
  %v1042 = vld [vmem:[%s1 + $0x2c] sm:$0xf]
  %v1043 = vld [vmem:[%s1 + $0x30] sm:$0xf]
  %v1044 = vld [vmem:[%s1 + $0x34] sm:$0xf]
  %v1045 = vld [vmem:[%s1 + $0x38] sm:$0xf]
  %v1046 = vld [vmem:[%s1 + $0x3c] sm:$0xf]
  %v1047 = vld [vmem:[%s1 + $0x40] sm:$0xf]
  %v1048 = vld [vmem:[%s1 + $0x44] sm:$0xf]
  %v1049 = vld [vmem:[%s1 + $0x48] sm:$0xf]
  %v1050 = vld [vmem:[%s1 + $0x4c] sm:$0xf]
  %v1051 = vld [vmem:[%s1 + $0x50] sm:$0xf]
  %v1052 = vld [vmem:[%s1 + $0x54] sm:$0xf]
  %v1053 = vld [vmem:[%s1 + $0x58] sm:$0xf]
  %v1054 = vld [vmem:[%s1 + $0x5c] sm:$0xf]
  %v1055 = vld [vmem:[%s1 + $0x60] sm:$0xf]
  %v1056 = vld [vmem:[%s1 + $0x64] sm:$0xf]
  %v1057 = vld [vmem:[%s1 + $0x68] sm:$0xf]
  %v1058 = vld [vmem:[%s1 + $0x6c] sm:$0xf]
  %v1059 = vld [vmem:[%s1 + $0x70] sm:$0xf]
  %v1060 = vld [vmem:[%s1 + $0x74] sm:$0xf]
  %v1061 = vld [vmem:[%s1 + $0x78] sm:$0xf]
  %v1062 = vld [vmem:[%s1 + $0x7c] sm:$0xf]
  %v1063 = vld [vmem:[%s1 + $0x80] sm:$0xf]
  %v1064 = vld [vmem:[%s1 + $0x84] sm:$0xf]
  %v1065 = vld [vmem:[%s1 + $0x88] sm:$0xf]
  %v1066 = vld [vmem:[%s1 + $0x8c] sm:$0xf]
  %v1067 = vld [vmem:[%s2] sm:$0x1]
  %v1069 = vperm.slane %v1067, 0
  %v1107 = vunpack.c.l.b16 %v1031
  %v1108 = vunpack.c.l.b16 %v1032
  %v1109 = vunpack.c.l.b16 %v1033
  %v1110 = vunpack.c.l.b16 %v1034
  %v1111 = vunpack.c.l.b16 %v1035
  %v1112 = vunpack.c.l.b16 %v1036
  %v1113 = vunpack.c.l.b16 %v1037
  %v1114 = vunpack.c.l.b16 %v1038
  %v1115 = vunpack.c.l.b16 %v1039
  %v1116 = vunpack.c.l.b16 %v1040
  %v1117 = vunpack.c.l.b16 %v1041
  %v1118 = vunpack.c.l.b16 %v1042
  %v1119 = vunpack.c.l.b16 %v1043
  %v1120 = vunpack.c.l.b16 %v1044
  %v1121 = vunpack.c.l.b16 %v1045
  %v1122 = vunpack.c.l.b16 %v1046
  %v1123 = vunpack.c.l.b16 %v1047
  %v1124 = vunpack.c.l.b16 %v1048
  %v1125 = vunpack.c.l.b16 %v1049
  %v1126 = vunpack.c.l.b16 %v1050
  %v1127 = vunpack.c.l.b16 %v1051
  %v1128 = vunpack.c.l.b16 %v1052
  %v1129 = vunpack.c.l.b16 %v1053
  %v1130 = vunpack.c.l.b16 %v1054
  %v1131 = vunpack.c.l.b16 %v1055
  %v1132 = vunpack.c.l.b16 %v1056
  %v1133 = vunpack.c.l.b16 %v1057
  %v1134 = vunpack.c.l.b16 %v1058
  %v1135 = vunpack.c.l.b16 %v1059
  %v1136 = vunpack.c.l.b16 %v1060
  %v1137 = vunpack.c.l.b16 %v1061
  %v1138 = vunpack.c.l.b16 %v1062
  %v1139 = vunpack.c.l.b16 %v1063
  %v1140 = vunpack.c.l.b16 %v1064
  %v1141 = vunpack.c.l.b16 %v1065
  %v1142 = vunpack.c.l.b16 %v1066
  %v1143 = vpack.c.b16 %v1108, %v1107
  %v1144 = vpack.c.b16 %v1110, %v1109
  %v1145 = vpack.c.b16 %v1112, %v1111
  %v1146 = vpack.c.b16 %v1114, %v1113
  %v1147 = vpack.c.b16 %v1116, %v1115
  %v1148 = vpack.c.b16 %v1118, %v1117
  %v1149 = vpack.c.b16 %v1120, %v1119
  %v1150 = vpack.c.b16 %v1122, %v1121
  %v1151 = vpack.c.b16 %v1124, %v1123
  %v1152 = vpack.c.b16 %v1126, %v1125
  %v1153 = vpack.c.b16 %v1128, %v1127
  %v1154 = vpack.c.b16 %v1130, %v1129
  %v1155 = vpack.c.b16 %v1132, %v1131
  %v1156 = vpack.c.b16 %v1134, %v1133
  %v1157 = vpack.c.b16 %v1136, %v1135
  %v1158 = vpack.c.b16 %v1138, %v1137
  %v1159 = vpack.c.b16 %v1140, %v1139
  %v1160 = vpack.c.b16 %v1142, %v1141
  %vm1179 = vcmask 261120
  %v1181 = vsel %vm1179, %v937, 0
  %v1184 = vsel %vm1179, %v940, 0
  %v1187 = vsel %vm1179, %v943, 0
  %v1190 = vsel %vm1179, %v946, 0
  %v1193 = vsel %vm1179, %v949, 0
  %v1196 = vsel %vm1179, %v952, 0
  %v1199 = vsel %vm1179, %v955, 0
  %v1202 = vsel %vm1179, %v958, 0
  %v1205 = vsel %vm1179, %v961, 0
  %v1208 = vsel %vm1179, %v964, 0
  %v1211 = vsel %vm1179, %v967, 0
  %v1214 = vsel %vm1179, %v970, 0
  %v1217 = vsel %vm1179, %v973, 0
  %v1220 = vsel %vm1179, %v976, 0
  %v1223 = vsel %vm1179, %v979, 0
  %v1226 = vsel %vm1179, %v982, 0
  %v1229 = vsel %vm1179, %v985, 0
  %v1232 = vsel %vm1179, %v988, 0
  %v1235 = vsel %vm1179, %v991, 0
  %v1238 = vsel %vm1179, %v994, 0
  %v1241 = vsel %vm1179, %v997, 0
  %v1244 = vsel %vm1179, %v1000, 0
  %v1247 = vsel %vm1179, %v1003, 0
  %v1250 = vsel %vm1179, %v1006, 0
  %v1253 = vsel %vm1179, %v1009, 0
  %v1256 = vsel %vm1179, %v1012, 0
  %v1259 = vsel %vm1179, %v1015, 0
  %v1262 = vsel %vm1179, %v1018, 0
  %v1265 = vsel %vm1179, %v1021, 0
  %v1268 = vsel %vm1179, %v1024, 0
  %v1271 = vsel %vm1179, %v1027, 0
  %v1274 = vsel %vm1179, %v1030, 0
  %1276 = vmatpush.bf16.msra.mxu0 %v1150
  %1277 = vmatpush.bf16.msra.mxu0 %v1149
  %1278 = vmatpush.bf16.msra.mxu0 %v1148
  %1279 = vmatpush.bf16.msra.mxu0 %v1147
  %1280 = vmatpush.bf16.msra.mxu0 %v1146
  %1281 = vmatpush.bf16.msra.mxu0 %v1145
  %1282 = vmatpush.bf16.msra.mxu0 %v1144
  %1283 = vmatpush.bf16.msra.mxu0 %v1143
  %1284 = vmatmul.bf16.gmra.mxu0 %v935
  %v1285 = vpop.f32.mrf.mxu0
  %v1286 = vadd.f32 %v1069, %v1285
  %v1287 = vpop.f32.mrf.mxu0
  %v1288 = vadd.f32 %v1069, %v1287
  %1289 = vmatmul.bf16.gmra.mxu0 %v938
  %v1290 = vpop.f32.mrf.mxu0
  %v1291 = vadd.f32 %v1069, %v1290
  %v1292 = vpop.f32.mrf.mxu0
  %v1293 = vadd.f32 %v1069, %v1292
  %1294 = vmatmul.bf16.gmra.mxu0 %v941
  %v1295 = vpop.f32.mrf.mxu0
  %v1296 = vadd.f32 %v1069, %v1295
  %v1297 = vpop.f32.mrf.mxu0
  %v1298 = vadd.f32 %v1069, %v1297
  %1299 = vmatmul.bf16.gmra.mxu0 %v944
  %v1300 = vpop.f32.mrf.mxu0
  %v1301 = vadd.f32 %v1069, %v1300
  %v1302 = vpop.f32.mrf.mxu0
  %v1303 = vadd.f32 %v1069, %v1302
  %1304 = vmatmul.bf16.gmra.mxu0 %v947
  %v1305 = vpop.f32.mrf.mxu0
  %v1306 = vadd.f32 %v1069, %v1305
  %v1307 = vpop.f32.mrf.mxu0
  %v1308 = vadd.f32 %v1069, %v1307
  %1309 = vmatmul.bf16.gmra.mxu0 %v950
  %v1310 = vpop.f32.mrf.mxu0
  %v1311 = vadd.f32 %v1069, %v1310
  %v1312 = vpop.f32.mrf.mxu0
  %v1313 = vadd.f32 %v1069, %v1312
  %1314 = vmatmul.bf16.gmra.mxu0 %v953
  %v1315 = vpop.f32.mrf.mxu0
  %v1316 = vadd.f32 %v1069, %v1315
  %v1317 = vpop.f32.mrf.mxu0
  %v1318 = vadd.f32 %v1069, %v1317
  %1319 = vmatmul.bf16.gmra.mxu0 %v956
  %v1320 = vpop.f32.mrf.mxu0
  %v1321 = vadd.f32 %v1069, %v1320
  %v1322 = vpop.f32.mrf.mxu0
  %v1323 = vadd.f32 %v1069, %v1322
  %1324 = vmatmul.bf16.gmra.mxu0 %v959
  %v1325 = vpop.f32.mrf.mxu0
  %v1326 = vadd.f32 %v1069, %v1325
  %v1327 = vpop.f32.mrf.mxu0
  %v1328 = vadd.f32 %v1069, %v1327
  %1329 = vmatmul.bf16.gmra.mxu0 %v962
  %v1330 = vpop.f32.mrf.mxu0
  %v1331 = vadd.f32 %v1069, %v1330
  %v1332 = vpop.f32.mrf.mxu0
  %v1333 = vadd.f32 %v1069, %v1332
  %1334 = vmatmul.bf16.gmra.mxu0 %v965
  %v1335 = vpop.f32.mrf.mxu0
  %v1336 = vadd.f32 %v1069, %v1335
  %v1337 = vpop.f32.mrf.mxu0
  %v1338 = vadd.f32 %v1069, %v1337
  %1339 = vmatmul.bf16.gmra.mxu0 %v968
  %v1340 = vpop.f32.mrf.mxu0
  %v1341 = vadd.f32 %v1069, %v1340
  %v1342 = vpop.f32.mrf.mxu0
  %v1343 = vadd.f32 %v1069, %v1342
  %1344 = vmatmul.bf16.gmra.mxu0 %v971
  %v1345 = vpop.f32.mrf.mxu0
  %v1346 = vadd.f32 %v1069, %v1345
  %v1347 = vpop.f32.mrf.mxu0
  %v1348 = vadd.f32 %v1069, %v1347
  %1349 = vmatmul.bf16.gmra.mxu0 %v974
  %v1350 = vpop.f32.mrf.mxu0
  %v1351 = vadd.f32 %v1069, %v1350
  %v1352 = vpop.f32.mrf.mxu0
  %v1353 = vadd.f32 %v1069, %v1352
  %1354 = vmatmul.bf16.gmra.mxu0 %v977
  %v1355 = vpop.f32.mrf.mxu0
  %v1356 = vadd.f32 %v1069, %v1355
  %v1357 = vpop.f32.mrf.mxu0
  %v1358 = vadd.f32 %v1069, %v1357
  %1359 = vmatmul.bf16.gmra.mxu0 %v980
  %v1360 = vpop.f32.mrf.mxu0
  %v1361 = vadd.f32 %v1069, %v1360
  %v1362 = vpop.f32.mrf.mxu0
  %v1363 = vadd.f32 %v1069, %v1362
  %1364 = vmatmul.bf16.gmra.mxu0 %v983
  %v1365 = vpop.f32.mrf.mxu0
  %v1366 = vadd.f32 %v1069, %v1365
  %v1367 = vpop.f32.mrf.mxu0
  %v1368 = vadd.f32 %v1069, %v1367
  %1369 = vmatmul.bf16.gmra.mxu0 %v986
  %v1370 = vpop.f32.mrf.mxu0
  %v1371 = vadd.f32 %v1069, %v1370
  %v1372 = vpop.f32.mrf.mxu0
  %v1373 = vadd.f32 %v1069, %v1372
  %1374 = vmatmul.bf16.gmra.mxu0 %v989
  %v1375 = vpop.f32.mrf.mxu0
  %v1376 = vadd.f32 %v1069, %v1375
  %v1377 = vpop.f32.mrf.mxu0
  %v1378 = vadd.f32 %v1069, %v1377
  %1379 = vmatmul.bf16.gmra.mxu0 %v992
  %v1380 = vpop.f32.mrf.mxu0
  %v1381 = vadd.f32 %v1069, %v1380
  %v1382 = vpop.f32.mrf.mxu0
  %v1383 = vadd.f32 %v1069, %v1382
  %1384 = vmatmul.bf16.gmra.mxu0 %v995
  %v1385 = vpop.f32.mrf.mxu0
  %v1386 = vadd.f32 %v1069, %v1385
  %v1387 = vpop.f32.mrf.mxu0
  %v1388 = vadd.f32 %v1069, %v1387
  %1389 = vmatmul.bf16.gmra.mxu0 %v998
  %v1390 = vpop.f32.mrf.mxu0
  %v1391 = vadd.f32 %v1069, %v1390
  %v1392 = vpop.f32.mrf.mxu0
  %v1393 = vadd.f32 %v1069, %v1392
  %1394 = vmatmul.bf16.gmra.mxu0 %v1001
  %v1395 = vpop.f32.mrf.mxu0
  %v1396 = vadd.f32 %v1069, %v1395
  %v1397 = vpop.f32.mrf.mxu0
  %v1398 = vadd.f32 %v1069, %v1397
  %1399 = vmatmul.bf16.gmra.mxu0 %v1004
  %v1400 = vpop.f32.mrf.mxu0
  %v1401 = vadd.f32 %v1069, %v1400
  %v1402 = vpop.f32.mrf.mxu0
  %v1403 = vadd.f32 %v1069, %v1402
  %1404 = vmatmul.bf16.gmra.mxu0 %v1007
  %v1405 = vpop.f32.mrf.mxu0
  %v1406 = vadd.f32 %v1069, %v1405
  %v1407 = vpop.f32.mrf.mxu0
  %v1408 = vadd.f32 %v1069, %v1407
  %1409 = vmatmul.bf16.gmra.mxu0 %v1010
  %v1410 = vpop.f32.mrf.mxu0
  %v1411 = vadd.f32 %v1069, %v1410
  %v1412 = vpop.f32.mrf.mxu0
  %v1413 = vadd.f32 %v1069, %v1412
  %1414 = vmatmul.bf16.gmra.mxu0 %v1013
  %v1415 = vpop.f32.mrf.mxu0
  %v1416 = vadd.f32 %v1069, %v1415
  %v1417 = vpop.f32.mrf.mxu0
  %v1418 = vadd.f32 %v1069, %v1417
  %1419 = vmatmul.bf16.gmra.mxu0 %v1016
  %v1420 = vpop.f32.mrf.mxu0
  %v1421 = vadd.f32 %v1069, %v1420
  %v1422 = vpop.f32.mrf.mxu0
  %v1423 = vadd.f32 %v1069, %v1422
  %1424 = vmatmul.bf16.gmra.mxu0 %v1019
  %v1425 = vpop.f32.mrf.mxu0
  %v1426 = vadd.f32 %v1069, %v1425
  %v1427 = vpop.f32.mrf.mxu0
  %v1428 = vadd.f32 %v1069, %v1427
  %1429 = vmatmul.bf16.gmra.mxu0 %v1022
  %v1430 = vpop.f32.mrf.mxu0
  %v1431 = vadd.f32 %v1069, %v1430
  %v1432 = vpop.f32.mrf.mxu0
  %v1433 = vadd.f32 %v1069, %v1432
  %1434 = vmatmul.bf16.gmra.mxu0 %v1025
  %v1435 = vpop.f32.mrf.mxu0
  %v1436 = vadd.f32 %v1069, %v1435
  %v1437 = vpop.f32.mrf.mxu0
  %v1438 = vadd.f32 %v1069, %v1437
  %1439 = vmatmul.bf16.gmra.mxu0 %v1028
  %v1440 = vpop.f32.mrf.mxu0
  %v1441 = vadd.f32 %v1069, %v1440
  %v1442 = vpop.f32.mrf.mxu0
  %v1443 = vadd.f32 %v1069, %v1442
  %1444 = vdwg.mxu0
  %1445 = vmatpush.bf16.msra.mxu0 %v1158
  %1446 = vmatpush.bf16.msra.mxu0 %v1157
  %1447 = vmatpush.bf16.msra.mxu0 %v1156
  %1448 = vmatpush.bf16.msra.mxu0 %v1155
  %1449 = vmatpush.bf16.msra.mxu0 %v1154
  %1450 = vmatpush.bf16.msra.mxu0 %v1153
  %1451 = vmatpush.bf16.msra.mxu0 %v1152
  %1452 = vmatpush.bf16.msra.mxu0 %v1151
  %1453 = vmatmul.bf16.gmra.mxu0 %v936
  %v1454 = vpop.f32.mrf.mxu0
  %v1455 = vadd.f32 %v1286, %v1454
  %v1456 = vpop.f32.mrf.mxu0
  %v1457 = vadd.f32 %v1288, %v1456
  %1458 = vmatmul.bf16.gmra.mxu0 %v939
  %v1459 = vpop.f32.mrf.mxu0
  %v1460 = vadd.f32 %v1291, %v1459
  %v1461 = vpop.f32.mrf.mxu0
  %v1462 = vadd.f32 %v1293, %v1461
  %1463 = vmatmul.bf16.gmra.mxu0 %v942
  %v1464 = vpop.f32.mrf.mxu0
  %v1465 = vadd.f32 %v1296, %v1464
  %v1466 = vpop.f32.mrf.mxu0
  %v1467 = vadd.f32 %v1298, %v1466
  %1468 = vmatmul.bf16.gmra.mxu0 %v945
  %v1469 = vpop.f32.mrf.mxu0
  %v1470 = vadd.f32 %v1301, %v1469
  %v1471 = vpop.f32.mrf.mxu0
  %v1472 = vadd.f32 %v1303, %v1471
  %1473 = vmatmul.bf16.gmra.mxu0 %v948
  %v1474 = vpop.f32.mrf.mxu0
  %v1475 = vadd.f32 %v1306, %v1474
  %v1476 = vpop.f32.mrf.mxu0
  %v1477 = vadd.f32 %v1308, %v1476
  %1478 = vmatmul.bf16.gmra.mxu0 %v951
  %v1479 = vpop.f32.mrf.mxu0
  %v1480 = vadd.f32 %v1311, %v1479
  %v1481 = vpop.f32.mrf.mxu0
  %v1482 = vadd.f32 %v1313, %v1481
  %1483 = vmatmul.bf16.gmra.mxu0 %v954
  %v1484 = vpop.f32.mrf.mxu0
  %v1485 = vadd.f32 %v1316, %v1484
  %v1486 = vpop.f32.mrf.mxu0
  %v1487 = vadd.f32 %v1318, %v1486
  %1488 = vmatmul.bf16.gmra.mxu0 %v957
  %v1489 = vpop.f32.mrf.mxu0
  %v1490 = vadd.f32 %v1321, %v1489
  %v1491 = vpop.f32.mrf.mxu0
  %v1492 = vadd.f32 %v1323, %v1491
  %1493 = vmatmul.bf16.gmra.mxu0 %v960
  %v1494 = vpop.f32.mrf.mxu0
  %v1495 = vadd.f32 %v1326, %v1494
  %v1496 = vpop.f32.mrf.mxu0
  %v1497 = vadd.f32 %v1328, %v1496
  %1498 = vmatmul.bf16.gmra.mxu0 %v963
  %v1499 = vpop.f32.mrf.mxu0
  %v1500 = vadd.f32 %v1331, %v1499
  %v1501 = vpop.f32.mrf.mxu0
  %v1502 = vadd.f32 %v1333, %v1501
  %1503 = vmatmul.bf16.gmra.mxu0 %v966
  %v1504 = vpop.f32.mrf.mxu0
  %v1505 = vadd.f32 %v1336, %v1504
  %v1506 = vpop.f32.mrf.mxu0
  %v1507 = vadd.f32 %v1338, %v1506
  %1508 = vmatmul.bf16.gmra.mxu0 %v969
  %v1509 = vpop.f32.mrf.mxu0
  %v1510 = vadd.f32 %v1341, %v1509
  %v1511 = vpop.f32.mrf.mxu0
  %v1512 = vadd.f32 %v1343, %v1511
  %1513 = vmatmul.bf16.gmra.mxu0 %v972
  %v1514 = vpop.f32.mrf.mxu0
  %v1515 = vadd.f32 %v1346, %v1514
  %v1516 = vpop.f32.mrf.mxu0
  %v1517 = vadd.f32 %v1348, %v1516
  %1518 = vmatmul.bf16.gmra.mxu0 %v975
  %v1519 = vpop.f32.mrf.mxu0
  %v1520 = vadd.f32 %v1351, %v1519
  %v1521 = vpop.f32.mrf.mxu0
  %v1522 = vadd.f32 %v1353, %v1521
  %1523 = vmatmul.bf16.gmra.mxu0 %v978
  %v1524 = vpop.f32.mrf.mxu0
  %v1525 = vadd.f32 %v1356, %v1524
  %v1526 = vpop.f32.mrf.mxu0
  %v1527 = vadd.f32 %v1358, %v1526
  %1528 = vmatmul.bf16.gmra.mxu0 %v981
  %v1529 = vpop.f32.mrf.mxu0
  %v1530 = vadd.f32 %v1361, %v1529
  %v1531 = vpop.f32.mrf.mxu0
  %v1532 = vadd.f32 %v1363, %v1531
  %1533 = vmatmul.bf16.gmra.mxu0 %v984
  %v1534 = vpop.f32.mrf.mxu0
  %v1535 = vadd.f32 %v1366, %v1534
  %v1536 = vpop.f32.mrf.mxu0
  %v1537 = vadd.f32 %v1368, %v1536
  %1538 = vmatmul.bf16.gmra.mxu0 %v987
  %v1539 = vpop.f32.mrf.mxu0
  %v1540 = vadd.f32 %v1371, %v1539
  %v1541 = vpop.f32.mrf.mxu0
  %v1542 = vadd.f32 %v1373, %v1541
  %1543 = vmatmul.bf16.gmra.mxu0 %v990
  %v1544 = vpop.f32.mrf.mxu0
  %v1545 = vadd.f32 %v1376, %v1544
  %v1546 = vpop.f32.mrf.mxu0
  %v1547 = vadd.f32 %v1378, %v1546
  %1548 = vmatmul.bf16.gmra.mxu0 %v993
  %v1549 = vpop.f32.mrf.mxu0
  %v1550 = vadd.f32 %v1381, %v1549
  %v1551 = vpop.f32.mrf.mxu0
  %v1552 = vadd.f32 %v1383, %v1551
  %1553 = vmatmul.bf16.gmra.mxu0 %v996
  %v1554 = vpop.f32.mrf.mxu0
  %v1555 = vadd.f32 %v1386, %v1554
  %v1556 = vpop.f32.mrf.mxu0
  %v1557 = vadd.f32 %v1388, %v1556
  %1558 = vmatmul.bf16.gmra.mxu0 %v999
  %v1559 = vpop.f32.mrf.mxu0
  %v1560 = vadd.f32 %v1391, %v1559
  %v1561 = vpop.f32.mrf.mxu0
  %v1562 = vadd.f32 %v1393, %v1561
  %1563 = vmatmul.bf16.gmra.mxu0 %v1002
  %v1564 = vpop.f32.mrf.mxu0
  %v1565 = vadd.f32 %v1396, %v1564
  %v1566 = vpop.f32.mrf.mxu0
  %v1567 = vadd.f32 %v1398, %v1566
  %1568 = vmatmul.bf16.gmra.mxu0 %v1005
  %v1569 = vpop.f32.mrf.mxu0
  %v1570 = vadd.f32 %v1401, %v1569
  %v1571 = vpop.f32.mrf.mxu0
  %v1572 = vadd.f32 %v1403, %v1571
  %1573 = vmatmul.bf16.gmra.mxu0 %v1008
  %v1574 = vpop.f32.mrf.mxu0
  %v1575 = vadd.f32 %v1406, %v1574
  %v1576 = vpop.f32.mrf.mxu0
  %v1577 = vadd.f32 %v1408, %v1576
  %1578 = vmatmul.bf16.gmra.mxu0 %v1011
  %v1579 = vpop.f32.mrf.mxu0
  %v1580 = vadd.f32 %v1411, %v1579
  %v1581 = vpop.f32.mrf.mxu0
  %v1582 = vadd.f32 %v1413, %v1581
  %1583 = vmatmul.bf16.gmra.mxu0 %v1014
  %v1584 = vpop.f32.mrf.mxu0
  %v1585 = vadd.f32 %v1416, %v1584
  %v1586 = vpop.f32.mrf.mxu0
  %v1587 = vadd.f32 %v1418, %v1586
  %1588 = vmatmul.bf16.gmra.mxu0 %v1017
  %v1589 = vpop.f32.mrf.mxu0
  %v1590 = vadd.f32 %v1421, %v1589
  %v1591 = vpop.f32.mrf.mxu0
  %v1592 = vadd.f32 %v1423, %v1591
  %1593 = vmatmul.bf16.gmra.mxu0 %v1020
  %v1594 = vpop.f32.mrf.mxu0
  %v1595 = vadd.f32 %v1426, %v1594
  %v1596 = vpop.f32.mrf.mxu0
  %v1597 = vadd.f32 %v1428, %v1596
  %1598 = vmatmul.bf16.gmra.mxu0 %v1023
  %v1599 = vpop.f32.mrf.mxu0
  %v1600 = vadd.f32 %v1431, %v1599
  %v1601 = vpop.f32.mrf.mxu0
  %v1602 = vadd.f32 %v1433, %v1601
  %1603 = vmatmul.bf16.gmra.mxu0 %v1026
  %v1604 = vpop.f32.mrf.mxu0
  %v1605 = vadd.f32 %v1436, %v1604
  %v1606 = vpop.f32.mrf.mxu0
  %v1607 = vadd.f32 %v1438, %v1606
  %1608 = vmatmul.bf16.gmra.mxu0 %v1029
  %v1609 = vpop.f32.mrf.mxu0
  %v1610 = vadd.f32 %v1441, %v1609
  %v1611 = vpop.f32.mrf.mxu0
  %v1612 = vadd.f32 %v1443, %v1611
  %1613 = vdwg.mxu0
  %1614 = vmatpush.bf16.msra.mxu0 0
  %1615 = vmatpush.bf16.msra.mxu0 0
  %1616 = vmatpush.bf16.msra.mxu0 0
  %1617 = vmatpush.bf16.msra.mxu0 0
  %1618 = vmatpush.bf16.msra.mxu0 0
  %1619 = vmatpush.bf16.msra.mxu0 0
  %1620 = vmatpush.bf16.msra.mxu0 %v1160
  %1621 = vmatpush.bf16.msra.mxu0 %v1159
  %1622 = vmatmul.bf16.gmra.mxu0 %v1181
  %v1623 = vpop.f32.mrf.mxu0
  %v1624 = vadd.f32 %v1455, %v1623
  %v1625 = vpop.f32.mrf.mxu0
  %v1626 = vadd.f32 %v1457, %v1625
  %1627 = vmatmul.bf16.gmra.mxu0 %v1184
  %v1628 = vpop.f32.mrf.mxu0
  %v1629 = vadd.f32 %v1460, %v1628
  %v1630 = vpop.f32.mrf.mxu0
  %v1631 = vadd.f32 %v1462, %v1630
  %1632 = vmatmul.bf16.gmra.mxu0 %v1187
  %v1633 = vpop.f32.mrf.mxu0
  %v1634 = vadd.f32 %v1465, %v1633
  %v1635 = vpop.f32.mrf.mxu0
  %v1636 = vadd.f32 %v1467, %v1635
  %1637 = vmatmul.bf16.gmra.mxu0 %v1190
  %v1638 = vpop.f32.mrf.mxu0
  %v1639 = vadd.f32 %v1470, %v1638
  %v1640 = vpop.f32.mrf.mxu0
  %v1641 = vadd.f32 %v1472, %v1640
  %1642 = vmatmul.bf16.gmra.mxu0 %v1193
  %v1643 = vpop.f32.mrf.mxu0
  %v1644 = vadd.f32 %v1475, %v1643
  %v1645 = vpop.f32.mrf.mxu0
  %v1646 = vadd.f32 %v1477, %v1645
  %1647 = vmatmul.bf16.gmra.mxu0 %v1196
  %v1648 = vpop.f32.mrf.mxu0
  %v1649 = vadd.f32 %v1480, %v1648
  %v1650 = vpop.f32.mrf.mxu0
  %v1651 = vadd.f32 %v1482, %v1650
  %1652 = vmatmul.bf16.gmra.mxu0 %v1199
  %v1653 = vpop.f32.mrf.mxu0
  %v1654 = vadd.f32 %v1485, %v1653
  %v1655 = vpop.f32.mrf.mxu0
  %v1656 = vadd.f32 %v1487, %v1655
  %1657 = vmatmul.bf16.gmra.mxu0 %v1202
  %v1658 = vpop.f32.mrf.mxu0
  %v1659 = vadd.f32 %v1490, %v1658
  %v1660 = vpop.f32.mrf.mxu0
  %v1661 = vadd.f32 %v1492, %v1660
  %1662 = vmatmul.bf16.gmra.mxu0 %v1205
  %v1663 = vpop.f32.mrf.mxu0
  %v1664 = vadd.f32 %v1495, %v1663
  %v1665 = vpop.f32.mrf.mxu0
  %v1666 = vadd.f32 %v1497, %v1665
  %1667 = vmatmul.bf16.gmra.mxu0 %v1208
  %v1668 = vpop.f32.mrf.mxu0
  %v1669 = vadd.f32 %v1500, %v1668
  %v1670 = vpop.f32.mrf.mxu0
  %v1671 = vadd.f32 %v1502, %v1670
  %1672 = vmatmul.bf16.gmra.mxu0 %v1211
  %v1673 = vpop.f32.mrf.mxu0
  %v1674 = vadd.f32 %v1505, %v1673
  %v1675 = vpop.f32.mrf.mxu0
  %v1676 = vadd.f32 %v1507, %v1675
  %1677 = vmatmul.bf16.gmra.mxu0 %v1214
  %v1678 = vpop.f32.mrf.mxu0
  %v1679 = vadd.f32 %v1510, %v1678
  %v1680 = vpop.f32.mrf.mxu0
  %v1681 = vadd.f32 %v1512, %v1680
  %1682 = vmatmul.bf16.gmra.mxu0 %v1217
  %v1683 = vpop.f32.mrf.mxu0
  %v1684 = vadd.f32 %v1515, %v1683
  %v1685 = vpop.f32.mrf.mxu0
  %v1686 = vadd.f32 %v1517, %v1685
  %1687 = vmatmul.bf16.gmra.mxu0 %v1220
  %v1688 = vpop.f32.mrf.mxu0
  %v1689 = vadd.f32 %v1520, %v1688
  %v1690 = vpop.f32.mrf.mxu0
  %v1691 = vadd.f32 %v1522, %v1690
  %1692 = vmatmul.bf16.gmra.mxu0 %v1223
  %v1693 = vpop.f32.mrf.mxu0
  %v1694 = vadd.f32 %v1525, %v1693
  %v1695 = vpop.f32.mrf.mxu0
  %v1696 = vadd.f32 %v1527, %v1695
  %1697 = vmatmul.bf16.gmra.mxu0 %v1226
  %v1698 = vpop.f32.mrf.mxu0
  %v1699 = vadd.f32 %v1530, %v1698
  %v1700 = vpop.f32.mrf.mxu0
  %v1701 = vadd.f32 %v1532, %v1700
  %1702 = vmatmul.bf16.gmra.mxu0 %v1229
  %v1703 = vpop.f32.mrf.mxu0
  %v1704 = vadd.f32 %v1535, %v1703
  %v1705 = vpop.f32.mrf.mxu0
  %v1706 = vadd.f32 %v1537, %v1705
  %1707 = vmatmul.bf16.gmra.mxu0 %v1232
  %v1708 = vpop.f32.mrf.mxu0
  %v1709 = vadd.f32 %v1540, %v1708
  %v1710 = vpop.f32.mrf.mxu0
  %v1711 = vadd.f32 %v1542, %v1710
  %1712 = vmatmul.bf16.gmra.mxu0 %v1235
  %v1713 = vpop.f32.mrf.mxu0
  %v1714 = vadd.f32 %v1545, %v1713
  %v1715 = vpop.f32.mrf.mxu0
  %v1716 = vadd.f32 %v1547, %v1715
  %1717 = vmatmul.bf16.gmra.mxu0 %v1238
  %v1718 = vpop.f32.mrf.mxu0
  %v1719 = vadd.f32 %v1550, %v1718
  %v1720 = vpop.f32.mrf.mxu0
  %v1721 = vadd.f32 %v1552, %v1720
  %1722 = vmatmul.bf16.gmra.mxu0 %v1241
  %v1723 = vpop.f32.mrf.mxu0
  %v1724 = vadd.f32 %v1555, %v1723
  %v1725 = vpop.f32.mrf.mxu0
  %v1726 = vadd.f32 %v1557, %v1725
  %1727 = vmatmul.bf16.gmra.mxu0 %v1244
  %v1728 = vpop.f32.mrf.mxu0
  %v1729 = vadd.f32 %v1560, %v1728
  %v1730 = vpop.f32.mrf.mxu0
  %v1731 = vadd.f32 %v1562, %v1730
  %1732 = vmatmul.bf16.gmra.mxu0 %v1247
  %v1733 = vpop.f32.mrf.mxu0
  %v1734 = vadd.f32 %v1565, %v1733
  %v1735 = vpop.f32.mrf.mxu0
  %v1736 = vadd.f32 %v1567, %v1735
  %1737 = vmatmul.bf16.gmra.mxu0 %v1250
  %v1738 = vpop.f32.mrf.mxu0
  %v1739 = vadd.f32 %v1570, %v1738
  %v1740 = vpop.f32.mrf.mxu0
  %v1741 = vadd.f32 %v1572, %v1740
  %1742 = vmatmul.bf16.gmra.mxu0 %v1253
  %v1743 = vpop.f32.mrf.mxu0
  %v1744 = vadd.f32 %v1575, %v1743
  %v1745 = vpop.f32.mrf.mxu0
  %v1746 = vadd.f32 %v1577, %v1745
  %1747 = vmatmul.bf16.gmra.mxu0 %v1256
  %v1748 = vpop.f32.mrf.mxu0
  %v1749 = vadd.f32 %v1580, %v1748
  %v1750 = vpop.f32.mrf.mxu0
  %v1751 = vadd.f32 %v1582, %v1750
  %1752 = vmatmul.bf16.gmra.mxu0 %v1259
  %v1753 = vpop.f32.mrf.mxu0
  %v1754 = vadd.f32 %v1585, %v1753
  %v1755 = vpop.f32.mrf.mxu0
  %v1756 = vadd.f32 %v1587, %v1755
  %1757 = vmatmul.bf16.gmra.mxu0 %v1262
  %v1758 = vpop.f32.mrf.mxu0
  %v1759 = vadd.f32 %v1590, %v1758
  %v1760 = vpop.f32.mrf.mxu0
  %v1761 = vadd.f32 %v1592, %v1760
  %1762 = vmatmul.bf16.gmra.mxu0 %v1265
  %v1763 = vpop.f32.mrf.mxu0
  %v1764 = vadd.f32 %v1595, %v1763
  %v1765 = vpop.f32.mrf.mxu0
  %v1766 = vadd.f32 %v1597, %v1765
  %1767 = vmatmul.bf16.gmra.mxu0 %v1268
  %v1768 = vpop.f32.mrf.mxu0
  %v1769 = vadd.f32 %v1600, %v1768
  %v1770 = vpop.f32.mrf.mxu0
  %v1771 = vadd.f32 %v1602, %v1770
  %1772 = vmatmul.bf16.gmra.mxu0 %v1271
  %v1773 = vpop.f32.mrf.mxu0
  %v1774 = vadd.f32 %v1605, %v1773
  %v1775 = vpop.f32.mrf.mxu0
  %v1776 = vadd.f32 %v1607, %v1775
  %1777 = vmatmul.bf16.gmra.mxu0 %v1274
  %v1778 = vpop.f32.mrf.mxu0
  %v1779 = vadd.f32 %v1610, %v1778
  %v1780 = vpop.f32.mrf.mxu0
  %v1781 = vadd.f32 %v1612, %v1780
  %1782 = vdwg.mxu0
  %s1783 = smul.u32 0, 512
  %s1784 = ssub.s32 512, %s1783
  %v1785 = vlaneseq
  %v1786 = vshrl.u32 %v1785, 7
  %v1787 = vadd.s32 %v1786, 8
  %v1788 = vadd.s32 %v1786, 16
  %v1789 = vadd.s32 %v1786, 24
  %v1790 = vadd.s32 %v1786, 32
  %v1791 = vadd.s32 %v1786, 40
  %v1792 = vadd.s32 %v1786, 48
  %v1793 = vadd.s32 %v1786, 56
  %v1794 = vadd.s32 %v1786, 64
  %v1795 = vadd.s32 %v1786, 72
  %v1796 = vadd.s32 %v1786, 80
  %v1797 = vadd.s32 %v1786, 88
  %v1798 = vadd.s32 %v1786, 96
  %v1799 = vadd.s32 %v1786, 104
  %v1800 = vadd.s32 %v1786, 112
  %v1801 = vadd.s32 %v1786, 120
  %v1802 = vadd.s32 %v1786, 128
  %v1803 = vadd.s32 %v1786, 136
  %v1804 = vadd.s32 %v1786, 144
  %v1805 = vadd.s32 %v1786, 152
  %v1806 = vadd.s32 %v1786, 160
  %v1807 = vadd.s32 %v1786, 168
  %v1808 = vadd.s32 %v1786, 176
  %v1809 = vadd.s32 %v1786, 184
  %v1810 = vadd.s32 %v1786, 192
  %v1811 = vadd.s32 %v1786, 200
  %v1812 = vadd.s32 %v1786, 208
  %v1813 = vadd.s32 %v1786, 216
  %v1814 = vadd.s32 %v1786, 224
  %v1815 = vadd.s32 %v1786, 232
  %v1816 = vadd.s32 %v1786, 240
  %v1817 = vadd.s32 %v1786, 248
  %v1818 = vadd.s32 %v1786, 256
  %v1819 = vadd.s32 %v1786, 264
  %v1820 = vadd.s32 %v1786, 272
  %v1821 = vadd.s32 %v1786, 280
  %v1822 = vadd.s32 %v1786, 288
  %v1823 = vadd.s32 %v1786, 296
  %v1824 = vadd.s32 %v1786, 304
  %v1825 = vadd.s32 %v1786, 312
  %v1826 = vadd.s32 %v1786, 320
  %v1827 = vadd.s32 %v1786, 328
  %v1828 = vadd.s32 %v1786, 336
  %v1829 = vadd.s32 %v1786, 344
  %v1830 = vadd.s32 %v1786, 352
  %v1831 = vadd.s32 %v1786, 360
  %v1832 = vadd.s32 %v1786, 368
  %v1833 = vadd.s32 %v1786, 376
  %v1834 = vadd.s32 %v1786, 384
  %v1835 = vadd.s32 %v1786, 392
  %v1836 = vadd.s32 %v1786, 400
  %v1837 = vadd.s32 %v1786, 408
  %v1838 = vadd.s32 %v1786, 416
  %v1839 = vadd.s32 %v1786, 424
  %v1840 = vadd.s32 %v1786, 432
  %v1841 = vadd.s32 %v1786, 440
  %v1842 = vadd.s32 %v1786, 448
  %v1843 = vadd.s32 %v1786, 456
  %v1844 = vadd.s32 %v1786, 464
  %v1845 = vadd.s32 %v1786, 472
  %v1846 = vadd.s32 %v1786, 480
  %v1847 = vadd.s32 %v1786, 488
  %v1848 = vadd.s32 %v1786, 496
  %v1849 = vadd.s32 %v1786, 504
  %v1850 = vstv %s1784
  %vm1851 = vcmp.lt.s32.totalorder %v1786, %v1850
  %vm1852 = vcmp.lt.s32.totalorder %v1787, %v1850
  %vm1853 = vcmp.lt.s32.totalorder %v1788, %v1850
  %vm1854 = vcmp.lt.s32.totalorder %v1789, %v1850
  %vm1855 = vcmp.lt.s32.totalorder %v1790, %v1850
  %vm1856 = vcmp.lt.s32.totalorder %v1791, %v1850
  %vm1857 = vcmp.lt.s32.totalorder %v1792, %v1850
  %vm1858 = vcmp.lt.s32.totalorder %v1793, %v1850
  %vm1859 = vcmp.lt.s32.totalorder %v1794, %v1850
  %vm1860 = vcmp.lt.s32.totalorder %v1795, %v1850
  %vm1861 = vcmp.lt.s32.totalorder %v1796, %v1850
  %vm1862 = vcmp.lt.s32.totalorder %v1797, %v1850
  %vm1863 = vcmp.lt.s32.totalorder %v1798, %v1850
  %vm1864 = vcmp.lt.s32.totalorder %v1799, %v1850
  %vm1865 = vcmp.lt.s32.totalorder %v1800, %v1850
  %vm1866 = vcmp.lt.s32.totalorder %v1801, %v1850
  %vm1867 = vcmp.lt.s32.totalorder %v1802, %v1850
  %vm1868 = vcmp.lt.s32.totalorder %v1803, %v1850
  %vm1869 = vcmp.lt.s32.totalorder %v1804, %v1850
  %vm1870 = vcmp.lt.s32.totalorder %v1805, %v1850
  %vm1871 = vcmp.lt.s32.totalorder %v1806, %v1850
  %vm1872 = vcmp.lt.s32.totalorder %v1807, %v1850
  %vm1873 = vcmp.lt.s32.totalorder %v1808, %v1850
  %vm1874 = vcmp.lt.s32.totalorder %v1809, %v1850
  %vm1875 = vcmp.lt.s32.totalorder %v1810, %v1850
  %vm1876 = vcmp.lt.s32.totalorder %v1811, %v1850
  %vm1877 = vcmp.lt.s32.totalorder %v1812, %v1850
  %vm1878 = vcmp.lt.s32.totalorder %v1813, %v1850
  %vm1879 = vcmp.lt.s32.totalorder %v1814, %v1850
  %vm1880 = vcmp.lt.s32.totalorder %v1815, %v1850
  %vm1881 = vcmp.lt.s32.totalorder %v1816, %v1850
  %vm1882 = vcmp.lt.s32.totalorder %v1817, %v1850
  %vm1883 = vcmp.lt.s32.totalorder %v1818, %v1850
  %vm1884 = vcmp.lt.s32.totalorder %v1819, %v1850
  %vm1885 = vcmp.lt.s32.totalorder %v1820, %v1850
  %vm1886 = vcmp.lt.s32.totalorder %v1821, %v1850
  %vm1887 = vcmp.lt.s32.totalorder %v1822, %v1850
  %vm1888 = vcmp.lt.s32.totalorder %v1823, %v1850
  %vm1889 = vcmp.lt.s32.totalorder %v1824, %v1850
  %vm1890 = vcmp.lt.s32.totalorder %v1825, %v1850
  %vm1891 = vcmp.lt.s32.totalorder %v1826, %v1850
  %vm1892 = vcmp.lt.s32.totalorder %v1827, %v1850
  %vm1893 = vcmp.lt.s32.totalorder %v1828, %v1850
  %vm1894 = vcmp.lt.s32.totalorder %v1829, %v1850
  %vm1895 = vcmp.lt.s32.totalorder %v1830, %v1850
  %vm1896 = vcmp.lt.s32.totalorder %v1831, %v1850
  %vm1897 = vcmp.lt.s32.totalorder %v1832, %v1850
  %vm1898 = vcmp.lt.s32.totalorder %v1833, %v1850
  %vm1899 = vcmp.lt.s32.totalorder %v1834, %v1850
  %vm1900 = vcmp.lt.s32.totalorder %v1835, %v1850
  %vm1901 = vcmp.lt.s32.totalorder %v1836, %v1850
  %vm1902 = vcmp.lt.s32.totalorder %v1837, %v1850
  %vm1903 = vcmp.lt.s32.totalorder %v1838, %v1850
  %vm1904 = vcmp.lt.s32.totalorder %v1839, %v1850
  %vm1905 = vcmp.lt.s32.totalorder %v1840, %v1850
  %vm1906 = vcmp.lt.s32.totalorder %v1841, %v1850
  %vm1907 = vcmp.lt.s32.totalorder %v1842, %v1850
  %vm1908 = vcmp.lt.s32.totalorder %v1843, %v1850
  %vm1909 = vcmp.lt.s32.totalorder %v1844, %v1850
  %vm1910 = vcmp.lt.s32.totalorder %v1845, %v1850
  %vm1911 = vcmp.lt.s32.totalorder %v1846, %v1850
  %vm1912 = vcmp.lt.s32.totalorder %v1847, %v1850
  %vm1913 = vcmp.lt.s32.totalorder %v1848, %v1850
  %vm1914 = vcmp.lt.s32.totalorder %v1849, %v1850
  %v1915 = vsel %vm1851, %v1624, 0.0
  %v1916 = vsel %vm1852, %v1626, 0.0
  %v1917 = vsel %vm1853, %v1629, 0.0
  %v1918 = vsel %vm1854, %v1631, 0.0
  %v1919 = vsel %vm1855, %v1634, 0.0
  %v1920 = vsel %vm1856, %v1636, 0.0
  %v1921 = vsel %vm1857, %v1639, 0.0
  %v1922 = vsel %vm1858, %v1641, 0.0
  %v1923 = vsel %vm1859, %v1644, 0.0
  %v1924 = vsel %vm1860, %v1646, 0.0
  %v1925 = vsel %vm1861, %v1649, 0.0
  %v1926 = vsel %vm1862, %v1651, 0.0
  %v1927 = vsel %vm1863, %v1654, 0.0
  %v1928 = vsel %vm1864, %v1656, 0.0
  %v1929 = vsel %vm1865, %v1659, 0.0
  %v1930 = vsel %vm1866, %v1661, 0.0
  %v1931 = vsel %vm1867, %v1664, 0.0
  %v1932 = vsel %vm1868, %v1666, 0.0
  %v1933 = vsel %vm1869, %v1669, 0.0
  %v1934 = vsel %vm1870, %v1671, 0.0
  %v1935 = vsel %vm1871, %v1674, 0.0
  %v1936 = vsel %vm1872, %v1676, 0.0
  %v1937 = vsel %vm1873, %v1679, 0.0
  %v1938 = vsel %vm1874, %v1681, 0.0
  %v1939 = vsel %vm1875, %v1684, 0.0
  %v1940 = vsel %vm1876, %v1686, 0.0
  %v1941 = vsel %vm1877, %v1689, 0.0
  %v1942 = vsel %vm1878, %v1691, 0.0
  %v1943 = vsel %vm1879, %v1694, 0.0
  %v1944 = vsel %vm1880, %v1696, 0.0
  %v1945 = vsel %vm1881, %v1699, 0.0
  %v1946 = vsel %vm1882, %v1701, 0.0
  %v1947 = vsel %vm1883, %v1704, 0.0
  %v1948 = vsel %vm1884, %v1706, 0.0
  %v1949 = vsel %vm1885, %v1709, 0.0
  %v1950 = vsel %vm1886, %v1711, 0.0
  %v1951 = vsel %vm1887, %v1714, 0.0
  %v1952 = vsel %vm1888, %v1716, 0.0
  %v1953 = vsel %vm1889, %v1719, 0.0
  %v1954 = vsel %vm1890, %v1721, 0.0
  %v1955 = vsel %vm1891, %v1724, 0.0
  %v1956 = vsel %vm1892, %v1726, 0.0
  %v1957 = vsel %vm1893, %v1729, 0.0
  %v1958 = vsel %vm1894, %v1731, 0.0
  %v1959 = vsel %vm1895, %v1734, 0.0
  %v1960 = vsel %vm1896, %v1736, 0.0
  %v1961 = vsel %vm1897, %v1739, 0.0
  %v1962 = vsel %vm1898, %v1741, 0.0
  %v1963 = vsel %vm1899, %v1744, 0.0
  %v1964 = vsel %vm1900, %v1746, 0.0
  %v1965 = vsel %vm1901, %v1749, 0.0
  %v1966 = vsel %vm1902, %v1751, 0.0
  %v1967 = vsel %vm1903, %v1754, 0.0
  %v1968 = vsel %vm1904, %v1756, 0.0
  %v1969 = vsel %vm1905, %v1759, 0.0
  %v1970 = vsel %vm1906, %v1761, 0.0
  %v1971 = vsel %vm1907, %v1764, 0.0
  %v1972 = vsel %vm1908, %v1766, 0.0
  %v1973 = vsel %vm1909, %v1769, 0.0
  %v1974 = vsel %vm1910, %v1771, 0.0
  %v1975 = vsel %vm1911, %v1774, 0.0
  %v1976 = vsel %vm1912, %v1776, 0.0
  %v1977 = vsel %vm1913, %v1779, 0.0
  %v1978 = vsel %vm1914, %v1781, 0.0
  %vm1979 = vcmask 64512
  %v1980 = vsel %vm1979, %v1915, 0.0
  %v1981 = vsel %vm1979, %v1916, 0.0
  %v1982 = vadd.f32 %v1980, %v1981
  %v1983 = vsel %vm1979, %v1917, 0.0
  %v1984 = vadd.f32 %v1982, %v1983
  %v1985 = vsel %vm1979, %v1918, 0.0
  %v1986 = vadd.f32 %v1984, %v1985
  %v1987 = vsel %vm1979, %v1919, 0.0
  %v1988 = vadd.f32 %v1986, %v1987
  %v1989 = vsel %vm1979, %v1920, 0.0
  %v1990 = vadd.f32 %v1988, %v1989
  %v1991 = vsel %vm1979, %v1921, 0.0
  %v1992 = vadd.f32 %v1990, %v1991
  %v1993 = vsel %vm1979, %v1922, 0.0
  %v1994 = vadd.f32 %v1992, %v1993
  %v1995 = vsel %vm1979, %v1923, 0.0
  %v1996 = vadd.f32 %v1994, %v1995
  %v1997 = vsel %vm1979, %v1924, 0.0
  %v1998 = vadd.f32 %v1996, %v1997
  %v1999 = vsel %vm1979, %v1925, 0.0
  %v2000 = vadd.f32 %v1998, %v1999
  %v2001 = vsel %vm1979, %v1926, 0.0
  %v2002 = vadd.f32 %v2000, %v2001
  %v2003 = vsel %vm1979, %v1927, 0.0
  %v2004 = vadd.f32 %v2002, %v2003
  %v2005 = vsel %vm1979, %v1928, 0.0
  %v2006 = vadd.f32 %v2004, %v2005
  %v2007 = vsel %vm1979, %v1929, 0.0
  %v2008 = vadd.f32 %v2006, %v2007
  %v2009 = vsel %vm1979, %v1930, 0.0
  %v2010 = vadd.f32 %v2008, %v2009
  %v2011 = vsel %vm1979, %v1931, 0.0
  %v2012 = vadd.f32 %v2010, %v2011
  %v2013 = vsel %vm1979, %v1932, 0.0
  %v2014 = vadd.f32 %v2012, %v2013
  %v2015 = vsel %vm1979, %v1933, 0.0
  %v2016 = vadd.f32 %v2014, %v2015
  %v2017 = vsel %vm1979, %v1934, 0.0
  %v2018 = vadd.f32 %v2016, %v2017
  %v2019 = vsel %vm1979, %v1935, 0.0
  %v2020 = vadd.f32 %v2018, %v2019
  %v2021 = vsel %vm1979, %v1936, 0.0
  %v2022 = vadd.f32 %v2020, %v2021
  %v2023 = vsel %vm1979, %v1937, 0.0
  %v2024 = vadd.f32 %v2022, %v2023
  %v2025 = vsel %vm1979, %v1938, 0.0
  %v2026 = vadd.f32 %v2024, %v2025
  %v2027 = vsel %vm1979, %v1939, 0.0
  %v2028 = vadd.f32 %v2026, %v2027
  %v2029 = vsel %vm1979, %v1940, 0.0
  %v2030 = vadd.f32 %v2028, %v2029
  %v2031 = vsel %vm1979, %v1941, 0.0
  %v2032 = vadd.f32 %v2030, %v2031
  %v2033 = vsel %vm1979, %v1942, 0.0
  %v2034 = vadd.f32 %v2032, %v2033
  %v2035 = vsel %vm1979, %v1943, 0.0
  %v2036 = vadd.f32 %v2034, %v2035
  %v2037 = vsel %vm1979, %v1944, 0.0
  %v2038 = vadd.f32 %v2036, %v2037
  %v2039 = vsel %vm1979, %v1945, 0.0
  %v2040 = vadd.f32 %v2038, %v2039
  %v2041 = vsel %vm1979, %v1946, 0.0
  %v2042 = vadd.f32 %v2040, %v2041
  %v2043 = vsel %vm1979, %v1947, 0.0
  %v2044 = vadd.f32 %v2042, %v2043
  %v2045 = vsel %vm1979, %v1948, 0.0
  %v2046 = vadd.f32 %v2044, %v2045
  %v2047 = vsel %vm1979, %v1949, 0.0
  %v2048 = vadd.f32 %v2046, %v2047
  %v2049 = vsel %vm1979, %v1950, 0.0
  %v2050 = vadd.f32 %v2048, %v2049
  %v2051 = vsel %vm1979, %v1951, 0.0
  %v2052 = vadd.f32 %v2050, %v2051
  %v2053 = vsel %vm1979, %v1952, 0.0
  %v2054 = vadd.f32 %v2052, %v2053
  %v2055 = vsel %vm1979, %v1953, 0.0
  %v2056 = vadd.f32 %v2054, %v2055
  %v2057 = vsel %vm1979, %v1954, 0.0
  %v2058 = vadd.f32 %v2056, %v2057
  %v2059 = vsel %vm1979, %v1955, 0.0
  %v2060 = vadd.f32 %v2058, %v2059
  %v2061 = vsel %vm1979, %v1956, 0.0
  %v2062 = vadd.f32 %v2060, %v2061
  %v2063 = vsel %vm1979, %v1957, 0.0
  %v2064 = vadd.f32 %v2062, %v2063
  %v2065 = vsel %vm1979, %v1958, 0.0
  %v2066 = vadd.f32 %v2064, %v2065
  %v2067 = vsel %vm1979, %v1959, 0.0
  %v2068 = vadd.f32 %v2066, %v2067
  %v2069 = vsel %vm1979, %v1960, 0.0
  %v2070 = vadd.f32 %v2068, %v2069
  %v2071 = vsel %vm1979, %v1961, 0.0
  %v2072 = vadd.f32 %v2070, %v2071
  %v2073 = vsel %vm1979, %v1962, 0.0
  %v2074 = vadd.f32 %v2072, %v2073
  %v2075 = vsel %vm1979, %v1963, 0.0
  %v2076 = vadd.f32 %v2074, %v2075
  %v2077 = vsel %vm1979, %v1964, 0.0
  %v2078 = vadd.f32 %v2076, %v2077
  %v2079 = vsel %vm1979, %v1965, 0.0
  %v2080 = vadd.f32 %v2078, %v2079
  %v2081 = vsel %vm1979, %v1966, 0.0
  %v2082 = vadd.f32 %v2080, %v2081
  %v2083 = vsel %vm1979, %v1967, 0.0
  %v2084 = vadd.f32 %v2082, %v2083
  %v2085 = vsel %vm1979, %v1968, 0.0
  %v2086 = vadd.f32 %v2084, %v2085
  %v2087 = vsel %vm1979, %v1969, 0.0
  %v2088 = vadd.f32 %v2086, %v2087
  %v2089 = vsel %vm1979, %v1970, 0.0
  %v2090 = vadd.f32 %v2088, %v2089
  %v2091 = vsel %vm1979, %v1971, 0.0
  %v2092 = vadd.f32 %v2090, %v2091
  %v2093 = vsel %vm1979, %v1972, 0.0
  %v2094 = vadd.f32 %v2092, %v2093
  %v2095 = vsel %vm1979, %v1973, 0.0
  %v2096 = vadd.f32 %v2094, %v2095
  %v2097 = vsel %vm1979, %v1974, 0.0
  %v2098 = vadd.f32 %v2096, %v2097
  %v2099 = vsel %vm1979, %v1975, 0.0
  %v2100 = vadd.f32 %v2098, %v2099
  %v2101 = vsel %vm1979, %v1976, 0.0
  %v2102 = vadd.f32 %v2100, %v2101
  %v2103 = vsel %vm1979, %v1977, 0.0
  %v2104 = vadd.f32 %v2102, %v2103
  %v2105 = vsel %vm1979, %v1978, 0.0
  %v2106 = vadd.f32 %v2104, %v2105
  %v2107 = vrot.slane %v2106, 4
  %v2108 = vadd.f32 %v2106, %v2107
  %v2109 = vrot.slane %v2108, 2
  %v2110 = vadd.f32 %v2108, %v2109
  %v2111 = vrot.slane %v2110, 1
  %v2112 = vadd.f32 %v2110, %v2111
  %v2113 = vmul.f32 %v1915, %v1915
  %v2114 = vmul.f32 %v1916, %v1916
  %v2115 = vmul.f32 %v1917, %v1917
  %v2116 = vmul.f32 %v1918, %v1918
  %v2117 = vmul.f32 %v1919, %v1919
  %v2118 = vmul.f32 %v1920, %v1920
  %v2119 = vmul.f32 %v1921, %v1921
  %v2120 = vmul.f32 %v1922, %v1922
  %v2121 = vmul.f32 %v1923, %v1923
  %v2122 = vmul.f32 %v1924, %v1924
  %v2123 = vmul.f32 %v1925, %v1925
  %v2124 = vmul.f32 %v1926, %v1926
  %v2125 = vmul.f32 %v1927, %v1927
  %v2126 = vmul.f32 %v1928, %v1928
  %v2127 = vmul.f32 %v1929, %v1929
  %v2128 = vmul.f32 %v1930, %v1930
  %v2129 = vmul.f32 %v1931, %v1931
  %v2130 = vmul.f32 %v1932, %v1932
  %v2131 = vmul.f32 %v1933, %v1933
  %v2132 = vmul.f32 %v1934, %v1934
  %v2133 = vmul.f32 %v1935, %v1935
  %v2134 = vmul.f32 %v1936, %v1936
  %v2135 = vmul.f32 %v1937, %v1937
  %v2136 = vmul.f32 %v1938, %v1938
  %v2137 = vmul.f32 %v1939, %v1939
  %v2138 = vmul.f32 %v1940, %v1940
  %v2139 = vmul.f32 %v1941, %v1941
  %v2140 = vmul.f32 %v1942, %v1942
  %v2141 = vmul.f32 %v1943, %v1943
  %v2142 = vmul.f32 %v1944, %v1944
  %v2143 = vmul.f32 %v1945, %v1945
  %v2144 = vmul.f32 %v1946, %v1946
  %v2145 = vmul.f32 %v1947, %v1947
  %v2146 = vmul.f32 %v1948, %v1948
  %v2147 = vmul.f32 %v1949, %v1949
  %v2148 = vmul.f32 %v1950, %v1950
  %v2149 = vmul.f32 %v1951, %v1951
  %v2150 = vmul.f32 %v1952, %v1952
  %v2151 = vmul.f32 %v1953, %v1953
  %v2152 = vmul.f32 %v1954, %v1954
  %v2153 = vmul.f32 %v1955, %v1955
  %v2154 = vmul.f32 %v1956, %v1956
  %v2155 = vmul.f32 %v1957, %v1957
  %v2156 = vmul.f32 %v1958, %v1958
  %v2157 = vmul.f32 %v1959, %v1959
  %v2158 = vmul.f32 %v1960, %v1960
  %v2159 = vmul.f32 %v1961, %v1961
  %v2160 = vmul.f32 %v1962, %v1962
  %v2161 = vmul.f32 %v1963, %v1963
  %v2162 = vmul.f32 %v1964, %v1964
  %v2163 = vmul.f32 %v1965, %v1965
  %v2164 = vmul.f32 %v1966, %v1966
  %v2165 = vmul.f32 %v1967, %v1967
  %v2166 = vmul.f32 %v1968, %v1968
  %v2167 = vmul.f32 %v1969, %v1969
  %v2168 = vmul.f32 %v1970, %v1970
  %v2169 = vmul.f32 %v1971, %v1971
  %v2170 = vmul.f32 %v1972, %v1972
  %v2171 = vmul.f32 %v1973, %v1973
  %v2172 = vmul.f32 %v1974, %v1974
  %v2173 = vmul.f32 %v1975, %v1975
  %v2174 = vmul.f32 %v1976, %v1976
  %v2175 = vmul.f32 %v1977, %v1977
  %v2176 = vmul.f32 %v1978, %v1978
  %v2177 = vsel %vm1979, %v2113, 0.0
  %v2178 = vsel %vm1979, %v2114, 0.0
  %v2179 = vadd.f32 %v2177, %v2178
  %v2180 = vsel %vm1979, %v2115, 0.0
  %v2181 = vadd.f32 %v2179, %v2180
  %v2182 = vsel %vm1979, %v2116, 0.0
  %v2183 = vadd.f32 %v2181, %v2182
  %v2184 = vsel %vm1979, %v2117, 0.0
  %v2185 = vadd.f32 %v2183, %v2184
  %v2186 = vsel %vm1979, %v2118, 0.0
  %v2187 = vadd.f32 %v2185, %v2186
  %v2188 = vsel %vm1979, %v2119, 0.0
  %v2189 = vadd.f32 %v2187, %v2188
  %v2190 = vsel %vm1979, %v2120, 0.0
  %v2191 = vadd.f32 %v2189, %v2190
  %v2192 = vsel %vm1979, %v2121, 0.0
  %v2193 = vadd.f32 %v2191, %v2192
  %v2194 = vsel %vm1979, %v2122, 0.0
  %v2195 = vadd.f32 %v2193, %v2194
  %v2196 = vsel %vm1979, %v2123, 0.0
  %v2197 = vadd.f32 %v2195, %v2196
  %v2198 = vsel %vm1979, %v2124, 0.0
  %v2199 = vadd.f32 %v2197, %v2198
  %v2200 = vsel %vm1979, %v2125, 0.0
  %v2201 = vadd.f32 %v2199, %v2200
  %v2202 = vsel %vm1979, %v2126, 0.0
  %v2203 = vadd.f32 %v2201, %v2202
  %v2204 = vsel %vm1979, %v2127, 0.0
  %v2205 = vadd.f32 %v2203, %v2204
  %v2206 = vsel %vm1979, %v2128, 0.0
  %v2207 = vadd.f32 %v2205, %v2206
  %v2208 = vsel %vm1979, %v2129, 0.0
  %v2209 = vadd.f32 %v2207, %v2208
  %v2210 = vsel %vm1979, %v2130, 0.0
  %v2211 = vadd.f32 %v2209, %v2210
  %v2212 = vsel %vm1979, %v2131, 0.0
  %v2213 = vadd.f32 %v2211, %v2212
  %v2214 = vsel %vm1979, %v2132, 0.0
  %v2215 = vadd.f32 %v2213, %v2214
  %v2216 = vsel %vm1979, %v2133, 0.0
  %v2217 = vadd.f32 %v2215, %v2216
  %v2218 = vsel %vm1979, %v2134, 0.0
  %v2219 = vadd.f32 %v2217, %v2218
  %v2220 = vsel %vm1979, %v2135, 0.0
  %v2221 = vadd.f32 %v2219, %v2220
  %v2222 = vsel %vm1979, %v2136, 0.0
  %v2223 = vadd.f32 %v2221, %v2222
  %v2224 = vsel %vm1979, %v2137, 0.0
  %v2225 = vadd.f32 %v2223, %v2224
  %v2226 = vsel %vm1979, %v2138, 0.0
  %v2227 = vadd.f32 %v2225, %v2226
  %v2228 = vsel %vm1979, %v2139, 0.0
  %v2229 = vadd.f32 %v2227, %v2228
  %v2230 = vsel %vm1979, %v2140, 0.0
  %v2231 = vadd.f32 %v2229, %v2230
  %v2232 = vsel %vm1979, %v2141, 0.0
  %v2233 = vadd.f32 %v2231, %v2232
  %v2234 = vsel %vm1979, %v2142, 0.0
  %v2235 = vadd.f32 %v2233, %v2234
  %v2236 = vsel %vm1979, %v2143, 0.0
  %v2237 = vadd.f32 %v2235, %v2236
  %v2238 = vsel %vm1979, %v2144, 0.0
  %v2239 = vadd.f32 %v2237, %v2238
  %v2240 = vsel %vm1979, %v2145, 0.0
  %v2241 = vadd.f32 %v2239, %v2240
  %v2242 = vsel %vm1979, %v2146, 0.0
  %v2243 = vadd.f32 %v2241, %v2242
  %v2244 = vsel %vm1979, %v2147, 0.0
  %v2245 = vadd.f32 %v2243, %v2244
  %v2246 = vsel %vm1979, %v2148, 0.0
  %v2247 = vadd.f32 %v2245, %v2246
  %v2248 = vsel %vm1979, %v2149, 0.0
  %v2249 = vadd.f32 %v2247, %v2248
  %v2250 = vsel %vm1979, %v2150, 0.0
  %v2251 = vadd.f32 %v2249, %v2250
  %v2252 = vsel %vm1979, %v2151, 0.0
  %v2253 = vadd.f32 %v2251, %v2252
  %v2254 = vsel %vm1979, %v2152, 0.0
  %v2255 = vadd.f32 %v2253, %v2254
  %v2256 = vsel %vm1979, %v2153, 0.0
  %v2257 = vadd.f32 %v2255, %v2256
  %v2258 = vsel %vm1979, %v2154, 0.0
  %v2259 = vadd.f32 %v2257, %v2258
  %v2260 = vsel %vm1979, %v2155, 0.0
  %v2261 = vadd.f32 %v2259, %v2260
  %v2262 = vsel %vm1979, %v2156, 0.0
  %v2263 = vadd.f32 %v2261, %v2262
  %v2264 = vsel %vm1979, %v2157, 0.0
  %v2265 = vadd.f32 %v2263, %v2264
  %v2266 = vsel %vm1979, %v2158, 0.0
  %v2267 = vadd.f32 %v2265, %v2266
  %v2268 = vsel %vm1979, %v2159, 0.0
  %v2269 = vadd.f32 %v2267, %v2268
  %v2270 = vsel %vm1979, %v2160, 0.0
  %v2271 = vadd.f32 %v2269, %v2270
  %v2272 = vsel %vm1979, %v2161, 0.0
  %v2273 = vadd.f32 %v2271, %v2272
  %v2274 = vsel %vm1979, %v2162, 0.0
  %v2275 = vadd.f32 %v2273, %v2274
  %v2276 = vsel %vm1979, %v2163, 0.0
  %v2277 = vadd.f32 %v2275, %v2276
  %v2278 = vsel %vm1979, %v2164, 0.0
  %v2279 = vadd.f32 %v2277, %v2278
  %v2280 = vsel %vm1979, %v2165, 0.0
  %v2281 = vadd.f32 %v2279, %v2280
  %v2282 = vsel %vm1979, %v2166, 0.0
  %v2283 = vadd.f32 %v2281, %v2282
  %v2284 = vsel %vm1979, %v2167, 0.0
  %v2285 = vadd.f32 %v2283, %v2284
  %v2286 = vsel %vm1979, %v2168, 0.0
  %v2287 = vadd.f32 %v2285, %v2286
  %v2288 = vsel %vm1979, %v2169, 0.0
  %v2289 = vadd.f32 %v2287, %v2288
  %v2290 = vsel %vm1979, %v2170, 0.0
  %v2291 = vadd.f32 %v2289, %v2290
  %v2292 = vsel %vm1979, %v2171, 0.0
  %v2293 = vadd.f32 %v2291, %v2292
  %v2294 = vsel %vm1979, %v2172, 0.0
  %v2295 = vadd.f32 %v2293, %v2294
  %v2296 = vsel %vm1979, %v2173, 0.0
  %v2297 = vadd.f32 %v2295, %v2296
  %v2298 = vsel %vm1979, %v2174, 0.0
  %v2299 = vadd.f32 %v2297, %v2298
  %v2300 = vsel %vm1979, %v2175, 0.0
  %v2301 = vadd.f32 %v2299, %v2300
  %v2302 = vsel %vm1979, %v2176, 0.0
  %v2303 = vadd.f32 %v2301, %v2302
  %v2304 = vrot.slane %v2303, 4
  %v2305 = vadd.f32 %v2303, %v2304
  %v2306 = vrot.slane %v2305, 2
  %v2307 = vadd.f32 %v2305, %v2306
  %v2308 = vrot.slane %v2307, 1
  %v2309 = vadd.f32 %v2307, %v2308
  %vm2310 = vcmp.eq.s32.totalorder %v1786, 0
  %v2311 = vsel %vm2310, %v2112, 0.0
  %vm2312 = vcmp.eq.s32.totalorder %v1786, 1
  %v2313 = vsel %vm2312, %v2309, 0.0
  %v2314 = vadd.f32 %v2311, %v2313
  %2315 = vst.msk [vmem:[%s6] sm:$0xff] %vm1979, %v2314
  %2316 = vst.msk [vmem:[%s5] sm:$0xff] %vm1979, %v1624
  %2317 = vst.msk [vmem:[%s5 + $0x8] sm:$0xff] %vm1979, %v1626
  %2318 = vst.msk [vmem:[%s5 + $0x10] sm:$0xff] %vm1979, %v1629
  %2319 = vst.msk [vmem:[%s5 + $0x18] sm:$0xff] %vm1979, %v1631
  %2320 = vst.msk [vmem:[%s5 + $0x20] sm:$0xff] %vm1979, %v1634
  %2321 = vst.msk [vmem:[%s5 + $0x28] sm:$0xff] %vm1979, %v1636
  %2322 = vst.msk [vmem:[%s5 + $0x30] sm:$0xff] %vm1979, %v1639
  %2323 = vst.msk [vmem:[%s5 + $0x38] sm:$0xff] %vm1979, %v1641
  %2324 = vst.msk [vmem:[%s5 + $0x40] sm:$0xff] %vm1979, %v1644
  %2325 = vst.msk [vmem:[%s5 + $0x48] sm:$0xff] %vm1979, %v1646
  %2326 = vst.msk [vmem:[%s5 + $0x50] sm:$0xff] %vm1979, %v1649
  %2327 = vst.msk [vmem:[%s5 + $0x58] sm:$0xff] %vm1979, %v1651
  %2328 = vst.msk [vmem:[%s5 + $0x60] sm:$0xff] %vm1979, %v1654
  %2329 = vst.msk [vmem:[%s5 + $0x68] sm:$0xff] %vm1979, %v1656
  %2330 = vst.msk [vmem:[%s5 + $0x70] sm:$0xff] %vm1979, %v1659
  %2331 = vst.msk [vmem:[%s5 + $0x78] sm:$0xff] %vm1979, %v1661
  %2332 = vst.msk [vmem:[%s5 + $0x80] sm:$0xff] %vm1979, %v1664
  %2333 = vst.msk [vmem:[%s5 + $0x88] sm:$0xff] %vm1979, %v1666
  %2334 = vst.msk [vmem:[%s5 + $0x90] sm:$0xff] %vm1979, %v1669
  %2335 = vst.msk [vmem:[%s5 + $0x98] sm:$0xff] %vm1979, %v1671
  %2336 = vst.msk [vmem:[%s5 + $0xa0] sm:$0xff] %vm1979, %v1674
  %2337 = vst.msk [vmem:[%s5 + $0xa8] sm:$0xff] %vm1979, %v1676
  %2338 = vst.msk [vmem:[%s5 + $0xb0] sm:$0xff] %vm1979, %v1679
  %2339 = vst.msk [vmem:[%s5 + $0xb8] sm:$0xff] %vm1979, %v1681
  %2340 = vst.msk [vmem:[%s5 + $0xc0] sm:$0xff] %vm1979, %v1684
  %2341 = vst.msk [vmem:[%s5 + $0xc8] sm:$0xff] %vm1979, %v1686
  %2342 = vst.msk [vmem:[%s5 + $0xd0] sm:$0xff] %vm1979, %v1689
  %2343 = vst.msk [vmem:[%s5 + $0xd8] sm:$0xff] %vm1979, %v1691
  %2344 = vst.msk [vmem:[%s5 + $0xe0] sm:$0xff] %vm1979, %v1694
  %2345 = vst.msk [vmem:[%s5 + $0xe8] sm:$0xff] %vm1979, %v1696
  %2346 = vst.msk [vmem:[%s5 + $0xf0] sm:$0xff] %vm1979, %v1699
  %2347 = vst.msk [vmem:[%s5 + $0xf8] sm:$0xff] %vm1979, %v1701
  %2348 = vst.msk [vmem:[%s5 + $0x100] sm:$0xff] %vm1979, %v1704
  %2349 = vst.msk [vmem:[%s5 + $0x108] sm:$0xff] %vm1979, %v1706
  %2350 = vst.msk [vmem:[%s5 + $0x110] sm:$0xff] %vm1979, %v1709
  %2351 = vst.msk [vmem:[%s5 + $0x118] sm:$0xff] %vm1979, %v1711
  %2352 = vst.msk [vmem:[%s5 + $0x120] sm:$0xff] %vm1979, %v1714
  %2353 = vst.msk [vmem:[%s5 + $0x128] sm:$0xff] %vm1979, %v1716
  %2354 = vst.msk [vmem:[%s5 + $0x130] sm:$0xff] %vm1979, %v1719
  %2355 = vst.msk [vmem:[%s5 + $0x138] sm:$0xff] %vm1979, %v1721
  %2356 = vst.msk [vmem:[%s5 + $0x140] sm:$0xff] %vm1979, %v1724
  %2357 = vst.msk [vmem:[%s5 + $0x148] sm:$0xff] %vm1979, %v1726
  %2358 = vst.msk [vmem:[%s5 + $0x150] sm:$0xff] %vm1979, %v1729
  %2359 = vst.msk [vmem:[%s5 + $0x158] sm:$0xff] %vm1979, %v1731
  %2360 = vst.msk [vmem:[%s5 + $0x160] sm:$0xff] %vm1979, %v1734
  %2361 = vst.msk [vmem:[%s5 + $0x168] sm:$0xff] %vm1979, %v1736
  %2362 = vst.msk [vmem:[%s5 + $0x170] sm:$0xff] %vm1979, %v1739
  %2363 = vst.msk [vmem:[%s5 + $0x178] sm:$0xff] %vm1979, %v1741
  %2364 = vst.msk [vmem:[%s5 + $0x180] sm:$0xff] %vm1979, %v1744
  %2365 = vst.msk [vmem:[%s5 + $0x188] sm:$0xff] %vm1979, %v1746
  %2366 = vst.msk [vmem:[%s5 + $0x190] sm:$0xff] %vm1979, %v1749
  %2367 = vst.msk [vmem:[%s5 + $0x198] sm:$0xff] %vm1979, %v1751
  %2368 = vst.msk [vmem:[%s5 + $0x1a0] sm:$0xff] %vm1979, %v1754
  %2369 = vst.msk [vmem:[%s5 + $0x1a8] sm:$0xff] %vm1979, %v1756
  %2370 = vst.msk [vmem:[%s5 + $0x1b0] sm:$0xff] %vm1979, %v1759
  %2371 = vst.msk [vmem:[%s5 + $0x1b8] sm:$0xff] %vm1979, %v1761
  %2372 = vst.msk [vmem:[%s5 + $0x1c0] sm:$0xff] %vm1979, %v1764
  %2373 = vst.msk [vmem:[%s5 + $0x1c8] sm:$0xff] %vm1979, %v1766
  %2374 = vst.msk [vmem:[%s5 + $0x1d0] sm:$0xff] %vm1979, %v1769
  %2375 = vst.msk [vmem:[%s5 + $0x1d8] sm:$0xff] %vm1979, %v1771
  %2376 = vst.msk [vmem:[%s5 + $0x1e0] sm:$0xff] %vm1979, %v1774
  %2377 = vst.msk [vmem:[%s5 + $0x1e8] sm:$0xff] %vm1979, %v1776
  %2378 = vst.msk [vmem:[%s5 + $0x1f0] sm:$0xff] %vm1979, %v1779
  %2379 = vst.msk [vmem:[%s5 + $0x1f8] sm:$0xff] %vm1979, %v1781
  // Predicated region
  $region22: #{resnet_forward.16} parent=0 // pred_check
    _
  $region23: #{resnet_forward.16} parent=0 // pred_check_branch
    %2381 = sbr.rel (0) target = $region25
  $region24: #{resnet_forward.16} parent=0 // pred_region
    _
  $region25: #{resnet_forward.16} parent=0 // pred_fallthru
    _
  // Predicated region
  $region26: #{resnet_forward.16} parent=0 // pred_check
    _
  $region27: #{resnet_forward.16} parent=0 // pred_check_branch
    %2383 = sbr.rel (0) target = $region29
  $region28: #{resnet_forward.16} parent=0 // pred_region
    _
  $region29: #{resnet_forward.16} parent=0 // pred_fallthru
    _
  // Predicated region
  $region30: #{resnet_forward.16} parent=0 // pred_check
    _
  $region31: #{resnet_forward.16} parent=0 // pred_check_branch
    %2385 = sbr.rel (0) target = $region33
  $region32: #{resnet_forward.16} parent=0 // pred_region
    _
  $region33: #{resnet_forward.16} parent=0 // pred_fallthru
    _
  // Predicated region
  $region34: #{resnet_forward.16} parent=0 // pred_check
    _
  $region35: #{resnet_forward.16} parent=0 // pred_check_branch
    %2387 = sbr.rel (0) target = $region37
  $region36: #{resnet_forward.16} parent=0 // pred_region
    _
  $region37: #{resnet_forward.16} parent=0 // pred_fallthru
    _

// kernel: resnet_forward.27
$region0: #{resnet_forward.27}
  #allocation0 [shape = 'u32[]', space=smem, size = 0x4, offset = 0x4, fixed_abs, tag = 'smem constant byte address 0x4 - core index']
  #allocation1 [shape = 'u32[72,128]{1,0:T(1,128)}', space=vmem, size = 0x9000, scoped, tag = 'internal scratch']
  %s0 = inlined_call_operand.vmem [shape: bf16[512,72], index: 0, kind: input, shape index: {}]
  %s1 = inlined_call_operand.vmem [shape: bf16[72,3], index: 1, kind: input, shape index: {}]
  %s2 = inlined_call_operand.vmem [shape: f32[1,3], index: 2, kind: input, shape index: {}]
  %s3 = inlined_call_operand.vmem [shape: f32[512,3], index: 3, kind: output, shape index: {}]
  %s4 = sld [smem:[#allocation0]]
  $region22: #{resnet_forward.27} parent=0
    _
  %s6 = ssub.s32 1, %s4
  %s7 = scalar_select 0, %s6, %s4
  // Predicated region
  $region2: #{resnet_forward.27} parent=0 // pred_check
    _
  $region3: #{resnet_forward.27} parent=0 // pred_check_branch
    %9 = sbr.rel (0) target = $region5
  $region4: #{resnet_forward.27} parent=0 // pred_region
    _
  $region5: #{resnet_forward.27} parent=0 // pred_fallthru
    _
  // Predicated region
  $region6: #{resnet_forward.27} parent=0 // pred_check
    _
  $region7: #{resnet_forward.27} parent=0 // pred_check_branch
    %11 = sbr.rel (0) target = $region9
  $region8: #{resnet_forward.27} parent=0 // pred_region
    _
  $region9: #{resnet_forward.27} parent=0 // pred_fallthru
    _
  // Predicated region
  $region10: #{resnet_forward.27} parent=0 // pred_check
    _
  $region11: #{resnet_forward.27} parent=0 // pred_check_branch
    %13 = sbr.rel (0) target = $region13
  $region12: #{resnet_forward.27} parent=0 // pred_region
    _
  $region13: #{resnet_forward.27} parent=0 // pred_fallthru
    _
  %v15 = vld [vmem:[%s0] sm:$0xf]
  %v16 = vld [vmem:[%s0 + $0x4] sm:$0xf]
  %v17 = vld [vmem:[%s0 + $0x8] sm:$0xf]
  %v18 = vld [vmem:[%s0 + $0xc] sm:$0xf]
  %v19 = vld [vmem:[%s0 + $0x10] sm:$0xf]
  %v20 = vld [vmem:[%s0 + $0x14] sm:$0xf]
  %v21 = vld [vmem:[%s0 + $0x18] sm:$0xf]
  %v22 = vld [vmem:[%s0 + $0x1c] sm:$0xf]
  %v23 = vld [vmem:[%s0 + $0x20] sm:$0xf]
  %v24 = vld [vmem:[%s0 + $0x24] sm:$0xf]
  %v25 = vld [vmem:[%s0 + $0x28] sm:$0xf]
  %v26 = vld [vmem:[%s0 + $0x2c] sm:$0xf]
  %v27 = vld [vmem:[%s0 + $0x30] sm:$0xf]
  %v28 = vld [vmem:[%s0 + $0x34] sm:$0xf]
  %v29 = vld [vmem:[%s0 + $0x38] sm:$0xf]
  %v30 = vld [vmem:[%s0 + $0x3c] sm:$0xf]
  %v31 = vld [vmem:[%s0 + $0x40] sm:$0xf]
  %v32 = vld [vmem:[%s0 + $0x44] sm:$0xf]
  %v33 = vld [vmem:[%s0 + $0x48] sm:$0xf]
  %v34 = vld [vmem:[%s0 + $0x4c] sm:$0xf]
  %v35 = vld [vmem:[%s0 + $0x50] sm:$0xf]
  %v36 = vld [vmem:[%s0 + $0x54] sm:$0xf]
  %v37 = vld [vmem:[%s0 + $0x58] sm:$0xf]
  %v38 = vld [vmem:[%s0 + $0x5c] sm:$0xf]
  %v39 = vld [vmem:[%s0 + $0x60] sm:$0xf]
  %v40 = vld [vmem:[%s0 + $0x64] sm:$0xf]
  %v41 = vld [vmem:[%s0 + $0x68] sm:$0xf]
  %v42 = vld [vmem:[%s0 + $0x6c] sm:$0xf]
  %v43 = vld [vmem:[%s0 + $0x70] sm:$0xf]
  %v44 = vld [vmem:[%s0 + $0x74] sm:$0xf]
  %v45 = vld [vmem:[%s0 + $0x78] sm:$0xf]
  %v46 = vld [vmem:[%s0 + $0x7c] sm:$0xf]
  %v47 = vld [vmem:[%s0 + $0x80] sm:$0xf]
  %v48 = vld [vmem:[%s0 + $0x84] sm:$0xf]
  %v49 = vld [vmem:[%s0 + $0x88] sm:$0xf]
  %v50 = vld [vmem:[%s0 + $0x8c] sm:$0xf]
  %v51 = vld [vmem:[%s0 + $0x90] sm:$0xf]
  %v52 = vld [vmem:[%s0 + $0x94] sm:$0xf]
  %v53 = vld [vmem:[%s0 + $0x98] sm:$0xf]
  %v54 = vld [vmem:[%s0 + $0x9c] sm:$0xf]
  %v55 = vld [vmem:[%s0 + $0xa0] sm:$0xf]
  %v56 = vld [vmem:[%s0 + $0xa4] sm:$0xf]
  %v57 = vld [vmem:[%s0 + $0xa8] sm:$0xf]
  %v58 = vld [vmem:[%s0 + $0xac] sm:$0xf]
  %v59 = vld [vmem:[%s0 + $0xb0] sm:$0xf]
  %v60 = vld [vmem:[%s0 + $0xb4] sm:$0xf]
  %v61 = vld [vmem:[%s0 + $0xb8] sm:$0xf]
  %v62 = vld [vmem:[%s0 + $0xbc] sm:$0xf]
  %v63 = vld [vmem:[%s0 + $0xc0] sm:$0xf]
  %v64 = vld [vmem:[%s0 + $0xc4] sm:$0xf]
  %v65 = vld [vmem:[%s0 + $0xc8] sm:$0xf]
  %v66 = vld [vmem:[%s0 + $0xcc] sm:$0xf]
  %v67 = vld [vmem:[%s0 + $0xd0] sm:$0xf]
  %v68 = vld [vmem:[%s0 + $0xd4] sm:$0xf]
  %v69 = vld [vmem:[%s0 + $0xd8] sm:$0xf]
  %v70 = vld [vmem:[%s0 + $0xdc] sm:$0xf]
  %v71 = vld [vmem:[%s0 + $0xe0] sm:$0xf]
  %v72 = vld [vmem:[%s0 + $0xe4] sm:$0xf]
  %v73 = vld [vmem:[%s0 + $0xe8] sm:$0xf]
  %v74 = vld [vmem:[%s0 + $0xec] sm:$0xf]
  %v75 = vld [vmem:[%s0 + $0xf0] sm:$0xf]
  %v76 = vld [vmem:[%s0 + $0xf4] sm:$0xf]
  %v77 = vld [vmem:[%s0 + $0xf8] sm:$0xf]
  %v78 = vld [vmem:[%s0 + $0xfc] sm:$0xf]
  %v79 = vld [vmem:[%s1] sm:$0xf]
  %v80 = vld [vmem:[%s1 + $0x4] sm:$0xf]
  %v81 = vld [vmem:[%s1 + $0x8] sm:$0xf]
  %v82 = vld [vmem:[%s1 + $0xc] sm:$0xf]
  %v83 = vld [vmem:[%s1 + $0x10] sm:$0xf]
  %v84 = vld [vmem:[%s1 + $0x14] sm:$0xf]
  %v85 = vld [vmem:[%s1 + $0x18] sm:$0xf]
  %v86 = vld [vmem:[%s1 + $0x1c] sm:$0xf]
  %v87 = vld [vmem:[%s1 + $0x20] sm:$0xf]
  %v88 = vld [vmem:[%s2] sm:$0x1]
  %v90 = vperm.slane %v88, 0
  %v156 = vunpack.c.l.b16 %v15
  %v157 = vunpack.c.l.b16 %v16
  %v158 = vunpack.c.l.b16 %v17
  %v159 = vunpack.c.l.b16 %v18
  %v160 = vunpack.c.l.b16 %v19
  %v161 = vunpack.c.l.b16 %v20
  %v162 = vunpack.c.l.b16 %v21
  %v163 = vunpack.c.l.b16 %v22
  %v164 = vunpack.c.l.b16 %v23
  %v165 = vunpack.c.l.b16 %v24
  %v166 = vunpack.c.l.b16 %v25
  %v167 = vunpack.c.l.b16 %v26
  %v168 = vunpack.c.l.b16 %v27
  %v169 = vunpack.c.l.b16 %v28
  %v170 = vunpack.c.l.b16 %v29
  %v171 = vunpack.c.l.b16 %v30
  %v172 = vunpack.c.l.b16 %v31
  %v173 = vunpack.c.l.b16 %v32
  %v174 = vunpack.c.l.b16 %v33
  %v175 = vunpack.c.l.b16 %v34
  %v176 = vunpack.c.l.b16 %v35
  %v177 = vunpack.c.l.b16 %v36
  %v178 = vunpack.c.l.b16 %v37
  %v179 = vunpack.c.l.b16 %v38
  %v180 = vunpack.c.l.b16 %v39
  %v181 = vunpack.c.l.b16 %v40
  %v182 = vunpack.c.l.b16 %v41
  %v183 = vunpack.c.l.b16 %v42
  %v184 = vunpack.c.l.b16 %v43
  %v185 = vunpack.c.l.b16 %v44
  %v186 = vunpack.c.l.b16 %v45
  %v187 = vunpack.c.l.b16 %v46
  %v188 = vunpack.c.l.b16 %v47
  %v189 = vunpack.c.l.b16 %v48
  %v190 = vunpack.c.l.b16 %v49
  %v191 = vunpack.c.l.b16 %v50
  %v192 = vunpack.c.l.b16 %v51
  %v193 = vunpack.c.l.b16 %v52
  %v194 = vunpack.c.l.b16 %v53
  %v195 = vunpack.c.l.b16 %v54
  %v196 = vunpack.c.l.b16 %v55
  %v197 = vunpack.c.l.b16 %v56
  %v198 = vunpack.c.l.b16 %v57
  %v199 = vunpack.c.l.b16 %v58
  %v200 = vunpack.c.l.b16 %v59
  %v201 = vunpack.c.l.b16 %v60
  %v202 = vunpack.c.l.b16 %v61
  %v203 = vunpack.c.l.b16 %v62
  %v204 = vunpack.c.l.b16 %v63
  %v205 = vunpack.c.l.b16 %v64
  %v206 = vunpack.c.l.b16 %v65
  %v207 = vunpack.c.l.b16 %v66
  %v208 = vunpack.c.l.b16 %v67
  %v209 = vunpack.c.l.b16 %v68
  %v210 = vunpack.c.l.b16 %v69
  %v211 = vunpack.c.l.b16 %v70
  %v212 = vunpack.c.l.b16 %v71
  %v213 = vunpack.c.l.b16 %v72
  %v214 = vunpack.c.l.b16 %v73
  %v215 = vunpack.c.l.b16 %v74
  %v216 = vunpack.c.l.b16 %v75
  %v217 = vunpack.c.l.b16 %v76
  %v218 = vunpack.c.l.b16 %v77
  %v219 = vunpack.c.l.b16 %v78
  %v220 = vpack.c.b16 %v157, %v156
  %v221 = vpack.c.b16 %v159, %v158
  %v222 = vpack.c.b16 %v161, %v160
  %v223 = vpack.c.b16 %v163, %v162
  %v224 = vpack.c.b16 %v165, %v164
  %v225 = vpack.c.b16 %v167, %v166
  %v226 = vpack.c.b16 %v169, %v168
  %v227 = vpack.c.b16 %v171, %v170
  %v228 = vpack.c.b16 %v173, %v172
  %v229 = vpack.c.b16 %v175, %v174
  %v230 = vpack.c.b16 %v177, %v176
  %v231 = vpack.c.b16 %v179, %v178
  %v232 = vpack.c.b16 %v181, %v180
  %v233 = vpack.c.b16 %v183, %v182
  %v234 = vpack.c.b16 %v185, %v184
  %v235 = vpack.c.b16 %v187, %v186
  %v236 = vpack.c.b16 %v189, %v188
  %v237 = vpack.c.b16 %v191, %v190
  %v238 = vpack.c.b16 %v193, %v192
  %v239 = vpack.c.b16 %v195, %v194
  %v240 = vpack.c.b16 %v197, %v196
  %v241 = vpack.c.b16 %v199, %v198
  %v242 = vpack.c.b16 %v201, %v200
  %v243 = vpack.c.b16 %v203, %v202
  %v244 = vpack.c.b16 %v205, %v204
  %v245 = vpack.c.b16 %v207, %v206
  %v246 = vpack.c.b16 %v209, %v208
  %v247 = vpack.c.b16 %v211, %v210
  %v248 = vpack.c.b16 %v213, %v212
  %v249 = vpack.c.b16 %v215, %v214
  %v250 = vpack.c.b16 %v217, %v216
  %v251 = vpack.c.b16 %v219, %v218
  %v261 = vunpack.c.l.b16 %v79
  %v262 = vunpack.c.l.b16 %v80
  %v263 = vunpack.c.l.b16 %v81
  %v264 = vunpack.c.l.b16 %v82
  %v265 = vunpack.c.l.b16 %v83
  %v266 = vunpack.c.l.b16 %v84
  %v267 = vunpack.c.l.b16 %v85
  %v268 = vunpack.c.l.b16 %v86
  %v269 = vunpack.c.l.b16 %v87
  %v270 = vpack.c.b16 %v262, %v261
  %v271 = vpack.c.b16 %v264, %v263
  %v272 = vpack.c.b16 %v266, %v265
  %v273 = vpack.c.b16 %v268, %v267
  %v274 = vpack.c.b16 %v269, %v269
  %vm279 = vcmask 588800
  %v281 = vsel %vm279, %v220, 0
  %v284 = vsel %vm279, %v221, 0
  %v287 = vsel %vm279, %v222, 0
  %v290 = vsel %vm279, %v223, 0
  %v293 = vsel %vm279, %v224, 0
  %v296 = vsel %vm279, %v225, 0
  %v299 = vsel %vm279, %v226, 0
  %v302 = vsel %vm279, %v227, 0
  %v305 = vsel %vm279, %v228, 0
  %v308 = vsel %vm279, %v229, 0
  %v311 = vsel %vm279, %v230, 0
  %v314 = vsel %vm279, %v231, 0
  %v317 = vsel %vm279, %v232, 0
  %v320 = vsel %vm279, %v233, 0
  %v323 = vsel %vm279, %v234, 0
  %v326 = vsel %vm279, %v235, 0
  %v329 = vsel %vm279, %v236, 0
  %v332 = vsel %vm279, %v237, 0
  %v335 = vsel %vm279, %v238, 0
  %v338 = vsel %vm279, %v239, 0
  %v341 = vsel %vm279, %v240, 0
  %v344 = vsel %vm279, %v241, 0
  %v347 = vsel %vm279, %v242, 0
  %v350 = vsel %vm279, %v243, 0
  %v353 = vsel %vm279, %v244, 0
  %v356 = vsel %vm279, %v245, 0
  %v359 = vsel %vm279, %v246, 0
  %v362 = vsel %vm279, %v247, 0
  %v365 = vsel %vm279, %v248, 0
  %v368 = vsel %vm279, %v249, 0
  %v371 = vsel %vm279, %v250, 0
  %v374 = vsel %vm279, %v251, 0
  %vm376 = vcmask 1043456
  %v378 = vsel %vm376, %v274, 0
  %380 = vmatpush.bf16.msra.mxu0 0
  %381 = vmatpush.bf16.msra.mxu0 0
  %382 = vmatpush.bf16.msra.mxu0 0
  %383 = vmatpush.bf16.msra.mxu0 %v378
  %384 = vmatpush.bf16.msra.mxu0 %v273
  %385 = vmatpush.bf16.msra.mxu0 %v272
  %386 = vmatpush.bf16.msra.mxu0 %v271
  %387 = vmatpush.bf16.msra.mxu0 %v270
  %388 = vmatmul.bf16.gmra.mxu0 %v281
  %v389 = vpop.f32.mrf.mxu0
  %v390 = vadd.f32 %v90, %v389
  %v391 = vpop.f32.mrf.mxu0
  %v392 = vadd.f32 %v90, %v391
  %393 = vmatmul.bf16.gmra.mxu0 %v284
  %v394 = vpop.f32.mrf.mxu0
  %v395 = vadd.f32 %v90, %v394
  %v396 = vpop.f32.mrf.mxu0
  %v397 = vadd.f32 %v90, %v396
  %398 = vmatmul.bf16.gmra.mxu0 %v287
  %v399 = vpop.f32.mrf.mxu0
  %v400 = vadd.f32 %v90, %v399
  %v401 = vpop.f32.mrf.mxu0
  %v402 = vadd.f32 %v90, %v401
  %403 = vmatmul.bf16.gmra.mxu0 %v290
  %v404 = vpop.f32.mrf.mxu0
  %v405 = vadd.f32 %v90, %v404
  %v406 = vpop.f32.mrf.mxu0
  %v407 = vadd.f32 %v90, %v406
  %408 = vmatmul.bf16.gmra.mxu0 %v293
  %v409 = vpop.f32.mrf.mxu0
  %v410 = vadd.f32 %v90, %v409
  %v411 = vpop.f32.mrf.mxu0
  %v412 = vadd.f32 %v90, %v411
  %413 = vmatmul.bf16.gmra.mxu0 %v296
  %v414 = vpop.f32.mrf.mxu0
  %v415 = vadd.f32 %v90, %v414
  %v416 = vpop.f32.mrf.mxu0
  %v417 = vadd.f32 %v90, %v416
  %418 = vmatmul.bf16.gmra.mxu0 %v299
  %v419 = vpop.f32.mrf.mxu0
  %v420 = vadd.f32 %v90, %v419
  %v421 = vpop.f32.mrf.mxu0
  %v422 = vadd.f32 %v90, %v421
  %423 = vmatmul.bf16.gmra.mxu0 %v302
  %v424 = vpop.f32.mrf.mxu0
  %v425 = vadd.f32 %v90, %v424
  %v426 = vpop.f32.mrf.mxu0
  %v427 = vadd.f32 %v90, %v426
  %428 = vmatmul.bf16.gmra.mxu0 %v305
  %v429 = vpop.f32.mrf.mxu0
  %v430 = vadd.f32 %v90, %v429
  %v431 = vpop.f32.mrf.mxu0
  %v432 = vadd.f32 %v90, %v431
  %433 = vmatmul.bf16.gmra.mxu0 %v308
  %v434 = vpop.f32.mrf.mxu0
  %v435 = vadd.f32 %v90, %v434
  %v436 = vpop.f32.mrf.mxu0
  %v437 = vadd.f32 %v90, %v436
  %438 = vmatmul.bf16.gmra.mxu0 %v311
  %v439 = vpop.f32.mrf.mxu0
  %v440 = vadd.f32 %v90, %v439
  %v441 = vpop.f32.mrf.mxu0
  %v442 = vadd.f32 %v90, %v441
  %443 = vmatmul.bf16.gmra.mxu0 %v314
  %v444 = vpop.f32.mrf.mxu0
  %v445 = vadd.f32 %v90, %v444
  %v446 = vpop.f32.mrf.mxu0
  %v447 = vadd.f32 %v90, %v446
  %448 = vmatmul.bf16.gmra.mxu0 %v317
  %v449 = vpop.f32.mrf.mxu0
  %v450 = vadd.f32 %v90, %v449
  %v451 = vpop.f32.mrf.mxu0
  %v452 = vadd.f32 %v90, %v451
  %453 = vmatmul.bf16.gmra.mxu0 %v320
  %v454 = vpop.f32.mrf.mxu0
  %v455 = vadd.f32 %v90, %v454
  %v456 = vpop.f32.mrf.mxu0
  %v457 = vadd.f32 %v90, %v456
  %458 = vmatmul.bf16.gmra.mxu0 %v323
  %v459 = vpop.f32.mrf.mxu0
  %v460 = vadd.f32 %v90, %v459
  %v461 = vpop.f32.mrf.mxu0
  %v462 = vadd.f32 %v90, %v461
  %463 = vmatmul.bf16.gmra.mxu0 %v326
  %v464 = vpop.f32.mrf.mxu0
  %v465 = vadd.f32 %v90, %v464
  %v466 = vpop.f32.mrf.mxu0
  %v467 = vadd.f32 %v90, %v466
  %468 = vmatmul.bf16.gmra.mxu0 %v329
  %v469 = vpop.f32.mrf.mxu0
  %v470 = vadd.f32 %v90, %v469
  %v471 = vpop.f32.mrf.mxu0
  %v472 = vadd.f32 %v90, %v471
  %473 = vmatmul.bf16.gmra.mxu0 %v332
  %v474 = vpop.f32.mrf.mxu0
  %v475 = vadd.f32 %v90, %v474
  %v476 = vpop.f32.mrf.mxu0
  %v477 = vadd.f32 %v90, %v476
  %478 = vmatmul.bf16.gmra.mxu0 %v335
  %v479 = vpop.f32.mrf.mxu0
  %v480 = vadd.f32 %v90, %v479
  %v481 = vpop.f32.mrf.mxu0
  %v482 = vadd.f32 %v90, %v481
  %483 = vmatmul.bf16.gmra.mxu0 %v338
  %v484 = vpop.f32.mrf.mxu0
  %v485 = vadd.f32 %v90, %v484
  %v486 = vpop.f32.mrf.mxu0
  %v487 = vadd.f32 %v90, %v486
  %488 = vmatmul.bf16.gmra.mxu0 %v341
  %v489 = vpop.f32.mrf.mxu0
  %v490 = vadd.f32 %v90, %v489
  %v491 = vpop.f32.mrf.mxu0
  %v492 = vadd.f32 %v90, %v491
  %493 = vmatmul.bf16.gmra.mxu0 %v344
  %v494 = vpop.f32.mrf.mxu0
  %v495 = vadd.f32 %v90, %v494
  %v496 = vpop.f32.mrf.mxu0
  %v497 = vadd.f32 %v90, %v496
  %498 = vmatmul.bf16.gmra.mxu0 %v347
  %v499 = vpop.f32.mrf.mxu0
  %v500 = vadd.f32 %v90, %v499
  %v501 = vpop.f32.mrf.mxu0
  %v502 = vadd.f32 %v90, %v501
  %503 = vmatmul.bf16.gmra.mxu0 %v350
  %v504 = vpop.f32.mrf.mxu0
  %v505 = vadd.f32 %v90, %v504
  %v506 = vpop.f32.mrf.mxu0
  %v507 = vadd.f32 %v90, %v506
  %508 = vmatmul.bf16.gmra.mxu0 %v353
  %v509 = vpop.f32.mrf.mxu0
  %v510 = vadd.f32 %v90, %v509
  %v511 = vpop.f32.mrf.mxu0
  %v512 = vadd.f32 %v90, %v511
  %513 = vmatmul.bf16.gmra.mxu0 %v356
  %v514 = vpop.f32.mrf.mxu0
  %v515 = vadd.f32 %v90, %v514
  %v516 = vpop.f32.mrf.mxu0
  %v517 = vadd.f32 %v90, %v516
  %518 = vmatmul.bf16.gmra.mxu0 %v359
  %v519 = vpop.f32.mrf.mxu0
  %v520 = vadd.f32 %v90, %v519
  %v521 = vpop.f32.mrf.mxu0
  %v522 = vadd.f32 %v90, %v521
  %523 = vmatmul.bf16.gmra.mxu0 %v362
  %v524 = vpop.f32.mrf.mxu0
  %v525 = vadd.f32 %v90, %v524
  %v526 = vpop.f32.mrf.mxu0
  %v527 = vadd.f32 %v90, %v526
  %528 = vmatmul.bf16.gmra.mxu0 %v365
  %v529 = vpop.f32.mrf.mxu0
  %v530 = vadd.f32 %v90, %v529
  %v531 = vpop.f32.mrf.mxu0
  %v532 = vadd.f32 %v90, %v531
  %533 = vmatmul.bf16.gmra.mxu0 %v368
  %v534 = vpop.f32.mrf.mxu0
  %v535 = vadd.f32 %v90, %v534
  %v536 = vpop.f32.mrf.mxu0
  %v537 = vadd.f32 %v90, %v536
  %538 = vmatmul.bf16.gmra.mxu0 %v371
  %v539 = vpop.f32.mrf.mxu0
  %v540 = vadd.f32 %v90, %v539
  %v541 = vpop.f32.mrf.mxu0
  %v542 = vadd.f32 %v90, %v541
  %543 = vmatmul.bf16.gmra.mxu0 %v374
  %v544 = vpop.f32.mrf.mxu0
  %v545 = vadd.f32 %v90, %v544
  %v546 = vpop.f32.mrf.mxu0
  %v547 = vadd.f32 %v90, %v546
  %548 = vdwg.mxu0
  %vm549 = vcmask 23552
  %550 = vst.msk [vmem:[%s3] sm:$0xff] %vm549, %v390
  %551 = vst.msk [vmem:[%s3 + $0x8] sm:$0xff] %vm549, %v392
  %552 = vst.msk [vmem:[%s3 + $0x10] sm:$0xff] %vm549, %v395
  %553 = vst.msk [vmem:[%s3 + $0x18] sm:$0xff] %vm549, %v397
  %554 = vst.msk [vmem:[%s3 + $0x20] sm:$0xff] %vm549, %v400
  %555 = vst.msk [vmem:[%s3 + $0x28] sm:$0xff] %vm549, %v402
  %556 = vst.msk [vmem:[%s3 + $0x30] sm:$0xff] %vm549, %v405
  %557 = vst.msk [vmem:[%s3 + $0x38] sm:$0xff] %vm549, %v407
  %558 = vst.msk [vmem:[%s3 + $0x40] sm:$0xff] %vm549, %v410
  %559 = vst.msk [vmem:[%s3 + $0x48] sm:$0xff] %vm549, %v412
  %560 = vst.msk [vmem:[%s3 + $0x50] sm:$0xff] %vm549, %v415
  %561 = vst.msk [vmem:[%s3 + $0x58] sm:$0xff] %vm549, %v417
  %562 = vst.msk [vmem:[%s3 + $0x60] sm:$0xff] %vm549, %v420
  %563 = vst.msk [vmem:[%s3 + $0x68] sm:$0xff] %vm549, %v422
  %564 = vst.msk [vmem:[%s3 + $0x70] sm:$0xff] %vm549, %v425
  %565 = vst.msk [vmem:[%s3 + $0x78] sm:$0xff] %vm549, %v427
  %566 = vst.msk [vmem:[%s3 + $0x80] sm:$0xff] %vm549, %v430
  %567 = vst.msk [vmem:[%s3 + $0x88] sm:$0xff] %vm549, %v432
  %568 = vst.msk [vmem:[%s3 + $0x90] sm:$0xff] %vm549, %v435
  %569 = vst.msk [vmem:[%s3 + $0x98] sm:$0xff] %vm549, %v437
  %570 = vst.msk [vmem:[%s3 + $0xa0] sm:$0xff] %vm549, %v440
  %571 = vst.msk [vmem:[%s3 + $0xa8] sm:$0xff] %vm549, %v442
  %572 = vst.msk [vmem:[%s3 + $0xb0] sm:$0xff] %vm549, %v445
  %573 = vst.msk [vmem:[%s3 + $0xb8] sm:$0xff] %vm549, %v447
  %574 = vst.msk [vmem:[%s3 + $0xc0] sm:$0xff] %vm549, %v450
  %575 = vst.msk [vmem:[%s3 + $0xc8] sm:$0xff] %vm549, %v452
  %576 = vst.msk [vmem:[%s3 + $0xd0] sm:$0xff] %vm549, %v455
  %577 = vst.msk [vmem:[%s3 + $0xd8] sm:$0xff] %vm549, %v457
  %578 = vst.msk [vmem:[%s3 + $0xe0] sm:$0xff] %vm549, %v460
  %579 = vst.msk [vmem:[%s3 + $0xe8] sm:$0xff] %vm549, %v462
  %580 = vst.msk [vmem:[%s3 + $0xf0] sm:$0xff] %vm549, %v465
  %581 = vst.msk [vmem:[%s3 + $0xf8] sm:$0xff] %vm549, %v467
  %582 = vst.msk [vmem:[%s3 + $0x100] sm:$0xff] %vm549, %v470
  %583 = vst.msk [vmem:[%s3 + $0x108] sm:$0xff] %vm549, %v472
  %584 = vst.msk [vmem:[%s3 + $0x110] sm:$0xff] %vm549, %v475
  %585 = vst.msk [vmem:[%s3 + $0x118] sm:$0xff] %vm549, %v477
  %586 = vst.msk [vmem:[%s3 + $0x120] sm:$0xff] %vm549, %v480
  %587 = vst.msk [vmem:[%s3 + $0x128] sm:$0xff] %vm549, %v482
  %588 = vst.msk [vmem:[%s3 + $0x130] sm:$0xff] %vm549, %v485
  %589 = vst.msk [vmem:[%s3 + $0x138] sm:$0xff] %vm549, %v487
  %590 = vst.msk [vmem:[%s3 + $0x140] sm:$0xff] %vm549, %v490
  %591 = vst.msk [vmem:[%s3 + $0x148] sm:$0xff] %vm549, %v492
  %592 = vst.msk [vmem:[%s3 + $0x150] sm:$0xff] %vm549, %v495
  %593 = vst.msk [vmem:[%s3 + $0x158] sm:$0xff] %vm549, %v497
  %594 = vst.msk [vmem:[%s3 + $0x160] sm:$0xff] %vm549, %v500
  %595 = vst.msk [vmem:[%s3 + $0x168] sm:$0xff] %vm549, %v502
  %596 = vst.msk [vmem:[%s3 + $0x170] sm:$0xff] %vm549, %v505
  %597 = vst.msk [vmem:[%s3 + $0x178] sm:$0xff] %vm549, %v507
  %598 = vst.msk [vmem:[%s3 + $0x180] sm:$0xff] %vm549, %v510
  %599 = vst.msk [vmem:[%s3 + $0x188] sm:$0xff] %vm549, %v512
  %600 = vst.msk [vmem:[%s3 + $0x190] sm:$0xff] %vm549, %v515
  %601 = vst.msk [vmem:[%s3 + $0x198] sm:$0xff] %vm549, %v517
  %602 = vst.msk [vmem:[%s3 + $0x1a0] sm:$0xff] %vm549, %v520
  %603 = vst.msk [vmem:[%s3 + $0x1a8] sm:$0xff] %vm549, %v522
  %604 = vst.msk [vmem:[%s3 + $0x1b0] sm:$0xff] %vm549, %v525
  %605 = vst.msk [vmem:[%s3 + $0x1b8] sm:$0xff] %vm549, %v527
  %606 = vst.msk [vmem:[%s3 + $0x1c0] sm:$0xff] %vm549, %v530
  %607 = vst.msk [vmem:[%s3 + $0x1c8] sm:$0xff] %vm549, %v532
  %608 = vst.msk [vmem:[%s3 + $0x1d0] sm:$0xff] %vm549, %v535
  %609 = vst.msk [vmem:[%s3 + $0x1d8] sm:$0xff] %vm549, %v537
  %610 = vst.msk [vmem:[%s3 + $0x1e0] sm:$0xff] %vm549, %v540
  %611 = vst.msk [vmem:[%s3 + $0x1e8] sm:$0xff] %vm549, %v542
  %612 = vst.msk [vmem:[%s3 + $0x1f0] sm:$0xff] %vm549, %v545
  %613 = vst.msk [vmem:[%s3 + $0x1f8] sm:$0xff] %vm549, %v547
  // Predicated region
  $region14: #{resnet_forward.27} parent=0 // pred_check
    _
  $region15: #{resnet_forward.27} parent=0 // pred_check_branch
    %615 = sbr.rel (0) target = $region17
  $region16: #{resnet_forward.27} parent=0 // pred_region
    _
  $region17: #{resnet_forward.27} parent=0 // pred_fallthru
    _
  // Predicated region
  $region18: #{resnet_forward.27} parent=0 // pred_check
    _
  $region19: #{resnet_forward.27} parent=0 // pred_check_branch
    %617 = sbr.rel (0) target = $region21
  $region20: #{resnet_forward.27} parent=0 // pred_region
    _
  $region21: #{resnet_forward.27} parent=0 // pred_fallthru
    _

</llo_original>
